<compile_context>
chip_gen: v5e
topology: v5e:2x2
jax: 0.10.0
libtpu: 0.0.40
codegen_flags: <defaults>
</compile_context>

<pallas_src>
import jax
import jax.numpy as jnp
from jax import lax
from jax.experimental import pallas as pl
from jax.experimental.pallas import tpu as pltpu


def spconv_kernel(x3p_ref, x1_ref, wg_ref, w1_ref,
                  s1_ref, t1_ref, s2_ref, t2_ref, out_ref):
    BB, Hp, Wp, C3 = x3p_ref.shape
    _, H, W, C1 = x1_ref.shape
    Cp = s1_ref.shape[-1]               # padded output channels (mult. of 128)
    HW = H * W
    M = BB * HW

    # im2col: the 9 shifted taps, concatenated once along the channel (lane)
    # axis, then a single (M, 9*C3) x (9*C3, Cp) MXU matmul.  pwc is already
    # folded into the centre tap of wg, conv1x1's bias into t2.
    taps = [x3p_ref[:, dy:dy + H, dx:dx + W, :]
            for dy in range(3) for dx in range(3)]
    xcol = jnp.concatenate(taps, axis=-1).reshape(M, 9 * C3)

    # 3x3 branch (gwc + pwc) then bn1 (eval, folded).  f32 accumulation.
    out3 = jnp.dot(xcol, wg_ref[...], preferred_element_type=jnp.float32)
    out3 = out3 * s1_ref[...] + t1_ref[...]
    out3 = out3.reshape(BB, HW, Cp)

    # 1x1 branch: conv1x1 (+bias) and bn2 folded into s2/t2.
    x1f = x1_ref[...].reshape(M, C1)
    out1 = jnp.dot(x1f, w1_ref[...], preferred_element_type=jnp.float32)
    out1 = out1 * s2_ref[...] + t2_ref[...]
    out1 = out1.reshape(BB, HW, Cp)

    # Per-image global average pool -> per-channel 2-way softmax gate.
    # softmax([r3, r1]) over the pair reduces to g1 = sigmoid(r1 - r3):
    # one EUP exp + one EUP approx-reciprocal, no VPU divide.
    r3 = jnp.mean(out3, axis=1)                     # (BB, Cp)
    r1 = jnp.mean(out1, axis=1)
    g1 = pl.reciprocal(1.0 + jnp.exp(r3 - r1), approx=True)   # weight of out1
    g1 = g1[:, None, :]

    # out = g3*out3 + g1*out1 with g3 = 1 - g1  -> single fused blend.
    out = out3 + g1 * (out1 - out3)                 # (BB, HW, Cp), f32
    out_ref[...] = out.reshape(BB, H, W, Cp).astype(out_ref.dtype)


def _pick_batch_block(B, max_bb=8):
    """Largest divisor of B that is <= max_bb (images folded per grid step)."""
    bb = 1
    for d in range(1, min(B, max_bb) + 1):
        if B % d == 0:
            bb = d
    return bb


def _prepare_kernel_params(params, cout_p):
    """Fuse pwc into the grouped-3x3 centre tap, fold the conv1x1 bias into
    the bn2 shift, zero-pad output channels to cout_p, cast weights to bf16."""
    C3, Cout = params["wp"].shape
    pad = cout_p - Cout

    wg = params["wg_full"].at[1, 1].add(params["wp"])       # (3,3,C3,Cout)
    wg_mat = wg.reshape(9 * C3, Cout)
    w1 = params["w1"]                                       # (C1, Cout)

    s1 = params["s1"]
    t1 = params["t1"]
    s2 = params["s2"]
    t2 = params["t2"] + params["b1"] * params["s2"]         # bias folded in

    def pad_last(a):
        return jnp.pad(a, [(0, 0)] * (a.ndim - 1) + [(0, pad)])

    wg_mat = pad_last(wg_mat).astype(jnp.bfloat16)
    w1 = pad_last(w1).astype(jnp.bfloat16)
    vecs = [pad_last(v.reshape(1, Cout)).astype(jnp.float32)
            for v in (s1, t1, s2, t2)]
    return (wg_mat, w1) + tuple(vecs)


def spconv_3x3_forward(x_nchw, params, ratio=0.5, batch_block=None):
    B, C, H, W = x_nchw.shape
    C3 = int(C * ratio)
    C1 = C - C3
    Cout = params["wp"].shape[1]
    Cp = ((Cout + 127) // 128) * 128        # lane-dense (padded) out channels
    Hp, Wp = H + 2, W + 2

    BB = batch_block or _pick_batch_block(B)
    assert B % BB == 0, "batch block must divide the batch size"

    x = jnp.transpose(x_nchw, (0, 2, 3, 1)).astype(jnp.bfloat16)   # NHWC bf16
    x3p = jnp.pad(x[..., :C3], ((0, 0), (1, 1), (1, 1), (0, 0)))
    x1 = x[..., C3:]

    wg_mat, w1, s1, t1, s2, t2 = _prepare_kernel_params(params, Cp)

    # Explicit VMEM budget: double-buffered in/out blocks + weights + f32
    # temporaries, clamped to [32, 64] MiB (safe on v7x's 64 MiB per core).
    in_b = BB * (Hp * Wp * C3 + H * W * C1) * 2
    out_b = BB * H * W * Cp * 4
    w_b = (9 * C3 + C1 + 4) * Cp * 4
    tmp_b = BB * H * W * (9 * C3 * 2 + 3 * Cp * 4)
    vmem_limit = int(min(max(2 * (in_b + out_b) + w_b + 2 * tmp_b + (8 << 20),
                             32 << 20), 64 << 20))

    out = pl.pallas_call(
        spconv_kernel,
        out_shape=jax.ShapeDtypeStruct((B, H, W, Cp), jnp.float32),
        grid=(B // BB,),
        in_specs=[
            pl.BlockSpec((BB, Hp, Wp, C3), lambda b: (b, 0, 0, 0)),
            pl.BlockSpec((BB, H, W, C1), lambda b: (b, 0, 0, 0)),
            pl.BlockSpec((9 * C3, Cp), lambda b: (0, 0)),
            pl.BlockSpec((C1, Cp), lambda b: (0, 0)),
            pl.BlockSpec((1, Cp), lambda b: (0, 0)),
            pl.BlockSpec((1, Cp), lambda b: (0, 0)),
            pl.BlockSpec((1, Cp), lambda b: (0, 0)),
            pl.BlockSpec((1, Cp), lambda b: (0, 0)),
        ],
        out_specs=pl.BlockSpec((BB, H, W, Cp), lambda b: (b, 0, 0, 0)),
        compiler_params=pltpu.CompilerParams(
            dimension_semantics=("parallel",),
            vmem_limit_bytes=vmem_limit),
    )(x3p, x1, wg_mat, w1, s1, t1, s2, t2)

    out = out[..., :Cout]                            # drop lane padding
    return jnp.transpose(out, (0, 3, 1, 2))          # back to NCHW


def make_params(key, inplanes, outplanes, ratio=0.5, eps=1e-5):
    C3 = int(inplanes * ratio)
    C1 = inplanes - C3
    Cout = outplanes
    C3h, Couth = C3 // 2, Cout // 2

    ks = jax.random.split(key, 12)

    # gwc: grouped 3x3 conv, groups=2, no bias -> expand to block-diag HWIO.
    wg_blocks = 0.1 * jax.random.normal(ks[0], (2, 3, 3, C3h, Couth), jnp.float32)
    wg_full = jnp.zeros((3, 3, C3, Cout), jnp.float32)
    for g in range(2):
        wg_full = wg_full.at[:, :, g * C3h:(g + 1) * C3h,
                             g * Couth:(g + 1) * Couth].set(wg_blocks[g])

    wp = 0.1 * jax.random.normal(ks[1], (C3, Cout), jnp.float32)   # pwc (no bias)
    w1 = 0.1 * jax.random.normal(ks[2], (C1, Cout), jnp.float32)   # conv1x1
    b1 = 0.1 * jax.random.normal(ks[3], (Cout,), jnp.float32)      # conv1x1 bias

    # BatchNorm params (inference mode), folded to scale/shift.
    def bn_fold(kg, kb, km, kv):
        gamma = 1.0 + 0.1 * jax.random.normal(kg, (Cout,), jnp.float32)
        beta = 0.1 * jax.random.normal(kb, (Cout,), jnp.float32)
        mean = 0.1 * jax.random.normal(km, (Cout,), jnp.float32)
        var = 1.0 + 0.1 * jax.random.uniform(kv, (Cout,), jnp.float32)
        scale = gamma / jnp.sqrt(var + eps)
        shift = beta - mean * scale
        return scale, shift

    s1, t1 = bn_fold(ks[4], ks[5], ks[6], ks[7])
    s2, t2 = bn_fold(ks[8], ks[9], ks[10], ks[11])

    return dict(wg_full=wg_full, wp=wp, w1=w1, b1=b1,
                s1=s1, t1=t1, s2=s2, t2=t2)


def reference_forward(x_nchw, p, ratio=0.5):
    """Pure-JAX (XLA) reference mirroring the PyTorch forward (stride=1, eval BN),
    using the original (unfused, unpadded) parameters."""
    B, C, H, W = x_nchw.shape
    C3 = int(C * ratio)
    x = jnp.transpose(x_nchw, (0, 2, 3, 1)).astype(jnp.float32)
    x3, x1 = x[..., :C3], x[..., C3:]
    dn = ("NHWC", "HWIO", "NHWC")

    gwc = lax.conv_general_dilated(x3, p["wg_full"], (1, 1), ((1, 1), (1, 1)),
                                   dimension_numbers=dn)
    pwc = lax.conv_general_dilated(x3, p["wp"][None, None], (1, 1), "VALID",
                                   dimension_numbers=dn)
    out3 = (gwc + pwc) * p["s1"] + p["t1"]

    c11 = lax.conv_general_dilated(x1, p["w1"][None, None], (1, 1), "VALID",
                                   dimension_numbers=dn) + p["b1"]
    out1 = c11 * p["s2"] + p["t2"]

    r3 = out3.mean(axis=(1, 2))                     # (B, Cout)
    r1 = out1.mean(axis=(1, 2))
    gate = jax.nn.softmax(jnp.stack([r3, r1], axis=-1), axis=-1)  # (B, Cout, 2)
    out = (out1 * gate[..., 1][:, None, None, :]
           + out3 * gate[..., 0][:, None, None, :])
    return jnp.transpose(out, (0, 3, 1, 2))


if __name__ == "__main__":
    B, inplanes, outplanes, H, W = 2, 8, 8, 16, 16
    key = jax.random.PRNGKey(0)
    kparam, kx = jax.random.split(key)

    params = make_params(kparam, inplanes, outplanes, ratio=0.5)
    x = jax.random.normal(kx, (B, inplanes, H, W), jnp.float32)

    out = jax.block_until_ready(spconv_3x3_forward(x, params))
    ref = jax.block_until_ready(reference_forward(x, params))

    assert out.shape == (B, outplanes, H, W)
    max_err = float(jnp.max(jnp.abs(out - ref)))
    assert jnp.allclose(out, ref, atol=5e-2, rtol=5e-2), (
        f"mismatch vs XLA reference (max abs err {max_err})")

    print("KERNEL_OK")
</pallas_src>

<mosaic_0001>
module attributes {stable_mosaic.version = 11 : i64} {
  func.func @spconv_kernel(%arg0: i32, %arg1: memref<2x18x18x4xbf16, #tpu.memory_space<vmem>>, %arg2: memref<2x16x16x4xbf16, #tpu.memory_space<vmem>>, %arg3: memref<36x128xbf16, #tpu.memory_space<vmem>>, %arg4: memref<4x128xbf16, #tpu.memory_space<vmem>>, %arg5: memref<1x128xf32, #tpu.memory_space<vmem>>, %arg6: memref<1x128xf32, #tpu.memory_space<vmem>>, %arg7: memref<1x128xf32, #tpu.memory_space<vmem>>, %arg8: memref<1x128xf32, #tpu.memory_space<vmem>>, %arg9: memref<2x16x16x128xf32, #tpu.memory_space<vmem>>) attributes {dimension_semantics = [#tpu.dimension_semantics<parallel>], iteration_bounds = array<i64: 1>, scalar_prefetch = 0 : i64, scratch_operands = 0 : i64, tpu.core_type = #tpu.core_type<tc>, window_params = [{transform_indices = @transform_0, window_bounds = array<i64: 2, 18, 18, 4>}, {transform_indices = @transform_1, window_bounds = array<i64: 2, 16, 16, 4>}, {pipeline_mode = #tpu.pipeline_mode<synchronous>, transform_indices = @transform_2, window_bounds = array<i64: 36, 128>}, {pipeline_mode = #tpu.pipeline_mode<synchronous>, transform_indices = @transform_3, window_bounds = array<i64: 4, 128>}, {pipeline_mode = #tpu.pipeline_mode<synchronous>, transform_indices = @transform_4, window_bounds = array<i64: 1, 128>}, {pipeline_mode = #tpu.pipeline_mode<synchronous>, transform_indices = @transform_5, window_bounds = array<i64: 1, 128>}, {pipeline_mode = #tpu.pipeline_mode<synchronous>, transform_indices = @transform_6, window_bounds = array<i64: 1, 128>}, {pipeline_mode = #tpu.pipeline_mode<synchronous>, transform_indices = @transform_7, window_bounds = array<i64: 1, 128>}, {transform_indices = @transform_8, window_bounds = array<i64: 2, 16, 16, 128>}]} {
    %c0 = arith.constant 0 : index
    %c0_0 = arith.constant 0 : index
    %c0_1 = arith.constant 0 : index
    %c0_2 = arith.constant 0 : index
    %0 = vector.load %arg1[%c0, %c0_0, %c0_1, %c0_2] : memref<2x18x18x4xbf16, #tpu.memory_space<vmem>>, vector<2x16x16x4xbf16>
    %c0_3 = arith.constant 0 : index
    %c0_4 = arith.constant 0 : index
    %c1 = arith.constant 1 : index
    %c0_5 = arith.constant 0 : index
    %1 = vector.load %arg1[%c0_3, %c0_4, %c1, %c0_5] : memref<2x18x18x4xbf16, #tpu.memory_space<vmem>>, vector<2x16x16x4xbf16>
    %c0_6 = arith.constant 0 : index
    %c0_7 = arith.constant 0 : index
    %c2 = arith.constant 2 : index
    %c0_8 = arith.constant 0 : index
    %2 = vector.load %arg1[%c0_6, %c0_7, %c2, %c0_8] : memref<2x18x18x4xbf16, #tpu.memory_space<vmem>>, vector<2x16x16x4xbf16>
    %c0_9 = arith.constant 0 : index
    %c1_10 = arith.constant 1 : index
    %c0_11 = arith.constant 0 : index
    %c0_12 = arith.constant 0 : index
    %3 = vector.load %arg1[%c0_9, %c1_10, %c0_11, %c0_12] : memref<2x18x18x4xbf16, #tpu.memory_space<vmem>>, vector<2x16x16x4xbf16>
    %c0_13 = arith.constant 0 : index
    %c1_14 = arith.constant 1 : index
    %c1_15 = arith.constant 1 : index
    %c0_16 = arith.constant 0 : index
    %4 = vector.load %arg1[%c0_13, %c1_14, %c1_15, %c0_16] : memref<2x18x18x4xbf16, #tpu.memory_space<vmem>>, vector<2x16x16x4xbf16>
    %c0_17 = arith.constant 0 : index
    %c1_18 = arith.constant 1 : index
    %c2_19 = arith.constant 2 : index
    %c0_20 = arith.constant 0 : index
    %5 = vector.load %arg1[%c0_17, %c1_18, %c2_19, %c0_20] : memref<2x18x18x4xbf16, #tpu.memory_space<vmem>>, vector<2x16x16x4xbf16>
    %c0_21 = arith.constant 0 : index
    %c2_22 = arith.constant 2 : index
    %c0_23 = arith.constant 0 : index
    %c0_24 = arith.constant 0 : index
    %6 = vector.load %arg1[%c0_21, %c2_22, %c0_23, %c0_24] : memref<2x18x18x4xbf16, #tpu.memory_space<vmem>>, vector<2x16x16x4xbf16>
    %c0_25 = arith.constant 0 : index
    %c2_26 = arith.constant 2 : index
    %c1_27 = arith.constant 1 : index
    %c0_28 = arith.constant 0 : index
    %7 = vector.load %arg1[%c0_25, %c2_26, %c1_27, %c0_28] : memref<2x18x18x4xbf16, #tpu.memory_space<vmem>>, vector<2x16x16x4xbf16>
    %c0_29 = arith.constant 0 : index
    %c2_30 = arith.constant 2 : index
    %c2_31 = arith.constant 2 : index
    %c0_32 = arith.constant 0 : index
    %8 = vector.load %arg1[%c0_29, %c2_30, %c2_31, %c0_32] : memref<2x18x18x4xbf16, #tpu.memory_space<vmem>>, vector<2x16x16x4xbf16>
    %9 = tpu.concatenate %0, %1, %2, %3, %4, %5, %6, %7, %8 in 3 : vector<2x16x16x4xbf16>, vector<2x16x16x4xbf16>, vector<2x16x16x4xbf16>, vector<2x16x16x4xbf16>, vector<2x16x16x4xbf16>, vector<2x16x16x4xbf16>, vector<2x16x16x4xbf16>, vector<2x16x16x4xbf16>, vector<2x16x16x4xbf16> -> vector<2x16x16x36xbf16>
    %10 = vector.shape_cast %9 : vector<2x16x16x36xbf16> to vector<512x36xbf16>
    %c0_33 = arith.constant 0 : index
    %c0_34 = arith.constant 0 : index
    %11 = vector.load %arg3[%c0_33, %c0_34] : memref<36x128xbf16, #tpu.memory_space<vmem>>, vector<36x128xbf16>
    %cst = arith.constant dense<0.000000e+00> : vector<512x128xf32>
    %12 = tpu.matmul %10, %11, %cst {dimension_numbers = #tpu.dot_dimension_numbers<[1], [0], [0], [1], [0, 0, 1, 1], [], []>} : vector<512x36xbf16>, vector<36x128xbf16>, vector<512x128xf32> -> vector<512x128xf32>
    %c0_35 = arith.constant 0 : index
    %c0_36 = arith.constant 0 : index
    %13 = vector.load %arg5[%c0_35, %c0_36] : memref<1x128xf32, #tpu.memory_space<vmem>>, vector<1x128xf32>
    %14 = vector.broadcast %13 : vector<1x128xf32> to vector<512x128xf32>
    %15 = arith.mulf %12, %14 : vector<512x128xf32>
    %c0_37 = arith.constant 0 : index
    %c0_38 = arith.constant 0 : index
    %16 = vector.load %arg6[%c0_37, %c0_38] : memref<1x128xf32, #tpu.memory_space<vmem>>, vector<1x128xf32>
    %17 = vector.broadcast %16 : vector<1x128xf32> to vector<512x128xf32>
    %18 = arith.addf %15, %17 : vector<512x128xf32>
    %19 = vector.shape_cast %18 : vector<512x128xf32> to vector<2x256x128xf32>
    %c0_39 = arith.constant 0 : index
    %c0_40 = arith.constant 0 : index
    %c0_41 = arith.constant 0 : index
    %c0_42 = arith.constant 0 : index
    %20 = vector.load %arg2[%c0_39, %c0_40, %c0_41, %c0_42] : memref<2x16x16x4xbf16, #tpu.memory_space<vmem>>, vector<2x16x16x4xbf16>
    %21 = vector.shape_cast %20 : vector<2x16x16x4xbf16> to vector<512x4xbf16>
    %c0_43 = arith.constant 0 : index
    %c0_44 = arith.constant 0 : index
    %22 = vector.load %arg4[%c0_43, %c0_44] : memref<4x128xbf16, #tpu.memory_space<vmem>>, vector<4x128xbf16>
    %cst_45 = arith.constant dense<0.000000e+00> : vector<512x128xf32>
    %23 = tpu.matmul %21, %22, %cst_45 {dimension_numbers = #tpu.dot_dimension_numbers<[1], [0], [0], [1], [0, 0, 1, 1], [], []>} : vector<512x4xbf16>, vector<4x128xbf16>, vector<512x128xf32> -> vector<512x128xf32>
    %c0_46 = arith.constant 0 : index
    %c0_47 = arith.constant 0 : index
    %24 = vector.load %arg7[%c0_46, %c0_47] : memref<1x128xf32, #tpu.memory_space<vmem>>, vector<1x128xf32>
    %25 = vector.broadcast %24 : vector<1x128xf32> to vector<512x128xf32>
    %26 = arith.mulf %23, %25 : vector<512x128xf32>
    %c0_48 = arith.constant 0 : index
    %c0_49 = arith.constant 0 : index
    %27 = vector.load %arg8[%c0_48, %c0_49] : memref<1x128xf32, #tpu.memory_space<vmem>>, vector<1x128xf32>
    %28 = vector.broadcast %27 : vector<1x128xf32> to vector<512x128xf32>
    %29 = arith.addf %26, %28 : vector<512x128xf32>
    %30 = vector.shape_cast %29 : vector<512x128xf32> to vector<2x256x128xf32>
    %cst_50 = arith.constant dense<0.000000e+00> : vector<2x128xf32>
    %31 = vector.multi_reduction <add>, %19, %cst_50 [1] : vector<2x256x128xf32> to vector<2x128xf32>
    %cst_51 = arith.constant 2.560000e+02 : f32
    %32 = vector.broadcast %cst_51 : f32 to vector<2x128xf32>
    %33 = arith.divf %31, %32 : vector<2x128xf32>
    %cst_52 = arith.constant dense<0.000000e+00> : vector<2x128xf32>
    %34 = vector.multi_reduction <add>, %30, %cst_52 [1] : vector<2x256x128xf32> to vector<2x128xf32>
    %cst_53 = arith.constant 2.560000e+02 : f32
    %35 = vector.broadcast %cst_53 : f32 to vector<2x128xf32>
    %36 = arith.divf %34, %35 : vector<2x128xf32>
    %37 = arith.subf %33, %36 : vector<2x128xf32>
    %38 = math.exp %37 : vector<2x128xf32>
    %cst_54 = arith.constant 1.000000e+00 : f32
    %39 = vector.broadcast %cst_54 : f32 to vector<2x128xf32>
    %40 = arith.addf %39, %38 : vector<2x128xf32>
    %41 = tpu.reciprocal %40 {approx = true} : vector<2x128xf32> -> vector<2x128xf32>
    %42 = vector.shape_cast %41 : vector<2x128xf32> to vector<2x1x128xf32>
    %43 = arith.subf %30, %19 : vector<2x256x128xf32>
    %44 = vector.broadcast %42 : vector<2x1x128xf32> to vector<2x256x128xf32>
    %45 = arith.mulf %44, %43 : vector<2x256x128xf32>
    %46 = arith.addf %19, %45 : vector<2x256x128xf32>
    %47 = vector.shape_cast %46 : vector<2x256x128xf32> to vector<2x16x16x128xf32>
    %c0_55 = arith.constant 0 : index
    %c0_56 = arith.constant 0 : index
    %c0_57 = arith.constant 0 : index
    %c0_58 = arith.constant 0 : index
    %48 = vector.load %arg9[%c0_55, %c0_56, %c0_57, %c0_58] : memref<2x16x16x128xf32, #tpu.memory_space<vmem>>, vector<2x16x16x128xf32>
    tpu.vector_store %arg9[%c0_55, %c0_56, %c0_57, %c0_58], %47 {strides = array<i32>} : memref<2x16x16x128xf32, #tpu.memory_space<vmem>>, vector<2x16x16x128xf32>,
    return
  }
  func.func @transform_0(%arg0: i32) -> (i32, i32, i32, i32) {
    %c0_i32 = arith.constant 0 : i32
    %c0_i32_0 = arith.constant 0 : i32
    %c0_i32_1 = arith.constant 0 : i32
    %c0_i32_2 = arith.constant 0 : i32
    return %arg0, %c0_i32, %c0_i32_0, %c0_i32_1 : i32, i32, i32, i32
  }
  func.func @transform_1(%arg0: i32) -> (i32, i32, i32, i32) {
    %c0_i32 = arith.constant 0 : i32
    %c0_i32_0 = arith.constant 0 : i32
    %c0_i32_1 = arith.constant 0 : i32
    %c0_i32_2 = arith.constant 0 : i32
    return %arg0, %c0_i32, %c0_i32_0, %c0_i32_1 : i32, i32, i32, i32
  }
  func.func @transform_2(%arg0: i32) -> (i32, i32) {
    %c0_i32 = arith.constant 0 : i32
    %c0_i32_0 = arith.constant 0 : i32
    %c0_i32_1 = arith.constant 0 : i32
    return %c0_i32, %c0_i32_0 : i32, i32
  }
  func.func @transform_3(%arg0: i32) -> (i32, i32) {
    %c0_i32 = arith.constant 0 : i32
    %c0_i32_0 = arith.constant 0 : i32
    %c0_i32_1 = arith.constant 0 : i32
    return %c0_i32, %c0_i32_0 : i32, i32
  }
  func.func @transform_4(%arg0: i32) -> (i32, i32) {
    %c0_i32 = arith.constant 0 : i32
    %c0_i32_0 = arith.constant 0 : i32
    %c0_i32_1 = arith.constant 0 : i32
    return %c0_i32, %c0_i32_0 : i32, i32
  }
  func.func @transform_5(%arg0: i32) -> (i32, i32) {
    %c0_i32 = arith.constant 0 : i32
    %c0_i32_0 = arith.constant 0 : i32
    %c0_i32_1 = arith.constant 0 : i32
    return %c0_i32, %c0_i32_0 : i32, i32
  }
  func.func @transform_6(%arg0: i32) -> (i32, i32) {
    %c0_i32 = arith.constant 0 : i32
    %c0_i32_0 = arith.constant 0 : i32
    %c0_i32_1 = arith.constant 0 : i32
    return %c0_i32, %c0_i32_0 : i32, i32
  }
  func.func @transform_7(%arg0: i32) -> (i32, i32) {
    %c0_i32 = arith.constant 0 : i32
    %c0_i32_0 = arith.constant 0 : i32
    %c0_i32_1 = arith.constant 0 : i32
    return %c0_i32, %c0_i32_0 : i32, i32
  }
  func.func @transform_8(%arg0: i32) -> (i32, i32, i32, i32) {
    %c0_i32 = arith.constant 0 : i32
    %c0_i32_0 = arith.constant 0 : i32
    %c0_i32_1 = arith.constant 0 : i32
    %c0_i32_2 = arith.constant 0 : i32
    return %arg0, %c0_i32, %c0_i32_0, %c0_i32_1 : i32, i32, i32, i32
  }
}

</mosaic_0001>

<llo_original>
// kernel: tpu_custom_call.1
$region0: #{tpu_custom_call.1}
  #allocation0 [shape = 'u32[]', space=smem, size = 0x4, offset = 0x4, fixed_abs, tag = 'smem constant byte address 0x4 - core index']
  #allocation1 [shape = 'u32[72,128]{1,0:T(1,128)}', space=vmem, size = 0x9000, scoped, tag = 'internal scratch']
  %s0 = inlined_call_operand.vmem [shape: bf16[2,18,18,4], index: 0, kind: input, shape index: {}]
  %s1 = inlined_call_operand.vmem [shape: bf16[2,16,16,4], index: 1, kind: input, shape index: {}]
  %s2 = inlined_call_operand.vmem [shape: bf16[36,128], index: 2, kind: input, shape index: {}]
  %s3 = inlined_call_operand.vmem [shape: bf16[4,128], index: 3, kind: input, shape index: {}]
  %s4 = inlined_call_operand.vmem [shape: f32[1,128], index: 4, kind: input, shape index: {}]
  %s5 = inlined_call_operand.vmem [shape: f32[1,128], index: 5, kind: input, shape index: {}]
  %s6 = inlined_call_operand.vmem [shape: f32[1,128], index: 6, kind: input, shape index: {}]
  %s7 = inlined_call_operand.vmem [shape: f32[1,128], index: 7, kind: input, shape index: {}]
  %s8 = inlined_call_operand.hbm [shape: f32[2,16,16,128], index: 8, kind: output, shape index: {}]
  %s9 = sld [smem:[#allocation0]]
  $region42: #{tpu_custom_call.1} parent=0
    _
  %s11 = ssub.s32 1, %s9
  %s12 = scalar_select 0, %s11, %s9
  $region1: #{tpu_custom_call.1} parent=0
    #allocation2 [shape = 'u8[262144]{0}', space=vmem, size = 0x40000, scoped, tag = 'output window, operand 0, single buffered']
    #allocation3 [shape = 's32[1]{0}', space=sflag, size = 0x4, scoped, tag = 'scoped memory for tpu_custom_call.1']
    %13 = vsyncpa [#allocation3], 0
    // Predicated region
    $region2: #{tpu_custom_call.1} parent=1 // pred_check
      _
    $region3: #{tpu_custom_call.1} parent=1 // pred_check_branch
      %15 = sbr.rel (0) target = $region5
    $region4: #{tpu_custom_call.1} parent=1 // pred_region
      _
    $region5: #{tpu_custom_call.1} parent=1 // pred_fallthru
      _
    // Predicated region
    $region6: #{tpu_custom_call.1} parent=1 // pred_check
      _
    $region7: #{tpu_custom_call.1} parent=1 // pred_check_branch
      %17 = sbr.rel (0) target = $region9
    $region8: #{tpu_custom_call.1} parent=1 // pred_region
      _
    $region9: #{tpu_custom_call.1} parent=1 // pred_fallthru
      _
    // Predicated region
    $region10: #{tpu_custom_call.1} parent=1 // pred_check
      _
    $region11: #{tpu_custom_call.1} parent=1 // pred_check_branch
      %19 = sbr.rel (0) target = $region13
    $region12: #{tpu_custom_call.1} parent=1 // pred_region
      _
    $region13: #{tpu_custom_call.1} parent=1 // pred_fallthru
      _
    // Predicated region
    $region14: #{tpu_custom_call.1} parent=1 // pred_check
      _
    $region15: #{tpu_custom_call.1} parent=1 // pred_check_branch
      %21 = sbr.rel (0) target = $region17
    $region16: #{tpu_custom_call.1} parent=1 // pred_region
      _
    $region17: #{tpu_custom_call.1} parent=1 // pred_fallthru
      _
    // Predicated region
    $region18: #{tpu_custom_call.1} parent=1 // pred_check
      _
    $region19: #{tpu_custom_call.1} parent=1 // pred_check_branch
      %23 = sbr.rel (0) target = $region21
    $region20: #{tpu_custom_call.1} parent=1 // pred_region
      _
    $region21: #{tpu_custom_call.1} parent=1 // pred_fallthru
      _
    // Predicated region
    $region22: #{tpu_custom_call.1} parent=1 // pred_check
      _
    $region23: #{tpu_custom_call.1} parent=1 // pred_check_branch
      %25 = sbr.rel (0) target = $region25
    $region24: #{tpu_custom_call.1} parent=1 // pred_region
      _
    $region25: #{tpu_custom_call.1} parent=1 // pred_fallthru
      _
    // Predicated region
    $region26: #{tpu_custom_call.1} parent=1 // pred_check
      _
    $region27: #{tpu_custom_call.1} parent=1 // pred_check_branch
      %27 = sbr.rel (0) target = $region29
    $region28: #{tpu_custom_call.1} parent=1 // pred_region
      _
    $region29: #{tpu_custom_call.1} parent=1 // pred_fallthru
      _
    // Predicated region
    $region30: #{tpu_custom_call.1} parent=1 // pred_check
      _
    $region31: #{tpu_custom_call.1} parent=1 // pred_check_branch
      %29 = sbr.rel (0) target = $region33
    $region32: #{tpu_custom_call.1} parent=1 // pred_region
      _
    $region33: #{tpu_custom_call.1} parent=1 // pred_fallthru
      _
    %v31 = vld [vmem:[%s0] sm:$0xf]
    %v32 = vld [vmem:[%s0 + $0x4] sm:$0xf]
    %v33 = vld [vmem:[%s0 + $0xc] sm:$0xf]
    %v34 = vld [vmem:[%s0 + $0x10] sm:$0xf]
    %v35 = vld [vmem:[%s0 + $0x18] sm:$0xf]
    %v36 = vld [vmem:[%s0 + $0x1c] sm:$0xf]
    %v37 = vld [vmem:[%s0 + $0x24] sm:$0xf]
    %v38 = vld [vmem:[%s0 + $0x28] sm:$0xf]
    %v39 = vld [vmem:[%s0 + $0x30] sm:$0xf]
    %v40 = vld [vmem:[%s0 + $0x34] sm:$0xf]
    %v41 = vld [vmem:[%s0 + $0x3c] sm:$0xf]
    %v42 = vld [vmem:[%s0 + $0x40] sm:$0xf]
    %v43 = vld [vmem:[%s0 + $0x48] sm:$0xf]
    %v44 = vld [vmem:[%s0 + $0x4c] sm:$0xf]
    %v45 = vld [vmem:[%s0 + $0x54] sm:$0xf]
    %v46 = vld [vmem:[%s0 + $0x58] sm:$0xf]
    %v47 = vld [vmem:[%s0 + $0x60] sm:$0xf]
    %v48 = vld [vmem:[%s0 + $0x64] sm:$0xf]
    %v49 = vld [vmem:[%s0 + $0x6c] sm:$0xf]
    %v50 = vld [vmem:[%s0 + $0x70] sm:$0xf]
    %v51 = vld [vmem:[%s0 + $0x78] sm:$0xf]
    %v52 = vld [vmem:[%s0 + $0x7c] sm:$0xf]
    %v53 = vld [vmem:[%s0 + $0x84] sm:$0xf]
    %v54 = vld [vmem:[%s0 + $0x88] sm:$0xf]
    %v55 = vld [vmem:[%s0 + $0x90] sm:$0xf]
    %v56 = vld [vmem:[%s0 + $0x94] sm:$0xf]
    %v57 = vld [vmem:[%s0 + $0x9c] sm:$0xf]
    %v58 = vld [vmem:[%s0 + $0xa0] sm:$0xf]
    %v59 = vld [vmem:[%s0 + $0xa8] sm:$0xf]
    %v60 = vld [vmem:[%s0 + $0xac] sm:$0xf]
    %v61 = vld [vmem:[%s0 + $0xb4] sm:$0xf]
    %v62 = vld [vmem:[%s0 + $0xb8] sm:$0xf]
    %v63 = vld [vmem:[%s0 + $0xd8] sm:$0xf]
    %v64 = vld [vmem:[%s0 + $0xdc] sm:$0xf]
    %v65 = vld [vmem:[%s0 + $0xe4] sm:$0xf]
    %v66 = vld [vmem:[%s0 + $0xe8] sm:$0xf]
    %v67 = vld [vmem:[%s0 + $0xf0] sm:$0xf]
    %v68 = vld [vmem:[%s0 + $0xf4] sm:$0xf]
    %v69 = vld [vmem:[%s0 + $0xfc] sm:$0xf]
    %v70 = vld [vmem:[%s0 + $0x100] sm:$0xf]
    %v71 = vld [vmem:[%s0 + $0x108] sm:$0xf]
    %v72 = vld [vmem:[%s0 + $0x10c] sm:$0xf]
    %v73 = vld [vmem:[%s0 + $0x114] sm:$0xf]
    %v74 = vld [vmem:[%s0 + $0x118] sm:$0xf]
    %v75 = vld [vmem:[%s0 + $0x120] sm:$0xf]
    %v76 = vld [vmem:[%s0 + $0x124] sm:$0xf]
    %v77 = vld [vmem:[%s0 + $0x12c] sm:$0xf]
    %v78 = vld [vmem:[%s0 + $0x130] sm:$0xf]
    %v79 = vld [vmem:[%s0 + $0x138] sm:$0xf]
    %v80 = vld [vmem:[%s0 + $0x13c] sm:$0xf]
    %v81 = vld [vmem:[%s0 + $0x144] sm:$0xf]
    %v82 = vld [vmem:[%s0 + $0x148] sm:$0xf]
    %v83 = vld [vmem:[%s0 + $0x150] sm:$0xf]
    %v84 = vld [vmem:[%s0 + $0x154] sm:$0xf]
    %v85 = vld [vmem:[%s0 + $0x15c] sm:$0xf]
    %v86 = vld [vmem:[%s0 + $0x160] sm:$0xf]
    %v87 = vld [vmem:[%s0 + $0x168] sm:$0xf]
    %v88 = vld [vmem:[%s0 + $0x16c] sm:$0xf]
    %v89 = vld [vmem:[%s0 + $0x174] sm:$0xf]
    %v90 = vld [vmem:[%s0 + $0x178] sm:$0xf]
    %v91 = vld [vmem:[%s0 + $0x180] sm:$0xf]
    %v92 = vld [vmem:[%s0 + $0x184] sm:$0xf]
    %v93 = vld [vmem:[%s0 + $0x18c] sm:$0xf]
    %v94 = vld [vmem:[%s0 + $0x190] sm:$0xf]
    %v95 = vld [vmem:[%s0 + $0x8] sm:$0x1]
    %v96 = vld [vmem:[%s0 + $0x14] sm:$0x1]
    %v97 = vld [vmem:[%s0 + $0x20] sm:$0x1]
    %v98 = vld [vmem:[%s0 + $0x2c] sm:$0x1]
    %v99 = vld [vmem:[%s0 + $0x38] sm:$0x1]
    %v100 = vld [vmem:[%s0 + $0x44] sm:$0x1]
    %v101 = vld [vmem:[%s0 + $0x50] sm:$0x1]
    %v102 = vld [vmem:[%s0 + $0x5c] sm:$0x1]
    %v103 = vld [vmem:[%s0 + $0x68] sm:$0x1]
    %v104 = vld [vmem:[%s0 + $0x74] sm:$0x1]
    %v105 = vld [vmem:[%s0 + $0x80] sm:$0x1]
    %v106 = vld [vmem:[%s0 + $0x8c] sm:$0x1]
    %v107 = vld [vmem:[%s0 + $0x98] sm:$0x1]
    %v108 = vld [vmem:[%s0 + $0xa4] sm:$0x1]
    %v109 = vld [vmem:[%s0 + $0xb0] sm:$0x1]
    %v110 = vld [vmem:[%s0 + $0xbc] sm:$0x1]
    %v111 = vld [vmem:[%s0 + $0xe0] sm:$0x1]
    %v112 = vld [vmem:[%s0 + $0xec] sm:$0x1]
    %v113 = vld [vmem:[%s0 + $0xf8] sm:$0x1]
    %v114 = vld [vmem:[%s0 + $0x104] sm:$0x1]
    %v115 = vld [vmem:[%s0 + $0x110] sm:$0x1]
    %v116 = vld [vmem:[%s0 + $0x11c] sm:$0x1]
    %v117 = vld [vmem:[%s0 + $0x128] sm:$0x1]
    %v118 = vld [vmem:[%s0 + $0x134] sm:$0x1]
    %v119 = vld [vmem:[%s0 + $0x140] sm:$0x1]
    %v120 = vld [vmem:[%s0 + $0x14c] sm:$0x1]
    %v121 = vld [vmem:[%s0 + $0x158] sm:$0x1]
    %v122 = vld [vmem:[%s0 + $0x164] sm:$0x1]
    %v123 = vld [vmem:[%s0 + $0x170] sm:$0x1]
    %v124 = vld [vmem:[%s0 + $0x17c] sm:$0x1]
    %v125 = vld [vmem:[%s0 + $0x188] sm:$0x1]
    %v126 = vld [vmem:[%s0 + $0x194] sm:$0x1]
    %v127 = vld [vmem:[%s0] sm:$0xe]
    %v128 = vld [vmem:[%s0 + $0xc] sm:$0xe]
    %v129 = vld [vmem:[%s0 + $0x18] sm:$0xe]
    %v130 = vld [vmem:[%s0 + $0x24] sm:$0xe]
    %v131 = vld [vmem:[%s0 + $0x30] sm:$0xe]
    %v132 = vld [vmem:[%s0 + $0x3c] sm:$0xe]
    %v133 = vld [vmem:[%s0 + $0x48] sm:$0xe]
    %v134 = vld [vmem:[%s0 + $0x54] sm:$0xe]
    %v135 = vld [vmem:[%s0 + $0x60] sm:$0xe]
    %v136 = vld [vmem:[%s0 + $0x6c] sm:$0xe]
    %v137 = vld [vmem:[%s0 + $0x78] sm:$0xe]
    %v138 = vld [vmem:[%s0 + $0x84] sm:$0xe]
    %v139 = vld [vmem:[%s0 + $0x90] sm:$0xe]
    %v140 = vld [vmem:[%s0 + $0x9c] sm:$0xe]
    %v141 = vld [vmem:[%s0 + $0xa8] sm:$0xe]
    %v142 = vld [vmem:[%s0 + $0xb4] sm:$0xe]
    %v143 = vld [vmem:[%s0 + $0xd8] sm:$0xe]
    %v144 = vld [vmem:[%s0 + $0xe4] sm:$0xe]
    %v145 = vld [vmem:[%s0 + $0xf0] sm:$0xe]
    %v146 = vld [vmem:[%s0 + $0xfc] sm:$0xe]
    %v147 = vld [vmem:[%s0 + $0x108] sm:$0xe]
    %v148 = vld [vmem:[%s0 + $0x114] sm:$0xe]
    %v149 = vld [vmem:[%s0 + $0x120] sm:$0xe]
    %v150 = vld [vmem:[%s0 + $0x12c] sm:$0xe]
    %v151 = vld [vmem:[%s0 + $0x138] sm:$0xe]
    %v152 = vld [vmem:[%s0 + $0x144] sm:$0xe]
    %v153 = vld [vmem:[%s0 + $0x150] sm:$0xe]
    %v154 = vld [vmem:[%s0 + $0x15c] sm:$0xe]
    %v155 = vld [vmem:[%s0 + $0x168] sm:$0xe]
    %v156 = vld [vmem:[%s0 + $0x174] sm:$0xe]
    %v157 = vld [vmem:[%s0 + $0x180] sm:$0xe]
    %v158 = vld [vmem:[%s0 + $0x18c] sm:$0xe]
    %s159 = scalar_lea.vmem %s0, 12
    %v160 = vld [vmem:[%s159] sm:$0xf]
    %v161 = vld [vmem:[%s159 + $0x4] sm:$0xf]
    %v162 = vld [vmem:[%s159 + $0xc] sm:$0xf]
    %v163 = vld [vmem:[%s159 + $0x10] sm:$0xf]
    %v164 = vld [vmem:[%s159 + $0x18] sm:$0xf]
    %v165 = vld [vmem:[%s159 + $0x1c] sm:$0xf]
    %v166 = vld [vmem:[%s159 + $0x24] sm:$0xf]
    %v167 = vld [vmem:[%s159 + $0x28] sm:$0xf]
    %v168 = vld [vmem:[%s159 + $0x30] sm:$0xf]
    %v169 = vld [vmem:[%s159 + $0x34] sm:$0xf]
    %v170 = vld [vmem:[%s159 + $0x3c] sm:$0xf]
    %v171 = vld [vmem:[%s159 + $0x40] sm:$0xf]
    %v172 = vld [vmem:[%s159 + $0x48] sm:$0xf]
    %v173 = vld [vmem:[%s159 + $0x4c] sm:$0xf]
    %v174 = vld [vmem:[%s159 + $0x54] sm:$0xf]
    %v175 = vld [vmem:[%s159 + $0x58] sm:$0xf]
    %v176 = vld [vmem:[%s159 + $0x60] sm:$0xf]
    %v177 = vld [vmem:[%s159 + $0x64] sm:$0xf]
    %v178 = vld [vmem:[%s159 + $0x6c] sm:$0xf]
    %v179 = vld [vmem:[%s159 + $0x70] sm:$0xf]
    %v180 = vld [vmem:[%s159 + $0x78] sm:$0xf]
    %v181 = vld [vmem:[%s159 + $0x7c] sm:$0xf]
    %v182 = vld [vmem:[%s159 + $0x84] sm:$0xf]
    %v183 = vld [vmem:[%s159 + $0x88] sm:$0xf]
    %v184 = vld [vmem:[%s159 + $0x90] sm:$0xf]
    %v185 = vld [vmem:[%s159 + $0x94] sm:$0xf]
    %v186 = vld [vmem:[%s159 + $0x9c] sm:$0xf]
    %v187 = vld [vmem:[%s159 + $0xa0] sm:$0xf]
    %v188 = vld [vmem:[%s159 + $0xa8] sm:$0xf]
    %v189 = vld [vmem:[%s159 + $0xac] sm:$0xf]
    %v190 = vld [vmem:[%s159 + $0xb4] sm:$0xf]
    %v191 = vld [vmem:[%s159 + $0xb8] sm:$0xf]
    %v192 = vld [vmem:[%s159 + $0xd8] sm:$0xf]
    %v193 = vld [vmem:[%s159 + $0xdc] sm:$0xf]
    %v194 = vld [vmem:[%s159 + $0xe4] sm:$0xf]
    %v195 = vld [vmem:[%s159 + $0xe8] sm:$0xf]
    %v196 = vld [vmem:[%s159 + $0xf0] sm:$0xf]
    %v197 = vld [vmem:[%s159 + $0xf4] sm:$0xf]
    %v198 = vld [vmem:[%s159 + $0xfc] sm:$0xf]
    %v199 = vld [vmem:[%s159 + $0x100] sm:$0xf]
    %v200 = vld [vmem:[%s159 + $0x108] sm:$0xf]
    %v201 = vld [vmem:[%s159 + $0x10c] sm:$0xf]
    %v202 = vld [vmem:[%s159 + $0x114] sm:$0xf]
    %v203 = vld [vmem:[%s159 + $0x118] sm:$0xf]
    %v204 = vld [vmem:[%s159 + $0x120] sm:$0xf]
    %v205 = vld [vmem:[%s159 + $0x124] sm:$0xf]
    %v206 = vld [vmem:[%s159 + $0x12c] sm:$0xf]
    %v207 = vld [vmem:[%s159 + $0x130] sm:$0xf]
    %v208 = vld [vmem:[%s159 + $0x138] sm:$0xf]
    %v209 = vld [vmem:[%s159 + $0x13c] sm:$0xf]
    %v210 = vld [vmem:[%s159 + $0x144] sm:$0xf]
    %v211 = vld [vmem:[%s159 + $0x148] sm:$0xf]
    %v212 = vld [vmem:[%s159 + $0x150] sm:$0xf]
    %v213 = vld [vmem:[%s159 + $0x154] sm:$0xf]
    %v214 = vld [vmem:[%s159 + $0x15c] sm:$0xf]
    %v215 = vld [vmem:[%s159 + $0x160] sm:$0xf]
    %v216 = vld [vmem:[%s159 + $0x168] sm:$0xf]
    %v217 = vld [vmem:[%s159 + $0x16c] sm:$0xf]
    %v218 = vld [vmem:[%s159 + $0x174] sm:$0xf]
    %v219 = vld [vmem:[%s159 + $0x178] sm:$0xf]
    %v220 = vld [vmem:[%s159 + $0x180] sm:$0xf]
    %v221 = vld [vmem:[%s159 + $0x184] sm:$0xf]
    %v222 = vld [vmem:[%s159 + $0x18c] sm:$0xf]
    %v223 = vld [vmem:[%s159 + $0x190] sm:$0xf]
    %v224 = vld [vmem:[%s159 + $0x8] sm:$0x1]
    %v225 = vld [vmem:[%s159 + $0x14] sm:$0x1]
    %v226 = vld [vmem:[%s159 + $0x20] sm:$0x1]
    %v227 = vld [vmem:[%s159 + $0x2c] sm:$0x1]
    %v228 = vld [vmem:[%s159 + $0x38] sm:$0x1]
    %v229 = vld [vmem:[%s159 + $0x44] sm:$0x1]
    %v230 = vld [vmem:[%s159 + $0x50] sm:$0x1]
    %v231 = vld [vmem:[%s159 + $0x5c] sm:$0x1]
    %v232 = vld [vmem:[%s159 + $0x68] sm:$0x1]
    %v233 = vld [vmem:[%s159 + $0x74] sm:$0x1]
    %v234 = vld [vmem:[%s159 + $0x80] sm:$0x1]
    %v235 = vld [vmem:[%s159 + $0x8c] sm:$0x1]
    %v236 = vld [vmem:[%s159 + $0x98] sm:$0x1]
    %v237 = vld [vmem:[%s159 + $0xa4] sm:$0x1]
    %v238 = vld [vmem:[%s159 + $0xb0] sm:$0x1]
    %v239 = vld [vmem:[%s159 + $0xbc] sm:$0x1]
    %v240 = vld [vmem:[%s159 + $0xe0] sm:$0x1]
    %v241 = vld [vmem:[%s159 + $0xec] sm:$0x1]
    %v242 = vld [vmem:[%s159 + $0xf8] sm:$0x1]
    %v243 = vld [vmem:[%s159 + $0x104] sm:$0x1]
    %v244 = vld [vmem:[%s159 + $0x110] sm:$0x1]
    %v245 = vld [vmem:[%s159 + $0x11c] sm:$0x1]
    %v246 = vld [vmem:[%s159 + $0x128] sm:$0x1]
    %v247 = vld [vmem:[%s159 + $0x134] sm:$0x1]
    %v248 = vld [vmem:[%s159 + $0x140] sm:$0x1]
    %v249 = vld [vmem:[%s159 + $0x14c] sm:$0x1]
    %v250 = vld [vmem:[%s159 + $0x158] sm:$0x1]
    %v251 = vld [vmem:[%s159 + $0x164] sm:$0x1]
    %v252 = vld [vmem:[%s159 + $0x170] sm:$0x1]
    %v253 = vld [vmem:[%s159 + $0x17c] sm:$0x1]
    %v254 = vld [vmem:[%s159 + $0x188] sm:$0x1]
    %v255 = vld [vmem:[%s159 + $0x194] sm:$0x1]
    %v256 = vld [vmem:[%s159] sm:$0xe]
    %v257 = vld [vmem:[%s159 + $0xc] sm:$0xe]
    %v258 = vld [vmem:[%s159 + $0x18] sm:$0xe]
    %v259 = vld [vmem:[%s159 + $0x24] sm:$0xe]
    %v260 = vld [vmem:[%s159 + $0x30] sm:$0xe]
    %v261 = vld [vmem:[%s159 + $0x3c] sm:$0xe]
    %v262 = vld [vmem:[%s159 + $0x48] sm:$0xe]
    %v263 = vld [vmem:[%s159 + $0x54] sm:$0xe]
    %v264 = vld [vmem:[%s159 + $0x60] sm:$0xe]
    %v265 = vld [vmem:[%s159 + $0x6c] sm:$0xe]
    %v266 = vld [vmem:[%s159 + $0x78] sm:$0xe]
    %v267 = vld [vmem:[%s159 + $0x84] sm:$0xe]
    %v268 = vld [vmem:[%s159 + $0x90] sm:$0xe]
    %v269 = vld [vmem:[%s159 + $0x9c] sm:$0xe]
    %v270 = vld [vmem:[%s159 + $0xa8] sm:$0xe]
    %v271 = vld [vmem:[%s159 + $0xb4] sm:$0xe]
    %v272 = vld [vmem:[%s159 + $0xd8] sm:$0xe]
    %v273 = vld [vmem:[%s159 + $0xe4] sm:$0xe]
    %v274 = vld [vmem:[%s159 + $0xf0] sm:$0xe]
    %v275 = vld [vmem:[%s159 + $0xfc] sm:$0xe]
    %v276 = vld [vmem:[%s159 + $0x108] sm:$0xe]
    %v277 = vld [vmem:[%s159 + $0x114] sm:$0xe]
    %v278 = vld [vmem:[%s159 + $0x120] sm:$0xe]
    %v279 = vld [vmem:[%s159 + $0x12c] sm:$0xe]
    %v280 = vld [vmem:[%s159 + $0x138] sm:$0xe]
    %v281 = vld [vmem:[%s159 + $0x144] sm:$0xe]
    %v282 = vld [vmem:[%s159 + $0x150] sm:$0xe]
    %v283 = vld [vmem:[%s159 + $0x15c] sm:$0xe]
    %v284 = vld [vmem:[%s159 + $0x168] sm:$0xe]
    %v285 = vld [vmem:[%s159 + $0x174] sm:$0xe]
    %v286 = vld [vmem:[%s159 + $0x180] sm:$0xe]
    %v287 = vld [vmem:[%s159 + $0x18c] sm:$0xe]
    %s288 = scalar_lea.vmem %s0, 24
    %v289 = vld [vmem:[%s288] sm:$0xf]
    %v290 = vld [vmem:[%s288 + $0x4] sm:$0xf]
    %v291 = vld [vmem:[%s288 + $0xc] sm:$0xf]
    %v292 = vld [vmem:[%s288 + $0x10] sm:$0xf]
    %v293 = vld [vmem:[%s288 + $0x18] sm:$0xf]
    %v294 = vld [vmem:[%s288 + $0x1c] sm:$0xf]
    %v295 = vld [vmem:[%s288 + $0x24] sm:$0xf]
    %v296 = vld [vmem:[%s288 + $0x28] sm:$0xf]
    %v297 = vld [vmem:[%s288 + $0x30] sm:$0xf]
    %v298 = vld [vmem:[%s288 + $0x34] sm:$0xf]
    %v299 = vld [vmem:[%s288 + $0x3c] sm:$0xf]
    %v300 = vld [vmem:[%s288 + $0x40] sm:$0xf]
    %v301 = vld [vmem:[%s288 + $0x48] sm:$0xf]
    %v302 = vld [vmem:[%s288 + $0x4c] sm:$0xf]
    %v303 = vld [vmem:[%s288 + $0x54] sm:$0xf]
    %v304 = vld [vmem:[%s288 + $0x58] sm:$0xf]
    %v305 = vld [vmem:[%s288 + $0x60] sm:$0xf]
    %v306 = vld [vmem:[%s288 + $0x64] sm:$0xf]
    %v307 = vld [vmem:[%s288 + $0x6c] sm:$0xf]
    %v308 = vld [vmem:[%s288 + $0x70] sm:$0xf]
    %v309 = vld [vmem:[%s288 + $0x78] sm:$0xf]
    %v310 = vld [vmem:[%s288 + $0x7c] sm:$0xf]
    %v311 = vld [vmem:[%s288 + $0x84] sm:$0xf]
    %v312 = vld [vmem:[%s288 + $0x88] sm:$0xf]
    %v313 = vld [vmem:[%s288 + $0x90] sm:$0xf]
    %v314 = vld [vmem:[%s288 + $0x94] sm:$0xf]
    %v315 = vld [vmem:[%s288 + $0x9c] sm:$0xf]
    %v316 = vld [vmem:[%s288 + $0xa0] sm:$0xf]
    %v317 = vld [vmem:[%s288 + $0xa8] sm:$0xf]
    %v318 = vld [vmem:[%s288 + $0xac] sm:$0xf]
    %v319 = vld [vmem:[%s288 + $0xb4] sm:$0xf]
    %v320 = vld [vmem:[%s288 + $0xb8] sm:$0xf]
    %v321 = vld [vmem:[%s288 + $0xd8] sm:$0xf]
    %v322 = vld [vmem:[%s288 + $0xdc] sm:$0xf]
    %v323 = vld [vmem:[%s288 + $0xe4] sm:$0xf]
    %v324 = vld [vmem:[%s288 + $0xe8] sm:$0xf]
    %v325 = vld [vmem:[%s288 + $0xf0] sm:$0xf]
    %v326 = vld [vmem:[%s288 + $0xf4] sm:$0xf]
    %v327 = vld [vmem:[%s288 + $0xfc] sm:$0xf]
    %v328 = vld [vmem:[%s288 + $0x100] sm:$0xf]
    %v329 = vld [vmem:[%s288 + $0x108] sm:$0xf]
    %v330 = vld [vmem:[%s288 + $0x10c] sm:$0xf]
    %v331 = vld [vmem:[%s288 + $0x114] sm:$0xf]
    %v332 = vld [vmem:[%s288 + $0x118] sm:$0xf]
    %v333 = vld [vmem:[%s288 + $0x120] sm:$0xf]
    %v334 = vld [vmem:[%s288 + $0x124] sm:$0xf]
    %v335 = vld [vmem:[%s288 + $0x12c] sm:$0xf]
    %v336 = vld [vmem:[%s288 + $0x130] sm:$0xf]
    %v337 = vld [vmem:[%s288 + $0x138] sm:$0xf]
    %v338 = vld [vmem:[%s288 + $0x13c] sm:$0xf]
    %v339 = vld [vmem:[%s288 + $0x144] sm:$0xf]
    %v340 = vld [vmem:[%s288 + $0x148] sm:$0xf]
    %v341 = vld [vmem:[%s288 + $0x150] sm:$0xf]
    %v342 = vld [vmem:[%s288 + $0x154] sm:$0xf]
    %v343 = vld [vmem:[%s288 + $0x15c] sm:$0xf]
    %v344 = vld [vmem:[%s288 + $0x160] sm:$0xf]
    %v345 = vld [vmem:[%s288 + $0x168] sm:$0xf]
    %v346 = vld [vmem:[%s288 + $0x16c] sm:$0xf]
    %v347 = vld [vmem:[%s288 + $0x174] sm:$0xf]
    %v348 = vld [vmem:[%s288 + $0x178] sm:$0xf]
    %v349 = vld [vmem:[%s288 + $0x180] sm:$0xf]
    %v350 = vld [vmem:[%s288 + $0x184] sm:$0xf]
    %v351 = vld [vmem:[%s288 + $0x18c] sm:$0xf]
    %v352 = vld [vmem:[%s288 + $0x190] sm:$0xf]
    %v353 = vld [vmem:[%s288 + $0x8] sm:$0x1]
    %v354 = vld [vmem:[%s288 + $0x14] sm:$0x1]
    %v355 = vld [vmem:[%s288 + $0x20] sm:$0x1]
    %v356 = vld [vmem:[%s288 + $0x2c] sm:$0x1]
    %v357 = vld [vmem:[%s288 + $0x38] sm:$0x1]
    %v358 = vld [vmem:[%s288 + $0x44] sm:$0x1]
    %v359 = vld [vmem:[%s288 + $0x50] sm:$0x1]
    %v360 = vld [vmem:[%s288 + $0x5c] sm:$0x1]
    %v361 = vld [vmem:[%s288 + $0x68] sm:$0x1]
    %v362 = vld [vmem:[%s288 + $0x74] sm:$0x1]
    %v363 = vld [vmem:[%s288 + $0x80] sm:$0x1]
    %v364 = vld [vmem:[%s288 + $0x8c] sm:$0x1]
    %v365 = vld [vmem:[%s288 + $0x98] sm:$0x1]
    %v366 = vld [vmem:[%s288 + $0xa4] sm:$0x1]
    %v367 = vld [vmem:[%s288 + $0xb0] sm:$0x1]
    %v368 = vld [vmem:[%s288 + $0xbc] sm:$0x1]
    %v369 = vld [vmem:[%s288 + $0xe0] sm:$0x1]
    %v370 = vld [vmem:[%s288 + $0xec] sm:$0x1]
    %v371 = vld [vmem:[%s288 + $0xf8] sm:$0x1]
    %v372 = vld [vmem:[%s288 + $0x104] sm:$0x1]
    %v373 = vld [vmem:[%s288 + $0x110] sm:$0x1]
    %v374 = vld [vmem:[%s288 + $0x11c] sm:$0x1]
    %v375 = vld [vmem:[%s288 + $0x128] sm:$0x1]
    %v376 = vld [vmem:[%s288 + $0x134] sm:$0x1]
    %v377 = vld [vmem:[%s288 + $0x140] sm:$0x1]
    %v378 = vld [vmem:[%s288 + $0x14c] sm:$0x1]
    %v379 = vld [vmem:[%s288 + $0x158] sm:$0x1]
    %v380 = vld [vmem:[%s288 + $0x164] sm:$0x1]
    %v381 = vld [vmem:[%s288 + $0x170] sm:$0x1]
    %v382 = vld [vmem:[%s288 + $0x17c] sm:$0x1]
    %v383 = vld [vmem:[%s288 + $0x188] sm:$0x1]
    %v384 = vld [vmem:[%s288 + $0x194] sm:$0x1]
    %v385 = vld [vmem:[%s288] sm:$0xe]
    %v386 = vld [vmem:[%s288 + $0xc] sm:$0xe]
    %v387 = vld [vmem:[%s288 + $0x18] sm:$0xe]
    %v388 = vld [vmem:[%s288 + $0x24] sm:$0xe]
    %v389 = vld [vmem:[%s288 + $0x30] sm:$0xe]
    %v390 = vld [vmem:[%s288 + $0x3c] sm:$0xe]
    %v391 = vld [vmem:[%s288 + $0x48] sm:$0xe]
    %v392 = vld [vmem:[%s288 + $0x54] sm:$0xe]
    %v393 = vld [vmem:[%s288 + $0x60] sm:$0xe]
    %v394 = vld [vmem:[%s288 + $0x6c] sm:$0xe]
    %v395 = vld [vmem:[%s288 + $0x78] sm:$0xe]
    %v396 = vld [vmem:[%s288 + $0x84] sm:$0xe]
    %v397 = vld [vmem:[%s288 + $0x90] sm:$0xe]
    %v398 = vld [vmem:[%s288 + $0x9c] sm:$0xe]
    %v399 = vld [vmem:[%s288 + $0xa8] sm:$0xe]
    %v400 = vld [vmem:[%s288 + $0xb4] sm:$0xe]
    %v401 = vld [vmem:[%s288 + $0xd8] sm:$0xe]
    %v402 = vld [vmem:[%s288 + $0xe4] sm:$0xe]
    %v403 = vld [vmem:[%s288 + $0xf0] sm:$0xe]
    %v404 = vld [vmem:[%s288 + $0xfc] sm:$0xe]
    %v405 = vld [vmem:[%s288 + $0x108] sm:$0xe]
    %v406 = vld [vmem:[%s288 + $0x114] sm:$0xe]
    %v407 = vld [vmem:[%s288 + $0x120] sm:$0xe]
    %v408 = vld [vmem:[%s288 + $0x12c] sm:$0xe]
    %v409 = vld [vmem:[%s288 + $0x138] sm:$0xe]
    %v410 = vld [vmem:[%s288 + $0x144] sm:$0xe]
    %v411 = vld [vmem:[%s288 + $0x150] sm:$0xe]
    %v412 = vld [vmem:[%s288 + $0x15c] sm:$0xe]
    %v413 = vld [vmem:[%s288 + $0x168] sm:$0xe]
    %v414 = vld [vmem:[%s288 + $0x174] sm:$0xe]
    %v415 = vld [vmem:[%s288 + $0x180] sm:$0xe]
    %v416 = vld [vmem:[%s288 + $0x18c] sm:$0xe]
    %v481 = vunpack.c.l.b16 %v31
    %v482 = vunpack.c.l.b16 %v32
    %v483 = vunpack.c.l.b16 %v33
    %v484 = vunpack.c.l.b16 %v34
    %v485 = vunpack.c.l.b16 %v35
    %v486 = vunpack.c.l.b16 %v36
    %v487 = vunpack.c.l.b16 %v37
    %v488 = vunpack.c.l.b16 %v38
    %v489 = vunpack.c.l.b16 %v39
    %v490 = vunpack.c.l.b16 %v40
    %v491 = vunpack.c.l.b16 %v41
    %v492 = vunpack.c.l.b16 %v42
    %v493 = vunpack.c.l.b16 %v43
    %v494 = vunpack.c.l.b16 %v44
    %v495 = vunpack.c.l.b16 %v45
    %v496 = vunpack.c.l.b16 %v46
    %v497 = vunpack.c.l.b16 %v47
    %v498 = vunpack.c.l.b16 %v48
    %v499 = vunpack.c.l.b16 %v49
    %v500 = vunpack.c.l.b16 %v50
    %v501 = vunpack.c.l.b16 %v51
    %v502 = vunpack.c.l.b16 %v52
    %v503 = vunpack.c.l.b16 %v53
    %v504 = vunpack.c.l.b16 %v54
    %v505 = vunpack.c.l.b16 %v55
    %v506 = vunpack.c.l.b16 %v56
    %v507 = vunpack.c.l.b16 %v57
    %v508 = vunpack.c.l.b16 %v58
    %v509 = vunpack.c.l.b16 %v59
    %v510 = vunpack.c.l.b16 %v60
    %v511 = vunpack.c.l.b16 %v61
    %v512 = vunpack.c.l.b16 %v62
    %v513 = vunpack.c.l.b16 %v63
    %v514 = vunpack.c.l.b16 %v64
    %v515 = vunpack.c.l.b16 %v65
    %v516 = vunpack.c.l.b16 %v66
    %v517 = vunpack.c.l.b16 %v67
    %v518 = vunpack.c.l.b16 %v68
    %v519 = vunpack.c.l.b16 %v69
    %v520 = vunpack.c.l.b16 %v70
    %v521 = vunpack.c.l.b16 %v71
    %v522 = vunpack.c.l.b16 %v72
    %v523 = vunpack.c.l.b16 %v73
    %v524 = vunpack.c.l.b16 %v74
    %v525 = vunpack.c.l.b16 %v75
    %v526 = vunpack.c.l.b16 %v76
    %v527 = vunpack.c.l.b16 %v77
    %v528 = vunpack.c.l.b16 %v78
    %v529 = vunpack.c.l.b16 %v79
    %v530 = vunpack.c.l.b16 %v80
    %v531 = vunpack.c.l.b16 %v81
    %v532 = vunpack.c.l.b16 %v82
    %v533 = vunpack.c.l.b16 %v83
    %v534 = vunpack.c.l.b16 %v84
    %v535 = vunpack.c.l.b16 %v85
    %v536 = vunpack.c.l.b16 %v86
    %v537 = vunpack.c.l.b16 %v87
    %v538 = vunpack.c.l.b16 %v88
    %v539 = vunpack.c.l.b16 %v89
    %v540 = vunpack.c.l.b16 %v90
    %v541 = vunpack.c.l.b16 %v91
    %v542 = vunpack.c.l.b16 %v92
    %v543 = vunpack.c.l.b16 %v93
    %v544 = vunpack.c.l.b16 %v94
    %v545 = vpack.c.b16 %v482, %v481
    %v546 = vpack.c.b16 %v484, %v483
    %v547 = vpack.c.b16 %v486, %v485
    %v548 = vpack.c.b16 %v488, %v487
    %v549 = vpack.c.b16 %v490, %v489
    %v550 = vpack.c.b16 %v492, %v491
    %v551 = vpack.c.b16 %v494, %v493
    %v552 = vpack.c.b16 %v496, %v495
    %v553 = vpack.c.b16 %v498, %v497
    %v554 = vpack.c.b16 %v500, %v499
    %v555 = vpack.c.b16 %v502, %v501
    %v556 = vpack.c.b16 %v504, %v503
    %v557 = vpack.c.b16 %v506, %v505
    %v558 = vpack.c.b16 %v508, %v507
    %v559 = vpack.c.b16 %v510, %v509
    %v560 = vpack.c.b16 %v512, %v511
    %v561 = vpack.c.b16 %v514, %v513
    %v562 = vpack.c.b16 %v516, %v515
    %v563 = vpack.c.b16 %v518, %v517
    %v564 = vpack.c.b16 %v520, %v519
    %v565 = vpack.c.b16 %v522, %v521
    %v566 = vpack.c.b16 %v524, %v523
    %v567 = vpack.c.b16 %v526, %v525
    %v568 = vpack.c.b16 %v528, %v527
    %v569 = vpack.c.b16 %v530, %v529
    %v570 = vpack.c.b16 %v532, %v531
    %v571 = vpack.c.b16 %v534, %v533
    %v572 = vpack.c.b16 %v536, %v535
    %v573 = vpack.c.b16 %v538, %v537
    %v574 = vpack.c.b16 %v540, %v539
    %v575 = vpack.c.b16 %v542, %v541
    %v576 = vpack.c.b16 %v544, %v543
    %v609 = vunpack.c.l.b16 %v95
    %v610 = vunpack.c.l.b16 %v96
    %v611 = vunpack.c.l.b16 %v97
    %v612 = vunpack.c.l.b16 %v98
    %v613 = vunpack.c.l.b16 %v99
    %v614 = vunpack.c.l.b16 %v100
    %v615 = vunpack.c.l.b16 %v101
    %v616 = vunpack.c.l.b16 %v102
    %v617 = vunpack.c.l.b16 %v103
    %v618 = vunpack.c.l.b16 %v104
    %v619 = vunpack.c.l.b16 %v105
    %v620 = vunpack.c.l.b16 %v106
    %v621 = vunpack.c.l.b16 %v107
    %v622 = vunpack.c.l.b16 %v108
    %v623 = vunpack.c.l.b16 %v109
    %v624 = vunpack.c.l.b16 %v110
    %v625 = vunpack.c.l.b16 %v111
    %v626 = vunpack.c.l.b16 %v112
    %v627 = vunpack.c.l.b16 %v113
    %v628 = vunpack.c.l.b16 %v114
    %v629 = vunpack.c.l.b16 %v115
    %v630 = vunpack.c.l.b16 %v116
    %v631 = vunpack.c.l.b16 %v117
    %v632 = vunpack.c.l.b16 %v118
    %v633 = vunpack.c.l.b16 %v119
    %v634 = vunpack.c.l.b16 %v120
    %v635 = vunpack.c.l.b16 %v121
    %v636 = vunpack.c.l.b16 %v122
    %v637 = vunpack.c.l.b16 %v123
    %v638 = vunpack.c.l.b16 %v124
    %v639 = vunpack.c.l.b16 %v125
    %v640 = vunpack.c.l.b16 %v126
    %v641 = vpack.c.b16 %v609, %v609
    %v642 = vpack.c.b16 %v610, %v610
    %v643 = vpack.c.b16 %v611, %v611
    %v644 = vpack.c.b16 %v612, %v612
    %v645 = vpack.c.b16 %v613, %v613
    %v646 = vpack.c.b16 %v614, %v614
    %v647 = vpack.c.b16 %v615, %v615
    %v648 = vpack.c.b16 %v616, %v616
    %v649 = vpack.c.b16 %v617, %v617
    %v650 = vpack.c.b16 %v618, %v618
    %v651 = vpack.c.b16 %v619, %v619
    %v652 = vpack.c.b16 %v620, %v620
    %v653 = vpack.c.b16 %v621, %v621
    %v654 = vpack.c.b16 %v622, %v622
    %v655 = vpack.c.b16 %v623, %v623
    %v656 = vpack.c.b16 %v624, %v624
    %v657 = vpack.c.b16 %v625, %v625
    %v658 = vpack.c.b16 %v626, %v626
    %v659 = vpack.c.b16 %v627, %v627
    %v660 = vpack.c.b16 %v628, %v628
    %v661 = vpack.c.b16 %v629, %v629
    %v662 = vpack.c.b16 %v630, %v630
    %v663 = vpack.c.b16 %v631, %v631
    %v664 = vpack.c.b16 %v632, %v632
    %v665 = vpack.c.b16 %v633, %v633
    %v666 = vpack.c.b16 %v634, %v634
    %v667 = vpack.c.b16 %v635, %v635
    %v668 = vpack.c.b16 %v636, %v636
    %v669 = vpack.c.b16 %v637, %v637
    %v670 = vpack.c.b16 %v638, %v638
    %v671 = vpack.c.b16 %v639, %v639
    %v672 = vpack.c.b16 %v640, %v640
    %vm673 = vsmask.f32 7424
    %v675 = vshrl.u32 %v545, 16
    %v677 = vshll.u32 %v545, 16
    %v679 = vrot.slane %v677, 1
    %v680 = vor.u32 %v675, %v679
    %v682 = vshll.u32 %v641, 16
    %v684 = vrot.slane %v682, 1
    %v685 = vsel %vm673, %v680, %v684
    %v687 = vshrl.u32 %v546, 16
    %v689 = vshll.u32 %v546, 16
    %v691 = vrot.slane %v689, 1
    %v692 = vor.u32 %v687, %v691
    %v694 = vshll.u32 %v642, 16
    %v696 = vrot.slane %v694, 1
    %v697 = vsel %vm673, %v692, %v696
    %v699 = vshrl.u32 %v547, 16
    %v701 = vshll.u32 %v547, 16
    %v703 = vrot.slane %v701, 1
    %v704 = vor.u32 %v699, %v703
    %v706 = vshll.u32 %v643, 16
    %v708 = vrot.slane %v706, 1
    %v709 = vsel %vm673, %v704, %v708
    %v711 = vshrl.u32 %v548, 16
    %v713 = vshll.u32 %v548, 16
    %v715 = vrot.slane %v713, 1
    %v716 = vor.u32 %v711, %v715
    %v718 = vshll.u32 %v644, 16
    %v720 = vrot.slane %v718, 1
    %v721 = vsel %vm673, %v716, %v720
    %v723 = vshrl.u32 %v549, 16
    %v725 = vshll.u32 %v549, 16
    %v727 = vrot.slane %v725, 1
    %v728 = vor.u32 %v723, %v727
    %v730 = vshll.u32 %v645, 16
    %v732 = vrot.slane %v730, 1
    %v733 = vsel %vm673, %v728, %v732
    %v735 = vshrl.u32 %v550, 16
    %v737 = vshll.u32 %v550, 16
    %v739 = vrot.slane %v737, 1
    %v740 = vor.u32 %v735, %v739
    %v742 = vshll.u32 %v646, 16
    %v744 = vrot.slane %v742, 1
    %v745 = vsel %vm673, %v740, %v744
    %v747 = vshrl.u32 %v551, 16
    %v749 = vshll.u32 %v551, 16
    %v751 = vrot.slane %v749, 1
    %v752 = vor.u32 %v747, %v751
    %v754 = vshll.u32 %v647, 16
    %v756 = vrot.slane %v754, 1
    %v757 = vsel %vm673, %v752, %v756
    %v759 = vshrl.u32 %v552, 16
    %v761 = vshll.u32 %v552, 16
    %v763 = vrot.slane %v761, 1
    %v764 = vor.u32 %v759, %v763
    %v766 = vshll.u32 %v648, 16
    %v768 = vrot.slane %v766, 1
    %v769 = vsel %vm673, %v764, %v768
    %v771 = vshrl.u32 %v553, 16
    %v773 = vshll.u32 %v553, 16
    %v775 = vrot.slane %v773, 1
    %v776 = vor.u32 %v771, %v775
    %v778 = vshll.u32 %v649, 16
    %v780 = vrot.slane %v778, 1
    %v781 = vsel %vm673, %v776, %v780
    %v783 = vshrl.u32 %v554, 16
    %v785 = vshll.u32 %v554, 16
    %v787 = vrot.slane %v785, 1
    %v788 = vor.u32 %v783, %v787
    %v790 = vshll.u32 %v650, 16
    %v792 = vrot.slane %v790, 1
    %v793 = vsel %vm673, %v788, %v792
    %v795 = vshrl.u32 %v555, 16
    %v797 = vshll.u32 %v555, 16
    %v799 = vrot.slane %v797, 1
    %v800 = vor.u32 %v795, %v799
    %v802 = vshll.u32 %v651, 16
    %v804 = vrot.slane %v802, 1
    %v805 = vsel %vm673, %v800, %v804
    %v807 = vshrl.u32 %v556, 16
    %v809 = vshll.u32 %v556, 16
    %v811 = vrot.slane %v809, 1
    %v812 = vor.u32 %v807, %v811
    %v814 = vshll.u32 %v652, 16
    %v816 = vrot.slane %v814, 1
    %v817 = vsel %vm673, %v812, %v816
    %v819 = vshrl.u32 %v557, 16
    %v821 = vshll.u32 %v557, 16
    %v823 = vrot.slane %v821, 1
    %v824 = vor.u32 %v819, %v823
    %v826 = vshll.u32 %v653, 16
    %v828 = vrot.slane %v826, 1
    %v829 = vsel %vm673, %v824, %v828
    %v831 = vshrl.u32 %v558, 16
    %v833 = vshll.u32 %v558, 16
    %v835 = vrot.slane %v833, 1
    %v836 = vor.u32 %v831, %v835
    %v838 = vshll.u32 %v654, 16
    %v840 = vrot.slane %v838, 1
    %v841 = vsel %vm673, %v836, %v840
    %v843 = vshrl.u32 %v559, 16
    %v845 = vshll.u32 %v559, 16
    %v847 = vrot.slane %v845, 1
    %v848 = vor.u32 %v843, %v847
    %v850 = vshll.u32 %v655, 16
    %v852 = vrot.slane %v850, 1
    %v853 = vsel %vm673, %v848, %v852
    %v855 = vshrl.u32 %v560, 16
    %v857 = vshll.u32 %v560, 16
    %v859 = vrot.slane %v857, 1
    %v860 = vor.u32 %v855, %v859
    %v862 = vshll.u32 %v656, 16
    %v864 = vrot.slane %v862, 1
    %v865 = vsel %vm673, %v860, %v864
    %v867 = vshrl.u32 %v561, 16
    %v869 = vshll.u32 %v561, 16
    %v871 = vrot.slane %v869, 1
    %v872 = vor.u32 %v867, %v871
    %v874 = vshll.u32 %v657, 16
    %v876 = vrot.slane %v874, 1
    %v877 = vsel %vm673, %v872, %v876
    %v879 = vshrl.u32 %v562, 16
    %v881 = vshll.u32 %v562, 16
    %v883 = vrot.slane %v881, 1
    %v884 = vor.u32 %v879, %v883
    %v886 = vshll.u32 %v658, 16
    %v888 = vrot.slane %v886, 1
    %v889 = vsel %vm673, %v884, %v888
    %v891 = vshrl.u32 %v563, 16
    %v893 = vshll.u32 %v563, 16
    %v895 = vrot.slane %v893, 1
    %v896 = vor.u32 %v891, %v895
    %v898 = vshll.u32 %v659, 16
    %v900 = vrot.slane %v898, 1
    %v901 = vsel %vm673, %v896, %v900
    %v903 = vshrl.u32 %v564, 16
    %v905 = vshll.u32 %v564, 16
    %v907 = vrot.slane %v905, 1
    %v908 = vor.u32 %v903, %v907
    %v910 = vshll.u32 %v660, 16
    %v912 = vrot.slane %v910, 1
    %v913 = vsel %vm673, %v908, %v912
    %v915 = vshrl.u32 %v565, 16
    %v917 = vshll.u32 %v565, 16
    %v919 = vrot.slane %v917, 1
    %v920 = vor.u32 %v915, %v919
    %v922 = vshll.u32 %v661, 16
    %v924 = vrot.slane %v922, 1
    %v925 = vsel %vm673, %v920, %v924
    %v927 = vshrl.u32 %v566, 16
    %v929 = vshll.u32 %v566, 16
    %v931 = vrot.slane %v929, 1
    %v932 = vor.u32 %v927, %v931
    %v934 = vshll.u32 %v662, 16
    %v936 = vrot.slane %v934, 1
    %v937 = vsel %vm673, %v932, %v936
    %v939 = vshrl.u32 %v567, 16
    %v941 = vshll.u32 %v567, 16
    %v943 = vrot.slane %v941, 1
    %v944 = vor.u32 %v939, %v943
    %v946 = vshll.u32 %v663, 16
    %v948 = vrot.slane %v946, 1
    %v949 = vsel %vm673, %v944, %v948
    %v951 = vshrl.u32 %v568, 16
    %v953 = vshll.u32 %v568, 16
    %v955 = vrot.slane %v953, 1
    %v956 = vor.u32 %v951, %v955
    %v958 = vshll.u32 %v664, 16
    %v960 = vrot.slane %v958, 1
    %v961 = vsel %vm673, %v956, %v960
    %v963 = vshrl.u32 %v569, 16
    %v965 = vshll.u32 %v569, 16
    %v967 = vrot.slane %v965, 1
    %v968 = vor.u32 %v963, %v967
    %v970 = vshll.u32 %v665, 16
    %v972 = vrot.slane %v970, 1
    %v973 = vsel %vm673, %v968, %v972
    %v975 = vshrl.u32 %v570, 16
    %v977 = vshll.u32 %v570, 16
    %v979 = vrot.slane %v977, 1
    %v980 = vor.u32 %v975, %v979
    %v982 = vshll.u32 %v666, 16
    %v984 = vrot.slane %v982, 1
    %v985 = vsel %vm673, %v980, %v984
    %v987 = vshrl.u32 %v571, 16
    %v989 = vshll.u32 %v571, 16
    %v991 = vrot.slane %v989, 1
    %v992 = vor.u32 %v987, %v991
    %v994 = vshll.u32 %v667, 16
    %v996 = vrot.slane %v994, 1
    %v997 = vsel %vm673, %v992, %v996
    %v999 = vshrl.u32 %v572, 16
    %v1001 = vshll.u32 %v572, 16
    %v1003 = vrot.slane %v1001, 1
    %v1004 = vor.u32 %v999, %v1003
    %v1006 = vshll.u32 %v668, 16
    %v1008 = vrot.slane %v1006, 1
    %v1009 = vsel %vm673, %v1004, %v1008
    %v1011 = vshrl.u32 %v573, 16
    %v1013 = vshll.u32 %v573, 16
    %v1015 = vrot.slane %v1013, 1
    %v1016 = vor.u32 %v1011, %v1015
    %v1018 = vshll.u32 %v669, 16
    %v1020 = vrot.slane %v1018, 1
    %v1021 = vsel %vm673, %v1016, %v1020
    %v1023 = vshrl.u32 %v574, 16
    %v1025 = vshll.u32 %v574, 16
    %v1027 = vrot.slane %v1025, 1
    %v1028 = vor.u32 %v1023, %v1027
    %v1030 = vshll.u32 %v670, 16
    %v1032 = vrot.slane %v1030, 1
    %v1033 = vsel %vm673, %v1028, %v1032
    %v1035 = vshrl.u32 %v575, 16
    %v1037 = vshll.u32 %v575, 16
    %v1039 = vrot.slane %v1037, 1
    %v1040 = vor.u32 %v1035, %v1039
    %v1042 = vshll.u32 %v671, 16
    %v1044 = vrot.slane %v1042, 1
    %v1045 = vsel %vm673, %v1040, %v1044
    %v1047 = vshrl.u32 %v576, 16
    %v1049 = vshll.u32 %v576, 16
    %v1051 = vrot.slane %v1049, 1
    %v1052 = vor.u32 %v1047, %v1051
    %v1054 = vshll.u32 %v672, 16
    %v1056 = vrot.slane %v1054, 1
    %v1057 = vsel %vm673, %v1052, %v1056
    %1058 = vrot.lane.b32.xlu0 %v685, 4
    %v1059 = vpop.permute.xlu0 %1058
    %1060 = vrot.lane.b32.xlu0 %v697, 4
    %v1061 = vpop.permute.xlu0 %1060
    %1062 = vrot.lane.b32.xlu0 %v709, 4
    %v1063 = vpop.permute.xlu0 %1062
    %1064 = vrot.lane.b32.xlu0 %v721, 4
    %v1065 = vpop.permute.xlu0 %1064
    %1066 = vrot.lane.b32.xlu0 %v733, 4
    %v1067 = vpop.permute.xlu0 %1066
    %1068 = vrot.lane.b32.xlu0 %v745, 4
    %v1069 = vpop.permute.xlu0 %1068
    %1070 = vrot.lane.b32.xlu0 %v757, 4
    %v1071 = vpop.permute.xlu0 %1070
    %1072 = vrot.lane.b32.xlu0 %v769, 4
    %v1073 = vpop.permute.xlu0 %1072
    %1074 = vrot.lane.b32.xlu0 %v781, 4
    %v1075 = vpop.permute.xlu0 %1074
    %1076 = vrot.lane.b32.xlu0 %v793, 4
    %v1077 = vpop.permute.xlu0 %1076
    %1078 = vrot.lane.b32.xlu0 %v805, 4
    %v1079 = vpop.permute.xlu0 %1078
    %1080 = vrot.lane.b32.xlu0 %v817, 4
    %v1081 = vpop.permute.xlu0 %1080
    %1082 = vrot.lane.b32.xlu0 %v829, 4
    %v1083 = vpop.permute.xlu0 %1082
    %1084 = vrot.lane.b32.xlu0 %v841, 4
    %v1085 = vpop.permute.xlu0 %1084
    %1086 = vrot.lane.b32.xlu0 %v853, 4
    %v1087 = vpop.permute.xlu0 %1086
    %1088 = vrot.lane.b32.xlu0 %v865, 4
    %v1089 = vpop.permute.xlu0 %1088
    %1090 = vrot.lane.b32.xlu0 %v877, 4
    %v1091 = vpop.permute.xlu0 %1090
    %1092 = vrot.lane.b32.xlu0 %v889, 4
    %v1093 = vpop.permute.xlu0 %1092
    %1094 = vrot.lane.b32.xlu0 %v901, 4
    %v1095 = vpop.permute.xlu0 %1094
    %1096 = vrot.lane.b32.xlu0 %v913, 4
    %v1097 = vpop.permute.xlu0 %1096
    %1098 = vrot.lane.b32.xlu0 %v925, 4
    %v1099 = vpop.permute.xlu0 %1098
    %1100 = vrot.lane.b32.xlu0 %v937, 4
    %v1101 = vpop.permute.xlu0 %1100
    %1102 = vrot.lane.b32.xlu0 %v949, 4
    %v1103 = vpop.permute.xlu0 %1102
    %1104 = vrot.lane.b32.xlu0 %v961, 4
    %v1105 = vpop.permute.xlu0 %1104
    %1106 = vrot.lane.b32.xlu0 %v973, 4
    %v1107 = vpop.permute.xlu0 %1106
    %1108 = vrot.lane.b32.xlu0 %v985, 4
    %v1109 = vpop.permute.xlu0 %1108
    %1110 = vrot.lane.b32.xlu0 %v997, 4
    %v1111 = vpop.permute.xlu0 %1110
    %1112 = vrot.lane.b32.xlu0 %v1009, 4
    %v1113 = vpop.permute.xlu0 %1112
    %1114 = vrot.lane.b32.xlu0 %v1021, 4
    %v1115 = vpop.permute.xlu0 %1114
    %1116 = vrot.lane.b32.xlu0 %v1033, 4
    %v1117 = vpop.permute.xlu0 %1116
    %1118 = vrot.lane.b32.xlu0 %v1045, 4
    %v1119 = vpop.permute.xlu0 %1118
    %1120 = vrot.lane.b32.xlu0 %v1057, 4
    %v1121 = vpop.permute.xlu0 %1120
    %v1154 = vunpack.c.l.b16 %v127
    %v1155 = vunpack.c.l.b16 %v128
    %v1156 = vunpack.c.l.b16 %v129
    %v1157 = vunpack.c.l.b16 %v130
    %v1158 = vunpack.c.l.b16 %v131
    %v1159 = vunpack.c.l.b16 %v132
    %v1160 = vunpack.c.l.b16 %v133
    %v1161 = vunpack.c.l.b16 %v134
    %v1162 = vunpack.c.l.b16 %v135
    %v1163 = vunpack.c.l.b16 %v136
    %v1164 = vunpack.c.l.b16 %v137
    %v1165 = vunpack.c.l.b16 %v138
    %v1166 = vunpack.c.l.b16 %v139
    %v1167 = vunpack.c.l.b16 %v140
    %v1168 = vunpack.c.l.b16 %v141
    %v1169 = vunpack.c.l.b16 %v142
    %v1170 = vunpack.c.l.b16 %v143
    %v1171 = vunpack.c.l.b16 %v144
    %v1172 = vunpack.c.l.b16 %v145
    %v1173 = vunpack.c.l.b16 %v146
    %v1174 = vunpack.c.l.b16 %v147
    %v1175 = vunpack.c.l.b16 %v148
    %v1176 = vunpack.c.l.b16 %v149
    %v1177 = vunpack.c.l.b16 %v150
    %v1178 = vunpack.c.l.b16 %v151
    %v1179 = vunpack.c.l.b16 %v152
    %v1180 = vunpack.c.l.b16 %v153
    %v1181 = vunpack.c.l.b16 %v154
    %v1182 = vunpack.c.l.b16 %v155
    %v1183 = vunpack.c.l.b16 %v156
    %v1184 = vunpack.c.l.b16 %v157
    %v1185 = vunpack.c.l.b16 %v158
    %v1186 = vpack.c.b16 %v482, %v1154
    %v1187 = vpack.c.b16 %v484, %v1155
    %v1188 = vpack.c.b16 %v486, %v1156
    %v1189 = vpack.c.b16 %v488, %v1157
    %v1190 = vpack.c.b16 %v490, %v1158
    %v1191 = vpack.c.b16 %v492, %v1159
    %v1192 = vpack.c.b16 %v494, %v1160
    %v1193 = vpack.c.b16 %v496, %v1161
    %v1194 = vpack.c.b16 %v498, %v1162
    %v1195 = vpack.c.b16 %v500, %v1163
    %v1196 = vpack.c.b16 %v502, %v1164
    %v1197 = vpack.c.b16 %v504, %v1165
    %v1198 = vpack.c.b16 %v506, %v1166
    %v1199 = vpack.c.b16 %v508, %v1167
    %v1200 = vpack.c.b16 %v510, %v1168
    %v1201 = vpack.c.b16 %v512, %v1169
    %v1202 = vpack.c.b16 %v514, %v1170
    %v1203 = vpack.c.b16 %v516, %v1171
    %v1204 = vpack.c.b16 %v518, %v1172
    %v1205 = vpack.c.b16 %v520, %v1173
    %v1206 = vpack.c.b16 %v522, %v1174
    %v1207 = vpack.c.b16 %v524, %v1175
    %v1208 = vpack.c.b16 %v526, %v1176
    %v1209 = vpack.c.b16 %v528, %v1177
    %v1210 = vpack.c.b16 %v530, %v1178
    %v1211 = vpack.c.b16 %v532, %v1179
    %v1212 = vpack.c.b16 %v534, %v1180
    %v1213 = vpack.c.b16 %v536, %v1181
    %v1214 = vpack.c.b16 %v538, %v1182
    %v1215 = vpack.c.b16 %v540, %v1183
    %v1216 = vpack.c.b16 %v542, %v1184
    %v1217 = vpack.c.b16 %v544, %v1185
    %vm1218 = vcmask 1046528
    %v1219 = vrot.slane %v1186, 1
    %v1220 = vrot.slane %v641, 1
    %v1221 = vsel %vm1218, %v1219, %v1220
    %v1222 = vrot.slane %v1187, 1
    %v1223 = vrot.slane %v642, 1
    %v1224 = vsel %vm1218, %v1222, %v1223
    %v1225 = vrot.slane %v1188, 1
    %v1226 = vrot.slane %v643, 1
    %v1227 = vsel %vm1218, %v1225, %v1226
    %v1228 = vrot.slane %v1189, 1
    %v1229 = vrot.slane %v644, 1
    %v1230 = vsel %vm1218, %v1228, %v1229
    %v1231 = vrot.slane %v1190, 1
    %v1232 = vrot.slane %v645, 1
    %v1233 = vsel %vm1218, %v1231, %v1232
    %v1234 = vrot.slane %v1191, 1
    %v1235 = vrot.slane %v646, 1
    %v1236 = vsel %vm1218, %v1234, %v1235
    %v1237 = vrot.slane %v1192, 1
    %v1238 = vrot.slane %v647, 1
    %v1239 = vsel %vm1218, %v1237, %v1238
    %v1240 = vrot.slane %v1193, 1
    %v1241 = vrot.slane %v648, 1
    %v1242 = vsel %vm1218, %v1240, %v1241
    %v1243 = vrot.slane %v1194, 1
    %v1244 = vrot.slane %v649, 1
    %v1245 = vsel %vm1218, %v1243, %v1244
    %v1246 = vrot.slane %v1195, 1
    %v1247 = vrot.slane %v650, 1
    %v1248 = vsel %vm1218, %v1246, %v1247
    %v1249 = vrot.slane %v1196, 1
    %v1250 = vrot.slane %v651, 1
    %v1251 = vsel %vm1218, %v1249, %v1250
    %v1252 = vrot.slane %v1197, 1
    %v1253 = vrot.slane %v652, 1
    %v1254 = vsel %vm1218, %v1252, %v1253
    %v1255 = vrot.slane %v1198, 1
    %v1256 = vrot.slane %v653, 1
    %v1257 = vsel %vm1218, %v1255, %v1256
    %v1258 = vrot.slane %v1199, 1
    %v1259 = vrot.slane %v654, 1
    %v1260 = vsel %vm1218, %v1258, %v1259
    %v1261 = vrot.slane %v1200, 1
    %v1262 = vrot.slane %v655, 1
    %v1263 = vsel %vm1218, %v1261, %v1262
    %v1264 = vrot.slane %v1201, 1
    %v1265 = vrot.slane %v656, 1
    %v1266 = vsel %vm1218, %v1264, %v1265
    %v1267 = vrot.slane %v1202, 1
    %v1268 = vrot.slane %v657, 1
    %v1269 = vsel %vm1218, %v1267, %v1268
    %v1270 = vrot.slane %v1203, 1
    %v1271 = vrot.slane %v658, 1
    %v1272 = vsel %vm1218, %v1270, %v1271
    %v1273 = vrot.slane %v1204, 1
    %v1274 = vrot.slane %v659, 1
    %v1275 = vsel %vm1218, %v1273, %v1274
    %v1276 = vrot.slane %v1205, 1
    %v1277 = vrot.slane %v660, 1
    %v1278 = vsel %vm1218, %v1276, %v1277
    %v1279 = vrot.slane %v1206, 1
    %v1280 = vrot.slane %v661, 1
    %v1281 = vsel %vm1218, %v1279, %v1280
    %v1282 = vrot.slane %v1207, 1
    %v1283 = vrot.slane %v662, 1
    %v1284 = vsel %vm1218, %v1282, %v1283
    %v1285 = vrot.slane %v1208, 1
    %v1286 = vrot.slane %v663, 1
    %v1287 = vsel %vm1218, %v1285, %v1286
    %v1288 = vrot.slane %v1209, 1
    %v1289 = vrot.slane %v664, 1
    %v1290 = vsel %vm1218, %v1288, %v1289
    %v1291 = vrot.slane %v1210, 1
    %v1292 = vrot.slane %v665, 1
    %v1293 = vsel %vm1218, %v1291, %v1292
    %v1294 = vrot.slane %v1211, 1
    %v1295 = vrot.slane %v666, 1
    %v1296 = vsel %vm1218, %v1294, %v1295
    %v1297 = vrot.slane %v1212, 1
    %v1298 = vrot.slane %v667, 1
    %v1299 = vsel %vm1218, %v1297, %v1298
    %v1300 = vrot.slane %v1213, 1
    %v1301 = vrot.slane %v668, 1
    %v1302 = vsel %vm1218, %v1300, %v1301
    %v1303 = vrot.slane %v1214, 1
    %v1304 = vrot.slane %v669, 1
    %v1305 = vsel %vm1218, %v1303, %v1304
    %v1306 = vrot.slane %v1215, 1
    %v1307 = vrot.slane %v670, 1
    %v1308 = vsel %vm1218, %v1306, %v1307
    %v1309 = vrot.slane %v1216, 1
    %v1310 = vrot.slane %v671, 1
    %v1311 = vsel %vm1218, %v1309, %v1310
    %v1312 = vrot.slane %v1217, 1
    %v1313 = vrot.slane %v672, 1
    %v1314 = vsel %vm1218, %v1312, %v1313
    %1315 = vrot.lane.b32.xlu0 %v1221, 8
    %v1316 = vpop.permute.xlu0 %1315
    %1317 = vrot.lane.b32.xlu0 %v1224, 8
    %v1318 = vpop.permute.xlu0 %1317
    %1319 = vrot.lane.b32.xlu0 %v1227, 8
    %v1320 = vpop.permute.xlu0 %1319
    %1321 = vrot.lane.b32.xlu0 %v1230, 8
    %v1322 = vpop.permute.xlu0 %1321
    %1323 = vrot.lane.b32.xlu0 %v1233, 8
    %v1324 = vpop.permute.xlu0 %1323
    %1325 = vrot.lane.b32.xlu0 %v1236, 8
    %v1326 = vpop.permute.xlu0 %1325
    %1327 = vrot.lane.b32.xlu0 %v1239, 8
    %v1328 = vpop.permute.xlu0 %1327
    %1329 = vrot.lane.b32.xlu0 %v1242, 8
    %v1330 = vpop.permute.xlu0 %1329
    %1331 = vrot.lane.b32.xlu0 %v1245, 8
    %v1332 = vpop.permute.xlu0 %1331
    %1333 = vrot.lane.b32.xlu0 %v1248, 8
    %v1334 = vpop.permute.xlu0 %1333
    %1335 = vrot.lane.b32.xlu0 %v1251, 8
    %v1336 = vpop.permute.xlu0 %1335
    %1337 = vrot.lane.b32.xlu0 %v1254, 8
    %v1338 = vpop.permute.xlu0 %1337
    %1339 = vrot.lane.b32.xlu0 %v1257, 8
    %v1340 = vpop.permute.xlu0 %1339
    %1341 = vrot.lane.b32.xlu0 %v1260, 8
    %v1342 = vpop.permute.xlu0 %1341
    %1343 = vrot.lane.b32.xlu0 %v1263, 8
    %v1344 = vpop.permute.xlu0 %1343
    %1345 = vrot.lane.b32.xlu0 %v1266, 8
    %v1346 = vpop.permute.xlu0 %1345
    %1347 = vrot.lane.b32.xlu0 %v1269, 8
    %v1348 = vpop.permute.xlu0 %1347
    %1349 = vrot.lane.b32.xlu0 %v1272, 8
    %v1350 = vpop.permute.xlu0 %1349
    %1351 = vrot.lane.b32.xlu0 %v1275, 8
    %v1352 = vpop.permute.xlu0 %1351
    %1353 = vrot.lane.b32.xlu0 %v1278, 8
    %v1354 = vpop.permute.xlu0 %1353
    %1355 = vrot.lane.b32.xlu0 %v1281, 8
    %v1356 = vpop.permute.xlu0 %1355
    %1357 = vrot.lane.b32.xlu0 %v1284, 8
    %v1358 = vpop.permute.xlu0 %1357
    %1359 = vrot.lane.b32.xlu0 %v1287, 8
    %v1360 = vpop.permute.xlu0 %1359
    %1361 = vrot.lane.b32.xlu0 %v1290, 8
    %v1362 = vpop.permute.xlu0 %1361
    %1363 = vrot.lane.b32.xlu0 %v1293, 8
    %v1364 = vpop.permute.xlu0 %1363
    %1365 = vrot.lane.b32.xlu0 %v1296, 8
    %v1366 = vpop.permute.xlu0 %1365
    %1367 = vrot.lane.b32.xlu0 %v1299, 8
    %v1368 = vpop.permute.xlu0 %1367
    %1369 = vrot.lane.b32.xlu0 %v1302, 8
    %v1370 = vpop.permute.xlu0 %1369
    %1371 = vrot.lane.b32.xlu0 %v1305, 8
    %v1372 = vpop.permute.xlu0 %1371
    %1373 = vrot.lane.b32.xlu0 %v1308, 8
    %v1374 = vpop.permute.xlu0 %1373
    %1375 = vrot.lane.b32.xlu0 %v1311, 8
    %v1376 = vpop.permute.xlu0 %1375
    %1377 = vrot.lane.b32.xlu0 %v1314, 8
    %v1378 = vpop.permute.xlu0 %1377
    %v1443 = vunpack.c.l.b16 %v160
    %v1444 = vunpack.c.l.b16 %v161
    %v1445 = vunpack.c.l.b16 %v162
    %v1446 = vunpack.c.l.b16 %v163
    %v1447 = vunpack.c.l.b16 %v164
    %v1448 = vunpack.c.l.b16 %v165
    %v1449 = vunpack.c.l.b16 %v166
    %v1450 = vunpack.c.l.b16 %v167
    %v1451 = vunpack.c.l.b16 %v168
    %v1452 = vunpack.c.l.b16 %v169
    %v1453 = vunpack.c.l.b16 %v170
    %v1454 = vunpack.c.l.b16 %v171
    %v1455 = vunpack.c.l.b16 %v172
    %v1456 = vunpack.c.l.b16 %v173
    %v1457 = vunpack.c.l.b16 %v174
    %v1458 = vunpack.c.l.b16 %v175
    %v1459 = vunpack.c.l.b16 %v176
    %v1460 = vunpack.c.l.b16 %v177
    %v1461 = vunpack.c.l.b16 %v178
    %v1462 = vunpack.c.l.b16 %v179
    %v1463 = vunpack.c.l.b16 %v180
    %v1464 = vunpack.c.l.b16 %v181
    %v1465 = vunpack.c.l.b16 %v182
    %v1466 = vunpack.c.l.b16 %v183
    %v1467 = vunpack.c.l.b16 %v184
    %v1468 = vunpack.c.l.b16 %v185
    %v1469 = vunpack.c.l.b16 %v186
    %v1470 = vunpack.c.l.b16 %v187
    %v1471 = vunpack.c.l.b16 %v188
    %v1472 = vunpack.c.l.b16 %v189
    %v1473 = vunpack.c.l.b16 %v190
    %v1474 = vunpack.c.l.b16 %v191
    %v1475 = vunpack.c.l.b16 %v192
    %v1476 = vunpack.c.l.b16 %v193
    %v1477 = vunpack.c.l.b16 %v194
    %v1478 = vunpack.c.l.b16 %v195
    %v1479 = vunpack.c.l.b16 %v196
    %v1480 = vunpack.c.l.b16 %v197
    %v1481 = vunpack.c.l.b16 %v198
    %v1482 = vunpack.c.l.b16 %v199
    %v1483 = vunpack.c.l.b16 %v200
    %v1484 = vunpack.c.l.b16 %v201
    %v1485 = vunpack.c.l.b16 %v202
    %v1486 = vunpack.c.l.b16 %v203
    %v1487 = vunpack.c.l.b16 %v204
    %v1488 = vunpack.c.l.b16 %v205
    %v1489 = vunpack.c.l.b16 %v206
    %v1490 = vunpack.c.l.b16 %v207
    %v1491 = vunpack.c.l.b16 %v208
    %v1492 = vunpack.c.l.b16 %v209
    %v1493 = vunpack.c.l.b16 %v210
    %v1494 = vunpack.c.l.b16 %v211
    %v1495 = vunpack.c.l.b16 %v212
    %v1496 = vunpack.c.l.b16 %v213
    %v1497 = vunpack.c.l.b16 %v214
    %v1498 = vunpack.c.l.b16 %v215
    %v1499 = vunpack.c.l.b16 %v216
    %v1500 = vunpack.c.l.b16 %v217
    %v1501 = vunpack.c.l.b16 %v218
    %v1502 = vunpack.c.l.b16 %v219
    %v1503 = vunpack.c.l.b16 %v220
    %v1504 = vunpack.c.l.b16 %v221
    %v1505 = vunpack.c.l.b16 %v222
    %v1506 = vunpack.c.l.b16 %v223
    %v1507 = vpack.c.b16 %v1444, %v1443
    %v1508 = vpack.c.b16 %v1446, %v1445
    %v1509 = vpack.c.b16 %v1448, %v1447
    %v1510 = vpack.c.b16 %v1450, %v1449
    %v1511 = vpack.c.b16 %v1452, %v1451
    %v1512 = vpack.c.b16 %v1454, %v1453
    %v1513 = vpack.c.b16 %v1456, %v1455
    %v1514 = vpack.c.b16 %v1458, %v1457
    %v1515 = vpack.c.b16 %v1460, %v1459
    %v1516 = vpack.c.b16 %v1462, %v1461
    %v1517 = vpack.c.b16 %v1464, %v1463
    %v1518 = vpack.c.b16 %v1466, %v1465
    %v1519 = vpack.c.b16 %v1468, %v1467
    %v1520 = vpack.c.b16 %v1470, %v1469
    %v1521 = vpack.c.b16 %v1472, %v1471
    %v1522 = vpack.c.b16 %v1474, %v1473
    %v1523 = vpack.c.b16 %v1476, %v1475
    %v1524 = vpack.c.b16 %v1478, %v1477
    %v1525 = vpack.c.b16 %v1480, %v1479
    %v1526 = vpack.c.b16 %v1482, %v1481
    %v1527 = vpack.c.b16 %v1484, %v1483
    %v1528 = vpack.c.b16 %v1486, %v1485
    %v1529 = vpack.c.b16 %v1488, %v1487
    %v1530 = vpack.c.b16 %v1490, %v1489
    %v1531 = vpack.c.b16 %v1492, %v1491
    %v1532 = vpack.c.b16 %v1494, %v1493
    %v1533 = vpack.c.b16 %v1496, %v1495
    %v1534 = vpack.c.b16 %v1498, %v1497
    %v1535 = vpack.c.b16 %v1500, %v1499
    %v1536 = vpack.c.b16 %v1502, %v1501
    %v1537 = vpack.c.b16 %v1504, %v1503
    %v1538 = vpack.c.b16 %v1506, %v1505
    %1539 = vrot.lane.b32.xlu0 %v1507, 12
    %v1540 = vpop.permute.xlu0 %1539
    %1541 = vrot.lane.b32.xlu0 %v1508, 12
    %v1542 = vpop.permute.xlu0 %1541
    %1543 = vrot.lane.b32.xlu0 %v1509, 12
    %v1544 = vpop.permute.xlu0 %1543
    %1545 = vrot.lane.b32.xlu0 %v1510, 12
    %v1546 = vpop.permute.xlu0 %1545
    %1547 = vrot.lane.b32.xlu0 %v1511, 12
    %v1548 = vpop.permute.xlu0 %1547
    %1549 = vrot.lane.b32.xlu0 %v1512, 12
    %v1550 = vpop.permute.xlu0 %1549
    %1551 = vrot.lane.b32.xlu0 %v1513, 12
    %v1552 = vpop.permute.xlu0 %1551
    %1553 = vrot.lane.b32.xlu0 %v1514, 12
    %v1554 = vpop.permute.xlu0 %1553
    %1555 = vrot.lane.b32.xlu0 %v1515, 12
    %v1556 = vpop.permute.xlu0 %1555
    %1557 = vrot.lane.b32.xlu0 %v1516, 12
    %v1558 = vpop.permute.xlu0 %1557
    %1559 = vrot.lane.b32.xlu0 %v1517, 12
    %v1560 = vpop.permute.xlu0 %1559
    %1561 = vrot.lane.b32.xlu0 %v1518, 12
    %v1562 = vpop.permute.xlu0 %1561
    %1563 = vrot.lane.b32.xlu0 %v1519, 12
    %v1564 = vpop.permute.xlu0 %1563
    %1565 = vrot.lane.b32.xlu0 %v1520, 12
    %v1566 = vpop.permute.xlu0 %1565
    %1567 = vrot.lane.b32.xlu0 %v1521, 12
    %v1568 = vpop.permute.xlu0 %1567
    %1569 = vrot.lane.b32.xlu0 %v1522, 12
    %v1570 = vpop.permute.xlu0 %1569
    %1571 = vrot.lane.b32.xlu0 %v1523, 12
    %v1572 = vpop.permute.xlu0 %1571
    %1573 = vrot.lane.b32.xlu0 %v1524, 12
    %v1574 = vpop.permute.xlu0 %1573
    %1575 = vrot.lane.b32.xlu0 %v1525, 12
    %v1576 = vpop.permute.xlu0 %1575
    %1577 = vrot.lane.b32.xlu0 %v1526, 12
    %v1578 = vpop.permute.xlu0 %1577
    %1579 = vrot.lane.b32.xlu0 %v1527, 12
    %v1580 = vpop.permute.xlu0 %1579
    %1581 = vrot.lane.b32.xlu0 %v1528, 12
    %v1582 = vpop.permute.xlu0 %1581
    %1583 = vrot.lane.b32.xlu0 %v1529, 12
    %v1584 = vpop.permute.xlu0 %1583
    %1585 = vrot.lane.b32.xlu0 %v1530, 12
    %v1586 = vpop.permute.xlu0 %1585
    %1587 = vrot.lane.b32.xlu0 %v1531, 12
    %v1588 = vpop.permute.xlu0 %1587
    %1589 = vrot.lane.b32.xlu0 %v1532, 12
    %v1590 = vpop.permute.xlu0 %1589
    %1591 = vrot.lane.b32.xlu0 %v1533, 12
    %v1592 = vpop.permute.xlu0 %1591
    %1593 = vrot.lane.b32.xlu0 %v1534, 12
    %v1594 = vpop.permute.xlu0 %1593
    %1595 = vrot.lane.b32.xlu0 %v1535, 12
    %v1596 = vpop.permute.xlu0 %1595
    %1597 = vrot.lane.b32.xlu0 %v1536, 12
    %v1598 = vpop.permute.xlu0 %1597
    %1599 = vrot.lane.b32.xlu0 %v1537, 12
    %v1600 = vpop.permute.xlu0 %1599
    %1601 = vrot.lane.b32.xlu0 %v1538, 12
    %v1602 = vpop.permute.xlu0 %1601
    %v1635 = vunpack.c.l.b16 %v224
    %v1636 = vunpack.c.l.b16 %v225
    %v1637 = vunpack.c.l.b16 %v226
    %v1638 = vunpack.c.l.b16 %v227
    %v1639 = vunpack.c.l.b16 %v228
    %v1640 = vunpack.c.l.b16 %v229
    %v1641 = vunpack.c.l.b16 %v230
    %v1642 = vunpack.c.l.b16 %v231
    %v1643 = vunpack.c.l.b16 %v232
    %v1644 = vunpack.c.l.b16 %v233
    %v1645 = vunpack.c.l.b16 %v234
    %v1646 = vunpack.c.l.b16 %v235
    %v1647 = vunpack.c.l.b16 %v236
    %v1648 = vunpack.c.l.b16 %v237
    %v1649 = vunpack.c.l.b16 %v238
    %v1650 = vunpack.c.l.b16 %v239
    %v1651 = vunpack.c.l.b16 %v240
    %v1652 = vunpack.c.l.b16 %v241
    %v1653 = vunpack.c.l.b16 %v242
    %v1654 = vunpack.c.l.b16 %v243
    %v1655 = vunpack.c.l.b16 %v244
    %v1656 = vunpack.c.l.b16 %v245
    %v1657 = vunpack.c.l.b16 %v246
    %v1658 = vunpack.c.l.b16 %v247
    %v1659 = vunpack.c.l.b16 %v248
    %v1660 = vunpack.c.l.b16 %v249
    %v1661 = vunpack.c.l.b16 %v250
    %v1662 = vunpack.c.l.b16 %v251
    %v1663 = vunpack.c.l.b16 %v252
    %v1664 = vunpack.c.l.b16 %v253
    %v1665 = vunpack.c.l.b16 %v254
    %v1666 = vunpack.c.l.b16 %v255
    %v1667 = vpack.c.b16 %v1635, %v1635
    %v1668 = vpack.c.b16 %v1636, %v1636
    %v1669 = vpack.c.b16 %v1637, %v1637
    %v1670 = vpack.c.b16 %v1638, %v1638
    %v1671 = vpack.c.b16 %v1639, %v1639
    %v1672 = vpack.c.b16 %v1640, %v1640
    %v1673 = vpack.c.b16 %v1641, %v1641
    %v1674 = vpack.c.b16 %v1642, %v1642
    %v1675 = vpack.c.b16 %v1643, %v1643
    %v1676 = vpack.c.b16 %v1644, %v1644
    %v1677 = vpack.c.b16 %v1645, %v1645
    %v1678 = vpack.c.b16 %v1646, %v1646
    %v1679 = vpack.c.b16 %v1647, %v1647
    %v1680 = vpack.c.b16 %v1648, %v1648
    %v1681 = vpack.c.b16 %v1649, %v1649
    %v1682 = vpack.c.b16 %v1650, %v1650
    %v1683 = vpack.c.b16 %v1651, %v1651
    %v1684 = vpack.c.b16 %v1652, %v1652
    %v1685 = vpack.c.b16 %v1653, %v1653
    %v1686 = vpack.c.b16 %v1654, %v1654
    %v1687 = vpack.c.b16 %v1655, %v1655
    %v1688 = vpack.c.b16 %v1656, %v1656
    %v1689 = vpack.c.b16 %v1657, %v1657
    %v1690 = vpack.c.b16 %v1658, %v1658
    %v1691 = vpack.c.b16 %v1659, %v1659
    %v1692 = vpack.c.b16 %v1660, %v1660
    %v1693 = vpack.c.b16 %v1661, %v1661
    %v1694 = vpack.c.b16 %v1662, %v1662
    %v1695 = vpack.c.b16 %v1663, %v1663
    %v1696 = vpack.c.b16 %v1664, %v1664
    %v1697 = vpack.c.b16 %v1665, %v1665
    %v1698 = vpack.c.b16 %v1666, %v1666
    %v1700 = vshrl.u32 %v1507, 16
    %v1702 = vshll.u32 %v1507, 16
    %v1704 = vrot.slane %v1702, 1
    %v1705 = vor.u32 %v1700, %v1704
    %v1707 = vshll.u32 %v1667, 16
    %v1709 = vrot.slane %v1707, 1
    %v1710 = vsel %vm673, %v1705, %v1709
    %v1712 = vshrl.u32 %v1508, 16
    %v1714 = vshll.u32 %v1508, 16
    %v1716 = vrot.slane %v1714, 1
    %v1717 = vor.u32 %v1712, %v1716
    %v1719 = vshll.u32 %v1668, 16
    %v1721 = vrot.slane %v1719, 1
    %v1722 = vsel %vm673, %v1717, %v1721
    %v1724 = vshrl.u32 %v1509, 16
    %v1726 = vshll.u32 %v1509, 16
    %v1728 = vrot.slane %v1726, 1
    %v1729 = vor.u32 %v1724, %v1728
    %v1731 = vshll.u32 %v1669, 16
    %v1733 = vrot.slane %v1731, 1
    %v1734 = vsel %vm673, %v1729, %v1733
    %v1736 = vshrl.u32 %v1510, 16
    %v1738 = vshll.u32 %v1510, 16
    %v1740 = vrot.slane %v1738, 1
    %v1741 = vor.u32 %v1736, %v1740
    %v1743 = vshll.u32 %v1670, 16
    %v1745 = vrot.slane %v1743, 1
    %v1746 = vsel %vm673, %v1741, %v1745
    %v1748 = vshrl.u32 %v1511, 16
    %v1750 = vshll.u32 %v1511, 16
    %v1752 = vrot.slane %v1750, 1
    %v1753 = vor.u32 %v1748, %v1752
    %v1755 = vshll.u32 %v1671, 16
    %v1757 = vrot.slane %v1755, 1
    %v1758 = vsel %vm673, %v1753, %v1757
    %v1760 = vshrl.u32 %v1512, 16
    %v1762 = vshll.u32 %v1512, 16
    %v1764 = vrot.slane %v1762, 1
    %v1765 = vor.u32 %v1760, %v1764
    %v1767 = vshll.u32 %v1672, 16
    %v1769 = vrot.slane %v1767, 1
    %v1770 = vsel %vm673, %v1765, %v1769
    %v1772 = vshrl.u32 %v1513, 16
    %v1774 = vshll.u32 %v1513, 16
    %v1776 = vrot.slane %v1774, 1
    %v1777 = vor.u32 %v1772, %v1776
    %v1779 = vshll.u32 %v1673, 16
    %v1781 = vrot.slane %v1779, 1
    %v1782 = vsel %vm673, %v1777, %v1781
    %v1784 = vshrl.u32 %v1514, 16
    %v1786 = vshll.u32 %v1514, 16
    %v1788 = vrot.slane %v1786, 1
    %v1789 = vor.u32 %v1784, %v1788
    %v1791 = vshll.u32 %v1674, 16
    %v1793 = vrot.slane %v1791, 1
    %v1794 = vsel %vm673, %v1789, %v1793
    %v1796 = vshrl.u32 %v1515, 16
    %v1798 = vshll.u32 %v1515, 16
    %v1800 = vrot.slane %v1798, 1
    %v1801 = vor.u32 %v1796, %v1800
    %v1803 = vshll.u32 %v1675, 16
    %v1805 = vrot.slane %v1803, 1
    %v1806 = vsel %vm673, %v1801, %v1805
    %v1808 = vshrl.u32 %v1516, 16
    %v1810 = vshll.u32 %v1516, 16
    %v1812 = vrot.slane %v1810, 1
    %v1813 = vor.u32 %v1808, %v1812
    %v1815 = vshll.u32 %v1676, 16
    %v1817 = vrot.slane %v1815, 1
    %v1818 = vsel %vm673, %v1813, %v1817
    %v1820 = vshrl.u32 %v1517, 16
    %v1822 = vshll.u32 %v1517, 16
    %v1824 = vrot.slane %v1822, 1
    %v1825 = vor.u32 %v1820, %v1824
    %v1827 = vshll.u32 %v1677, 16
    %v1829 = vrot.slane %v1827, 1
    %v1830 = vsel %vm673, %v1825, %v1829
    %v1832 = vshrl.u32 %v1518, 16
    %v1834 = vshll.u32 %v1518, 16
    %v1836 = vrot.slane %v1834, 1
    %v1837 = vor.u32 %v1832, %v1836
    %v1839 = vshll.u32 %v1678, 16
    %v1841 = vrot.slane %v1839, 1
    %v1842 = vsel %vm673, %v1837, %v1841
    %v1844 = vshrl.u32 %v1519, 16
    %v1846 = vshll.u32 %v1519, 16
    %v1848 = vrot.slane %v1846, 1
    %v1849 = vor.u32 %v1844, %v1848
    %v1851 = vshll.u32 %v1679, 16
    %v1853 = vrot.slane %v1851, 1
    %v1854 = vsel %vm673, %v1849, %v1853
    %v1856 = vshrl.u32 %v1520, 16
    %v1858 = vshll.u32 %v1520, 16
    %v1860 = vrot.slane %v1858, 1
    %v1861 = vor.u32 %v1856, %v1860
    %v1863 = vshll.u32 %v1680, 16
    %v1865 = vrot.slane %v1863, 1
    %v1866 = vsel %vm673, %v1861, %v1865
    %v1868 = vshrl.u32 %v1521, 16
    %v1870 = vshll.u32 %v1521, 16
    %v1872 = vrot.slane %v1870, 1
    %v1873 = vor.u32 %v1868, %v1872
    %v1875 = vshll.u32 %v1681, 16
    %v1877 = vrot.slane %v1875, 1
    %v1878 = vsel %vm673, %v1873, %v1877
    %v1880 = vshrl.u32 %v1522, 16
    %v1882 = vshll.u32 %v1522, 16
    %v1884 = vrot.slane %v1882, 1
    %v1885 = vor.u32 %v1880, %v1884
    %v1887 = vshll.u32 %v1682, 16
    %v1889 = vrot.slane %v1887, 1
    %v1890 = vsel %vm673, %v1885, %v1889
    %v1892 = vshrl.u32 %v1523, 16
    %v1894 = vshll.u32 %v1523, 16
    %v1896 = vrot.slane %v1894, 1
    %v1897 = vor.u32 %v1892, %v1896
    %v1899 = vshll.u32 %v1683, 16
    %v1901 = vrot.slane %v1899, 1
    %v1902 = vsel %vm673, %v1897, %v1901
    %v1904 = vshrl.u32 %v1524, 16
    %v1906 = vshll.u32 %v1524, 16
    %v1908 = vrot.slane %v1906, 1
    %v1909 = vor.u32 %v1904, %v1908
    %v1911 = vshll.u32 %v1684, 16
    %v1913 = vrot.slane %v1911, 1
    %v1914 = vsel %vm673, %v1909, %v1913
    %v1916 = vshrl.u32 %v1525, 16
    %v1918 = vshll.u32 %v1525, 16
    %v1920 = vrot.slane %v1918, 1
    %v1921 = vor.u32 %v1916, %v1920
    %v1923 = vshll.u32 %v1685, 16
    %v1925 = vrot.slane %v1923, 1
    %v1926 = vsel %vm673, %v1921, %v1925
    %v1928 = vshrl.u32 %v1526, 16
    %v1930 = vshll.u32 %v1526, 16
    %v1932 = vrot.slane %v1930, 1
    %v1933 = vor.u32 %v1928, %v1932
    %v1935 = vshll.u32 %v1686, 16
    %v1937 = vrot.slane %v1935, 1
    %v1938 = vsel %vm673, %v1933, %v1937
    %v1940 = vshrl.u32 %v1527, 16
    %v1942 = vshll.u32 %v1527, 16
    %v1944 = vrot.slane %v1942, 1
    %v1945 = vor.u32 %v1940, %v1944
    %v1947 = vshll.u32 %v1687, 16
    %v1949 = vrot.slane %v1947, 1
    %v1950 = vsel %vm673, %v1945, %v1949
    %v1952 = vshrl.u32 %v1528, 16
    %v1954 = vshll.u32 %v1528, 16
    %v1956 = vrot.slane %v1954, 1
    %v1957 = vor.u32 %v1952, %v1956
    %v1959 = vshll.u32 %v1688, 16
    %v1961 = vrot.slane %v1959, 1
    %v1962 = vsel %vm673, %v1957, %v1961
    %v1964 = vshrl.u32 %v1529, 16
    %v1966 = vshll.u32 %v1529, 16
    %v1968 = vrot.slane %v1966, 1
    %v1969 = vor.u32 %v1964, %v1968
    %v1971 = vshll.u32 %v1689, 16
    %v1973 = vrot.slane %v1971, 1
    %v1974 = vsel %vm673, %v1969, %v1973
    %v1976 = vshrl.u32 %v1530, 16
    %v1978 = vshll.u32 %v1530, 16
    %v1980 = vrot.slane %v1978, 1
    %v1981 = vor.u32 %v1976, %v1980
    %v1983 = vshll.u32 %v1690, 16
    %v1985 = vrot.slane %v1983, 1
    %v1986 = vsel %vm673, %v1981, %v1985
    %v1988 = vshrl.u32 %v1531, 16
    %v1990 = vshll.u32 %v1531, 16
    %v1992 = vrot.slane %v1990, 1
    %v1993 = vor.u32 %v1988, %v1992
    %v1995 = vshll.u32 %v1691, 16
    %v1997 = vrot.slane %v1995, 1
    %v1998 = vsel %vm673, %v1993, %v1997
    %v2000 = vshrl.u32 %v1532, 16
    %v2002 = vshll.u32 %v1532, 16
    %v2004 = vrot.slane %v2002, 1
    %v2005 = vor.u32 %v2000, %v2004
    %v2007 = vshll.u32 %v1692, 16
    %v2009 = vrot.slane %v2007, 1
    %v2010 = vsel %vm673, %v2005, %v2009
    %v2012 = vshrl.u32 %v1533, 16
    %v2014 = vshll.u32 %v1533, 16
    %v2016 = vrot.slane %v2014, 1
    %v2017 = vor.u32 %v2012, %v2016
    %v2019 = vshll.u32 %v1693, 16
    %v2021 = vrot.slane %v2019, 1
    %v2022 = vsel %vm673, %v2017, %v2021
    %v2024 = vshrl.u32 %v1534, 16
    %v2026 = vshll.u32 %v1534, 16
    %v2028 = vrot.slane %v2026, 1
    %v2029 = vor.u32 %v2024, %v2028
    %v2031 = vshll.u32 %v1694, 16
    %v2033 = vrot.slane %v2031, 1
    %v2034 = vsel %vm673, %v2029, %v2033
    %v2036 = vshrl.u32 %v1535, 16
    %v2038 = vshll.u32 %v1535, 16
    %v2040 = vrot.slane %v2038, 1
    %v2041 = vor.u32 %v2036, %v2040
    %v2043 = vshll.u32 %v1695, 16
    %v2045 = vrot.slane %v2043, 1
    %v2046 = vsel %vm673, %v2041, %v2045
    %v2048 = vshrl.u32 %v1536, 16
    %v2050 = vshll.u32 %v1536, 16
    %v2052 = vrot.slane %v2050, 1
    %v2053 = vor.u32 %v2048, %v2052
    %v2055 = vshll.u32 %v1696, 16
    %v2057 = vrot.slane %v2055, 1
    %v2058 = vsel %vm673, %v2053, %v2057
    %v2060 = vshrl.u32 %v1537, 16
    %v2062 = vshll.u32 %v1537, 16
    %v2064 = vrot.slane %v2062, 1
    %v2065 = vor.u32 %v2060, %v2064
    %v2067 = vshll.u32 %v1697, 16
    %v2069 = vrot.slane %v2067, 1
    %v2070 = vsel %vm673, %v2065, %v2069
    %v2072 = vshrl.u32 %v1538, 16
    %v2074 = vshll.u32 %v1538, 16
    %v2076 = vrot.slane %v2074, 1
    %v2077 = vor.u32 %v2072, %v2076
    %v2079 = vshll.u32 %v1698, 16
    %v2081 = vrot.slane %v2079, 1
    %v2082 = vsel %vm673, %v2077, %v2081
    %2083 = vrot.lane.b32.xlu0 %v1710, 16
    %v2084 = vpop.permute.xlu0 %2083
    %2085 = vrot.lane.b32.xlu0 %v1722, 16
    %v2086 = vpop.permute.xlu0 %2085
    %2087 = vrot.lane.b32.xlu0 %v1734, 16
    %v2088 = vpop.permute.xlu0 %2087
    %2089 = vrot.lane.b32.xlu0 %v1746, 16
    %v2090 = vpop.permute.xlu0 %2089
    %2091 = vrot.lane.b32.xlu0 %v1758, 16
    %v2092 = vpop.permute.xlu0 %2091
    %2093 = vrot.lane.b32.xlu0 %v1770, 16
    %v2094 = vpop.permute.xlu0 %2093
    %2095 = vrot.lane.b32.xlu0 %v1782, 16
    %v2096 = vpop.permute.xlu0 %2095
    %2097 = vrot.lane.b32.xlu0 %v1794, 16
    %v2098 = vpop.permute.xlu0 %2097
    %2099 = vrot.lane.b32.xlu0 %v1806, 16
    %v2100 = vpop.permute.xlu0 %2099
    %2101 = vrot.lane.b32.xlu0 %v1818, 16
    %v2102 = vpop.permute.xlu0 %2101
    %2103 = vrot.lane.b32.xlu0 %v1830, 16
    %v2104 = vpop.permute.xlu0 %2103
    %2105 = vrot.lane.b32.xlu0 %v1842, 16
    %v2106 = vpop.permute.xlu0 %2105
    %2107 = vrot.lane.b32.xlu0 %v1854, 16
    %v2108 = vpop.permute.xlu0 %2107
    %2109 = vrot.lane.b32.xlu0 %v1866, 16
    %v2110 = vpop.permute.xlu0 %2109
    %2111 = vrot.lane.b32.xlu0 %v1878, 16
    %v2112 = vpop.permute.xlu0 %2111
    %2113 = vrot.lane.b32.xlu0 %v1890, 16
    %v2114 = vpop.permute.xlu0 %2113
    %2115 = vrot.lane.b32.xlu0 %v1902, 16
    %v2116 = vpop.permute.xlu0 %2115
    %2117 = vrot.lane.b32.xlu0 %v1914, 16
    %v2118 = vpop.permute.xlu0 %2117
    %2119 = vrot.lane.b32.xlu0 %v1926, 16
    %v2120 = vpop.permute.xlu0 %2119
    %2121 = vrot.lane.b32.xlu0 %v1938, 16
    %v2122 = vpop.permute.xlu0 %2121
    %2123 = vrot.lane.b32.xlu0 %v1950, 16
    %v2124 = vpop.permute.xlu0 %2123
    %2125 = vrot.lane.b32.xlu0 %v1962, 16
    %v2126 = vpop.permute.xlu0 %2125
    %2127 = vrot.lane.b32.xlu0 %v1974, 16
    %v2128 = vpop.permute.xlu0 %2127
    %2129 = vrot.lane.b32.xlu0 %v1986, 16
    %v2130 = vpop.permute.xlu0 %2129
    %2131 = vrot.lane.b32.xlu0 %v1998, 16
    %v2132 = vpop.permute.xlu0 %2131
    %2133 = vrot.lane.b32.xlu0 %v2010, 16
    %v2134 = vpop.permute.xlu0 %2133
    %2135 = vrot.lane.b32.xlu0 %v2022, 16
    %v2136 = vpop.permute.xlu0 %2135
    %2137 = vrot.lane.b32.xlu0 %v2034, 16
    %v2138 = vpop.permute.xlu0 %2137
    %2139 = vrot.lane.b32.xlu0 %v2046, 16
    %v2140 = vpop.permute.xlu0 %2139
    %2141 = vrot.lane.b32.xlu0 %v2058, 16
    %v2142 = vpop.permute.xlu0 %2141
    %2143 = vrot.lane.b32.xlu0 %v2070, 16
    %v2144 = vpop.permute.xlu0 %2143
    %2145 = vrot.lane.b32.xlu0 %v2082, 16
    %v2146 = vpop.permute.xlu0 %2145
    %v2179 = vunpack.c.l.b16 %v256
    %v2180 = vunpack.c.l.b16 %v257
    %v2181 = vunpack.c.l.b16 %v258
    %v2182 = vunpack.c.l.b16 %v259
    %v2183 = vunpack.c.l.b16 %v260
    %v2184 = vunpack.c.l.b16 %v261
    %v2185 = vunpack.c.l.b16 %v262
    %v2186 = vunpack.c.l.b16 %v263
    %v2187 = vunpack.c.l.b16 %v264
    %v2188 = vunpack.c.l.b16 %v265
    %v2189 = vunpack.c.l.b16 %v266
    %v2190 = vunpack.c.l.b16 %v267
    %v2191 = vunpack.c.l.b16 %v268
    %v2192 = vunpack.c.l.b16 %v269
    %v2193 = vunpack.c.l.b16 %v270
    %v2194 = vunpack.c.l.b16 %v271
    %v2195 = vunpack.c.l.b16 %v272
    %v2196 = vunpack.c.l.b16 %v273
    %v2197 = vunpack.c.l.b16 %v274
    %v2198 = vunpack.c.l.b16 %v275
    %v2199 = vunpack.c.l.b16 %v276
    %v2200 = vunpack.c.l.b16 %v277
    %v2201 = vunpack.c.l.b16 %v278
    %v2202 = vunpack.c.l.b16 %v279
    %v2203 = vunpack.c.l.b16 %v280
    %v2204 = vunpack.c.l.b16 %v281
    %v2205 = vunpack.c.l.b16 %v282
    %v2206 = vunpack.c.l.b16 %v283
    %v2207 = vunpack.c.l.b16 %v284
    %v2208 = vunpack.c.l.b16 %v285
    %v2209 = vunpack.c.l.b16 %v286
    %v2210 = vunpack.c.l.b16 %v287
    %v2211 = vpack.c.b16 %v1444, %v2179
    %v2212 = vpack.c.b16 %v1446, %v2180
    %v2213 = vpack.c.b16 %v1448, %v2181
    %v2214 = vpack.c.b16 %v1450, %v2182
    %v2215 = vpack.c.b16 %v1452, %v2183
    %v2216 = vpack.c.b16 %v1454, %v2184
    %v2217 = vpack.c.b16 %v1456, %v2185
    %v2218 = vpack.c.b16 %v1458, %v2186
    %v2219 = vpack.c.b16 %v1460, %v2187
    %v2220 = vpack.c.b16 %v1462, %v2188
    %v2221 = vpack.c.b16 %v1464, %v2189
    %v2222 = vpack.c.b16 %v1466, %v2190
    %v2223 = vpack.c.b16 %v1468, %v2191
    %v2224 = vpack.c.b16 %v1470, %v2192
    %v2225 = vpack.c.b16 %v1472, %v2193
    %v2226 = vpack.c.b16 %v1474, %v2194
    %v2227 = vpack.c.b16 %v1476, %v2195
    %v2228 = vpack.c.b16 %v1478, %v2196
    %v2229 = vpack.c.b16 %v1480, %v2197
    %v2230 = vpack.c.b16 %v1482, %v2198
    %v2231 = vpack.c.b16 %v1484, %v2199
    %v2232 = vpack.c.b16 %v1486, %v2200
    %v2233 = vpack.c.b16 %v1488, %v2201
    %v2234 = vpack.c.b16 %v1490, %v2202
    %v2235 = vpack.c.b16 %v1492, %v2203
    %v2236 = vpack.c.b16 %v1494, %v2204
    %v2237 = vpack.c.b16 %v1496, %v2205
    %v2238 = vpack.c.b16 %v1498, %v2206
    %v2239 = vpack.c.b16 %v1500, %v2207
    %v2240 = vpack.c.b16 %v1502, %v2208
    %v2241 = vpack.c.b16 %v1504, %v2209
    %v2242 = vpack.c.b16 %v1506, %v2210
    %v2243 = vrot.slane %v2211, 1
    %v2244 = vrot.slane %v1667, 1
    %v2245 = vsel %vm1218, %v2243, %v2244
    %v2246 = vrot.slane %v2212, 1
    %v2247 = vrot.slane %v1668, 1
    %v2248 = vsel %vm1218, %v2246, %v2247
    %v2249 = vrot.slane %v2213, 1
    %v2250 = vrot.slane %v1669, 1
    %v2251 = vsel %vm1218, %v2249, %v2250
    %v2252 = vrot.slane %v2214, 1
    %v2253 = vrot.slane %v1670, 1
    %v2254 = vsel %vm1218, %v2252, %v2253
    %v2255 = vrot.slane %v2215, 1
    %v2256 = vrot.slane %v1671, 1
    %v2257 = vsel %vm1218, %v2255, %v2256
    %v2258 = vrot.slane %v2216, 1
    %v2259 = vrot.slane %v1672, 1
    %v2260 = vsel %vm1218, %v2258, %v2259
    %v2261 = vrot.slane %v2217, 1
    %v2262 = vrot.slane %v1673, 1
    %v2263 = vsel %vm1218, %v2261, %v2262
    %v2264 = vrot.slane %v2218, 1
    %v2265 = vrot.slane %v1674, 1
    %v2266 = vsel %vm1218, %v2264, %v2265
    %v2267 = vrot.slane %v2219, 1
    %v2268 = vrot.slane %v1675, 1
    %v2269 = vsel %vm1218, %v2267, %v2268
    %v2270 = vrot.slane %v2220, 1
    %v2271 = vrot.slane %v1676, 1
    %v2272 = vsel %vm1218, %v2270, %v2271
    %v2273 = vrot.slane %v2221, 1
    %v2274 = vrot.slane %v1677, 1
    %v2275 = vsel %vm1218, %v2273, %v2274
    %v2276 = vrot.slane %v2222, 1
    %v2277 = vrot.slane %v1678, 1
    %v2278 = vsel %vm1218, %v2276, %v2277
    %v2279 = vrot.slane %v2223, 1
    %v2280 = vrot.slane %v1679, 1
    %v2281 = vsel %vm1218, %v2279, %v2280
    %v2282 = vrot.slane %v2224, 1
    %v2283 = vrot.slane %v1680, 1
    %v2284 = vsel %vm1218, %v2282, %v2283
    %v2285 = vrot.slane %v2225, 1
    %v2286 = vrot.slane %v1681, 1
    %v2287 = vsel %vm1218, %v2285, %v2286
    %v2288 = vrot.slane %v2226, 1
    %v2289 = vrot.slane %v1682, 1
    %v2290 = vsel %vm1218, %v2288, %v2289
    %v2291 = vrot.slane %v2227, 1
    %v2292 = vrot.slane %v1683, 1
    %v2293 = vsel %vm1218, %v2291, %v2292
    %v2294 = vrot.slane %v2228, 1
    %v2295 = vrot.slane %v1684, 1
    %v2296 = vsel %vm1218, %v2294, %v2295
    %v2297 = vrot.slane %v2229, 1
    %v2298 = vrot.slane %v1685, 1
    %v2299 = vsel %vm1218, %v2297, %v2298
    %v2300 = vrot.slane %v2230, 1
    %v2301 = vrot.slane %v1686, 1
    %v2302 = vsel %vm1218, %v2300, %v2301
    %v2303 = vrot.slane %v2231, 1
    %v2304 = vrot.slane %v1687, 1
    %v2305 = vsel %vm1218, %v2303, %v2304
    %v2306 = vrot.slane %v2232, 1
    %v2307 = vrot.slane %v1688, 1
    %v2308 = vsel %vm1218, %v2306, %v2307
    %v2309 = vrot.slane %v2233, 1
    %v2310 = vrot.slane %v1689, 1
    %v2311 = vsel %vm1218, %v2309, %v2310
    %v2312 = vrot.slane %v2234, 1
    %v2313 = vrot.slane %v1690, 1
    %v2314 = vsel %vm1218, %v2312, %v2313
    %v2315 = vrot.slane %v2235, 1
    %v2316 = vrot.slane %v1691, 1
    %v2317 = vsel %vm1218, %v2315, %v2316
    %v2318 = vrot.slane %v2236, 1
    %v2319 = vrot.slane %v1692, 1
    %v2320 = vsel %vm1218, %v2318, %v2319
    %v2321 = vrot.slane %v2237, 1
    %v2322 = vrot.slane %v1693, 1
    %v2323 = vsel %vm1218, %v2321, %v2322
    %v2324 = vrot.slane %v2238, 1
    %v2325 = vrot.slane %v1694, 1
    %v2326 = vsel %vm1218, %v2324, %v2325
    %v2327 = vrot.slane %v2239, 1
    %v2328 = vrot.slane %v1695, 1
    %v2329 = vsel %vm1218, %v2327, %v2328
    %v2330 = vrot.slane %v2240, 1
    %v2331 = vrot.slane %v1696, 1
    %v2332 = vsel %vm1218, %v2330, %v2331
    %v2333 = vrot.slane %v2241, 1
    %v2334 = vrot.slane %v1697, 1
    %v2335 = vsel %vm1218, %v2333, %v2334
    %v2336 = vrot.slane %v2242, 1
    %v2337 = vrot.slane %v1698, 1
    %v2338 = vsel %vm1218, %v2336, %v2337
    %2339 = vrot.lane.b32.xlu0 %v2245, 20
    %v2340 = vpop.permute.xlu0 %2339
    %2341 = vrot.lane.b32.xlu0 %v2248, 20
    %v2342 = vpop.permute.xlu0 %2341
    %2343 = vrot.lane.b32.xlu0 %v2251, 20
    %v2344 = vpop.permute.xlu0 %2343
    %2345 = vrot.lane.b32.xlu0 %v2254, 20
    %v2346 = vpop.permute.xlu0 %2345
    %2347 = vrot.lane.b32.xlu0 %v2257, 20
    %v2348 = vpop.permute.xlu0 %2347
    %2349 = vrot.lane.b32.xlu0 %v2260, 20
    %v2350 = vpop.permute.xlu0 %2349
    %2351 = vrot.lane.b32.xlu0 %v2263, 20
    %v2352 = vpop.permute.xlu0 %2351
    %2353 = vrot.lane.b32.xlu0 %v2266, 20
    %v2354 = vpop.permute.xlu0 %2353
    %2355 = vrot.lane.b32.xlu0 %v2269, 20
    %v2356 = vpop.permute.xlu0 %2355
    %2357 = vrot.lane.b32.xlu0 %v2272, 20
    %v2358 = vpop.permute.xlu0 %2357
    %2359 = vrot.lane.b32.xlu0 %v2275, 20
    %v2360 = vpop.permute.xlu0 %2359
    %2361 = vrot.lane.b32.xlu0 %v2278, 20
    %v2362 = vpop.permute.xlu0 %2361
    %2363 = vrot.lane.b32.xlu0 %v2281, 20
    %v2364 = vpop.permute.xlu0 %2363
    %2365 = vrot.lane.b32.xlu0 %v2284, 20
    %v2366 = vpop.permute.xlu0 %2365
    %2367 = vrot.lane.b32.xlu0 %v2287, 20
    %v2368 = vpop.permute.xlu0 %2367
    %2369 = vrot.lane.b32.xlu0 %v2290, 20
    %v2370 = vpop.permute.xlu0 %2369
    %2371 = vrot.lane.b32.xlu0 %v2293, 20
    %v2372 = vpop.permute.xlu0 %2371
    %2373 = vrot.lane.b32.xlu0 %v2296, 20
    %v2374 = vpop.permute.xlu0 %2373
    %2375 = vrot.lane.b32.xlu0 %v2299, 20
    %v2376 = vpop.permute.xlu0 %2375
    %2377 = vrot.lane.b32.xlu0 %v2302, 20
    %v2378 = vpop.permute.xlu0 %2377
    %2379 = vrot.lane.b32.xlu0 %v2305, 20
    %v2380 = vpop.permute.xlu0 %2379
    %2381 = vrot.lane.b32.xlu0 %v2308, 20
    %v2382 = vpop.permute.xlu0 %2381
    %2383 = vrot.lane.b32.xlu0 %v2311, 20
    %v2384 = vpop.permute.xlu0 %2383
    %2385 = vrot.lane.b32.xlu0 %v2314, 20
    %v2386 = vpop.permute.xlu0 %2385
    %2387 = vrot.lane.b32.xlu0 %v2317, 20
    %v2388 = vpop.permute.xlu0 %2387
    %2389 = vrot.lane.b32.xlu0 %v2320, 20
    %v2390 = vpop.permute.xlu0 %2389
    %2391 = vrot.lane.b32.xlu0 %v2323, 20
    %v2392 = vpop.permute.xlu0 %2391
    %2393 = vrot.lane.b32.xlu0 %v2326, 20
    %v2394 = vpop.permute.xlu0 %2393
    %2395 = vrot.lane.b32.xlu0 %v2329, 20
    %v2396 = vpop.permute.xlu0 %2395
    %2397 = vrot.lane.b32.xlu0 %v2332, 20
    %v2398 = vpop.permute.xlu0 %2397
    %2399 = vrot.lane.b32.xlu0 %v2335, 20
    %v2400 = vpop.permute.xlu0 %2399
    %2401 = vrot.lane.b32.xlu0 %v2338, 20
    %v2402 = vpop.permute.xlu0 %2401
    %v2467 = vunpack.c.l.b16 %v289
    %v2468 = vunpack.c.l.b16 %v290
    %v2469 = vunpack.c.l.b16 %v291
    %v2470 = vunpack.c.l.b16 %v292
    %v2471 = vunpack.c.l.b16 %v293
    %v2472 = vunpack.c.l.b16 %v294
    %v2473 = vunpack.c.l.b16 %v295
    %v2474 = vunpack.c.l.b16 %v296
    %v2475 = vunpack.c.l.b16 %v297
    %v2476 = vunpack.c.l.b16 %v298
    %v2477 = vunpack.c.l.b16 %v299
    %v2478 = vunpack.c.l.b16 %v300
    %v2479 = vunpack.c.l.b16 %v301
    %v2480 = vunpack.c.l.b16 %v302
    %v2481 = vunpack.c.l.b16 %v303
    %v2482 = vunpack.c.l.b16 %v304
    %v2483 = vunpack.c.l.b16 %v305
    %v2484 = vunpack.c.l.b16 %v306
    %v2485 = vunpack.c.l.b16 %v307
    %v2486 = vunpack.c.l.b16 %v308
    %v2487 = vunpack.c.l.b16 %v309
    %v2488 = vunpack.c.l.b16 %v310
    %v2489 = vunpack.c.l.b16 %v311
    %v2490 = vunpack.c.l.b16 %v312
    %v2491 = vunpack.c.l.b16 %v313
    %v2492 = vunpack.c.l.b16 %v314
    %v2493 = vunpack.c.l.b16 %v315
    %v2494 = vunpack.c.l.b16 %v316
    %v2495 = vunpack.c.l.b16 %v317
    %v2496 = vunpack.c.l.b16 %v318
    %v2497 = vunpack.c.l.b16 %v319
    %v2498 = vunpack.c.l.b16 %v320
    %v2499 = vunpack.c.l.b16 %v321
    %v2500 = vunpack.c.l.b16 %v322
    %v2501 = vunpack.c.l.b16 %v323
    %v2502 = vunpack.c.l.b16 %v324
    %v2503 = vunpack.c.l.b16 %v325
    %v2504 = vunpack.c.l.b16 %v326
    %v2505 = vunpack.c.l.b16 %v327
    %v2506 = vunpack.c.l.b16 %v328
    %v2507 = vunpack.c.l.b16 %v329
    %v2508 = vunpack.c.l.b16 %v330
    %v2509 = vunpack.c.l.b16 %v331
    %v2510 = vunpack.c.l.b16 %v332
    %v2511 = vunpack.c.l.b16 %v333
    %v2512 = vunpack.c.l.b16 %v334
    %v2513 = vunpack.c.l.b16 %v335
    %v2514 = vunpack.c.l.b16 %v336
    %v2515 = vunpack.c.l.b16 %v337
    %v2516 = vunpack.c.l.b16 %v338
    %v2517 = vunpack.c.l.b16 %v339
    %v2518 = vunpack.c.l.b16 %v340
    %v2519 = vunpack.c.l.b16 %v341
    %v2520 = vunpack.c.l.b16 %v342
    %v2521 = vunpack.c.l.b16 %v343
    %v2522 = vunpack.c.l.b16 %v344
    %v2523 = vunpack.c.l.b16 %v345
    %v2524 = vunpack.c.l.b16 %v346
    %v2525 = vunpack.c.l.b16 %v347
    %v2526 = vunpack.c.l.b16 %v348
    %v2527 = vunpack.c.l.b16 %v349
    %v2528 = vunpack.c.l.b16 %v350
    %v2529 = vunpack.c.l.b16 %v351
    %v2530 = vunpack.c.l.b16 %v352
    %v2531 = vpack.c.b16 %v2468, %v2467
    %v2532 = vpack.c.b16 %v2470, %v2469
    %v2533 = vpack.c.b16 %v2472, %v2471
    %v2534 = vpack.c.b16 %v2474, %v2473
    %v2535 = vpack.c.b16 %v2476, %v2475
    %v2536 = vpack.c.b16 %v2478, %v2477
    %v2537 = vpack.c.b16 %v2480, %v2479
    %v2538 = vpack.c.b16 %v2482, %v2481
    %v2539 = vpack.c.b16 %v2484, %v2483
    %v2540 = vpack.c.b16 %v2486, %v2485
    %v2541 = vpack.c.b16 %v2488, %v2487
    %v2542 = vpack.c.b16 %v2490, %v2489
    %v2543 = vpack.c.b16 %v2492, %v2491
    %v2544 = vpack.c.b16 %v2494, %v2493
    %v2545 = vpack.c.b16 %v2496, %v2495
    %v2546 = vpack.c.b16 %v2498, %v2497
    %v2547 = vpack.c.b16 %v2500, %v2499
    %v2548 = vpack.c.b16 %v2502, %v2501
    %v2549 = vpack.c.b16 %v2504, %v2503
    %v2550 = vpack.c.b16 %v2506, %v2505
    %v2551 = vpack.c.b16 %v2508, %v2507
    %v2552 = vpack.c.b16 %v2510, %v2509
    %v2553 = vpack.c.b16 %v2512, %v2511
    %v2554 = vpack.c.b16 %v2514, %v2513
    %v2555 = vpack.c.b16 %v2516, %v2515
    %v2556 = vpack.c.b16 %v2518, %v2517
    %v2557 = vpack.c.b16 %v2520, %v2519
    %v2558 = vpack.c.b16 %v2522, %v2521
    %v2559 = vpack.c.b16 %v2524, %v2523
    %v2560 = vpack.c.b16 %v2526, %v2525
    %v2561 = vpack.c.b16 %v2528, %v2527
    %v2562 = vpack.c.b16 %v2530, %v2529
    %2563 = vrot.lane.b32.xlu0 %v2531, 24
    %v2564 = vpop.permute.xlu0 %2563
    %2565 = vrot.lane.b32.xlu0 %v2532, 24
    %v2566 = vpop.permute.xlu0 %2565
    %2567 = vrot.lane.b32.xlu0 %v2533, 24
    %v2568 = vpop.permute.xlu0 %2567
    %2569 = vrot.lane.b32.xlu0 %v2534, 24
    %v2570 = vpop.permute.xlu0 %2569
    %2571 = vrot.lane.b32.xlu0 %v2535, 24
    %v2572 = vpop.permute.xlu0 %2571
    %2573 = vrot.lane.b32.xlu0 %v2536, 24
    %v2574 = vpop.permute.xlu0 %2573
    %2575 = vrot.lane.b32.xlu0 %v2537, 24
    %v2576 = vpop.permute.xlu0 %2575
    %2577 = vrot.lane.b32.xlu0 %v2538, 24
    %v2578 = vpop.permute.xlu0 %2577
    %2579 = vrot.lane.b32.xlu0 %v2539, 24
    %v2580 = vpop.permute.xlu0 %2579
    %2581 = vrot.lane.b32.xlu0 %v2540, 24
    %v2582 = vpop.permute.xlu0 %2581
    %2583 = vrot.lane.b32.xlu0 %v2541, 24
    %v2584 = vpop.permute.xlu0 %2583
    %2585 = vrot.lane.b32.xlu0 %v2542, 24
    %v2586 = vpop.permute.xlu0 %2585
    %2587 = vrot.lane.b32.xlu0 %v2543, 24
    %v2588 = vpop.permute.xlu0 %2587
    %2589 = vrot.lane.b32.xlu0 %v2544, 24
    %v2590 = vpop.permute.xlu0 %2589
    %2591 = vrot.lane.b32.xlu0 %v2545, 24
    %v2592 = vpop.permute.xlu0 %2591
    %2593 = vrot.lane.b32.xlu0 %v2546, 24
    %v2594 = vpop.permute.xlu0 %2593
    %2595 = vrot.lane.b32.xlu0 %v2547, 24
    %v2596 = vpop.permute.xlu0 %2595
    %2597 = vrot.lane.b32.xlu0 %v2548, 24
    %v2598 = vpop.permute.xlu0 %2597
    %2599 = vrot.lane.b32.xlu0 %v2549, 24
    %v2600 = vpop.permute.xlu0 %2599
    %2601 = vrot.lane.b32.xlu0 %v2550, 24
    %v2602 = vpop.permute.xlu0 %2601
    %2603 = vrot.lane.b32.xlu0 %v2551, 24
    %v2604 = vpop.permute.xlu0 %2603
    %2605 = vrot.lane.b32.xlu0 %v2552, 24
    %v2606 = vpop.permute.xlu0 %2605
    %2607 = vrot.lane.b32.xlu0 %v2553, 24
    %v2608 = vpop.permute.xlu0 %2607
    %2609 = vrot.lane.b32.xlu0 %v2554, 24
    %v2610 = vpop.permute.xlu0 %2609
    %2611 = vrot.lane.b32.xlu0 %v2555, 24
    %v2612 = vpop.permute.xlu0 %2611
    %2613 = vrot.lane.b32.xlu0 %v2556, 24
    %v2614 = vpop.permute.xlu0 %2613
    %2615 = vrot.lane.b32.xlu0 %v2557, 24
    %v2616 = vpop.permute.xlu0 %2615
    %2617 = vrot.lane.b32.xlu0 %v2558, 24
    %v2618 = vpop.permute.xlu0 %2617
    %2619 = vrot.lane.b32.xlu0 %v2559, 24
    %v2620 = vpop.permute.xlu0 %2619
    %2621 = vrot.lane.b32.xlu0 %v2560, 24
    %v2622 = vpop.permute.xlu0 %2621
    %2623 = vrot.lane.b32.xlu0 %v2561, 24
    %v2624 = vpop.permute.xlu0 %2623
    %2625 = vrot.lane.b32.xlu0 %v2562, 24
    %v2626 = vpop.permute.xlu0 %2625
    %v2659 = vunpack.c.l.b16 %v353
    %v2660 = vunpack.c.l.b16 %v354
    %v2661 = vunpack.c.l.b16 %v355
    %v2662 = vunpack.c.l.b16 %v356
    %v2663 = vunpack.c.l.b16 %v357
    %v2664 = vunpack.c.l.b16 %v358
    %v2665 = vunpack.c.l.b16 %v359
    %v2666 = vunpack.c.l.b16 %v360
    %v2667 = vunpack.c.l.b16 %v361
    %v2668 = vunpack.c.l.b16 %v362
    %v2669 = vunpack.c.l.b16 %v363
    %v2670 = vunpack.c.l.b16 %v364
    %v2671 = vunpack.c.l.b16 %v365
    %v2672 = vunpack.c.l.b16 %v366
    %v2673 = vunpack.c.l.b16 %v367
    %v2674 = vunpack.c.l.b16 %v368
    %v2675 = vunpack.c.l.b16 %v369
    %v2676 = vunpack.c.l.b16 %v370
    %v2677 = vunpack.c.l.b16 %v371
    %v2678 = vunpack.c.l.b16 %v372
    %v2679 = vunpack.c.l.b16 %v373
    %v2680 = vunpack.c.l.b16 %v374
    %v2681 = vunpack.c.l.b16 %v375
    %v2682 = vunpack.c.l.b16 %v376
    %v2683 = vunpack.c.l.b16 %v377
    %v2684 = vunpack.c.l.b16 %v378
    %v2685 = vunpack.c.l.b16 %v379
    %v2686 = vunpack.c.l.b16 %v380
    %v2687 = vunpack.c.l.b16 %v381
    %v2688 = vunpack.c.l.b16 %v382
    %v2689 = vunpack.c.l.b16 %v383
    %v2690 = vunpack.c.l.b16 %v384
    %v2691 = vpack.c.b16 %v2659, %v2659
    %v2692 = vpack.c.b16 %v2660, %v2660
    %v2693 = vpack.c.b16 %v2661, %v2661
    %v2694 = vpack.c.b16 %v2662, %v2662
    %v2695 = vpack.c.b16 %v2663, %v2663
    %v2696 = vpack.c.b16 %v2664, %v2664
    %v2697 = vpack.c.b16 %v2665, %v2665
    %v2698 = vpack.c.b16 %v2666, %v2666
    %v2699 = vpack.c.b16 %v2667, %v2667
    %v2700 = vpack.c.b16 %v2668, %v2668
    %v2701 = vpack.c.b16 %v2669, %v2669
    %v2702 = vpack.c.b16 %v2670, %v2670
    %v2703 = vpack.c.b16 %v2671, %v2671
    %v2704 = vpack.c.b16 %v2672, %v2672
    %v2705 = vpack.c.b16 %v2673, %v2673
    %v2706 = vpack.c.b16 %v2674, %v2674
    %v2707 = vpack.c.b16 %v2675, %v2675
    %v2708 = vpack.c.b16 %v2676, %v2676
    %v2709 = vpack.c.b16 %v2677, %v2677
    %v2710 = vpack.c.b16 %v2678, %v2678
    %v2711 = vpack.c.b16 %v2679, %v2679
    %v2712 = vpack.c.b16 %v2680, %v2680
    %v2713 = vpack.c.b16 %v2681, %v2681
    %v2714 = vpack.c.b16 %v2682, %v2682
    %v2715 = vpack.c.b16 %v2683, %v2683
    %v2716 = vpack.c.b16 %v2684, %v2684
    %v2717 = vpack.c.b16 %v2685, %v2685
    %v2718 = vpack.c.b16 %v2686, %v2686
    %v2719 = vpack.c.b16 %v2687, %v2687
    %v2720 = vpack.c.b16 %v2688, %v2688
    %v2721 = vpack.c.b16 %v2689, %v2689
    %v2722 = vpack.c.b16 %v2690, %v2690
    %v2724 = vshrl.u32 %v2531, 16
    %v2726 = vshll.u32 %v2531, 16
    %v2728 = vrot.slane %v2726, 1
    %v2729 = vor.u32 %v2724, %v2728
    %v2731 = vshll.u32 %v2691, 16
    %v2733 = vrot.slane %v2731, 1
    %v2734 = vsel %vm673, %v2729, %v2733
    %v2736 = vshrl.u32 %v2532, 16
    %v2738 = vshll.u32 %v2532, 16
    %v2740 = vrot.slane %v2738, 1
    %v2741 = vor.u32 %v2736, %v2740
    %v2743 = vshll.u32 %v2692, 16
    %v2745 = vrot.slane %v2743, 1
    %v2746 = vsel %vm673, %v2741, %v2745
    %v2748 = vshrl.u32 %v2533, 16
    %v2750 = vshll.u32 %v2533, 16
    %v2752 = vrot.slane %v2750, 1
    %v2753 = vor.u32 %v2748, %v2752
    %v2755 = vshll.u32 %v2693, 16
    %v2757 = vrot.slane %v2755, 1
    %v2758 = vsel %vm673, %v2753, %v2757
    %v2760 = vshrl.u32 %v2534, 16
    %v2762 = vshll.u32 %v2534, 16
    %v2764 = vrot.slane %v2762, 1
    %v2765 = vor.u32 %v2760, %v2764
    %v2767 = vshll.u32 %v2694, 16
    %v2769 = vrot.slane %v2767, 1
    %v2770 = vsel %vm673, %v2765, %v2769
    %v2772 = vshrl.u32 %v2535, 16
    %v2774 = vshll.u32 %v2535, 16
    %v2776 = vrot.slane %v2774, 1
    %v2777 = vor.u32 %v2772, %v2776
    %v2779 = vshll.u32 %v2695, 16
    %v2781 = vrot.slane %v2779, 1
    %v2782 = vsel %vm673, %v2777, %v2781
    %v2784 = vshrl.u32 %v2536, 16
    %v2786 = vshll.u32 %v2536, 16
    %v2788 = vrot.slane %v2786, 1
    %v2789 = vor.u32 %v2784, %v2788
    %v2791 = vshll.u32 %v2696, 16
    %v2793 = vrot.slane %v2791, 1
    %v2794 = vsel %vm673, %v2789, %v2793
    %v2796 = vshrl.u32 %v2537, 16
    %v2798 = vshll.u32 %v2537, 16
    %v2800 = vrot.slane %v2798, 1
    %v2801 = vor.u32 %v2796, %v2800
    %v2803 = vshll.u32 %v2697, 16
    %v2805 = vrot.slane %v2803, 1
    %v2806 = vsel %vm673, %v2801, %v2805
    %v2808 = vshrl.u32 %v2538, 16
    %v2810 = vshll.u32 %v2538, 16
    %v2812 = vrot.slane %v2810, 1
    %v2813 = vor.u32 %v2808, %v2812
    %v2815 = vshll.u32 %v2698, 16
    %v2817 = vrot.slane %v2815, 1
    %v2818 = vsel %vm673, %v2813, %v2817
    %v2820 = vshrl.u32 %v2539, 16
    %v2822 = vshll.u32 %v2539, 16
    %v2824 = vrot.slane %v2822, 1
    %v2825 = vor.u32 %v2820, %v2824
    %v2827 = vshll.u32 %v2699, 16
    %v2829 = vrot.slane %v2827, 1
    %v2830 = vsel %vm673, %v2825, %v2829
    %v2832 = vshrl.u32 %v2540, 16
    %v2834 = vshll.u32 %v2540, 16
    %v2836 = vrot.slane %v2834, 1
    %v2837 = vor.u32 %v2832, %v2836
    %v2839 = vshll.u32 %v2700, 16
    %v2841 = vrot.slane %v2839, 1
    %v2842 = vsel %vm673, %v2837, %v2841
    %v2844 = vshrl.u32 %v2541, 16
    %v2846 = vshll.u32 %v2541, 16
    %v2848 = vrot.slane %v2846, 1
    %v2849 = vor.u32 %v2844, %v2848
    %v2851 = vshll.u32 %v2701, 16
    %v2853 = vrot.slane %v2851, 1
    %v2854 = vsel %vm673, %v2849, %v2853
    %v2856 = vshrl.u32 %v2542, 16
    %v2858 = vshll.u32 %v2542, 16
    %v2860 = vrot.slane %v2858, 1
    %v2861 = vor.u32 %v2856, %v2860
    %v2863 = vshll.u32 %v2702, 16
    %v2865 = vrot.slane %v2863, 1
    %v2866 = vsel %vm673, %v2861, %v2865
    %v2868 = vshrl.u32 %v2543, 16
    %v2870 = vshll.u32 %v2543, 16
    %v2872 = vrot.slane %v2870, 1
    %v2873 = vor.u32 %v2868, %v2872
    %v2875 = vshll.u32 %v2703, 16
    %v2877 = vrot.slane %v2875, 1
    %v2878 = vsel %vm673, %v2873, %v2877
    %v2880 = vshrl.u32 %v2544, 16
    %v2882 = vshll.u32 %v2544, 16
    %v2884 = vrot.slane %v2882, 1
    %v2885 = vor.u32 %v2880, %v2884
    %v2887 = vshll.u32 %v2704, 16
    %v2889 = vrot.slane %v2887, 1
    %v2890 = vsel %vm673, %v2885, %v2889
    %v2892 = vshrl.u32 %v2545, 16
    %v2894 = vshll.u32 %v2545, 16
    %v2896 = vrot.slane %v2894, 1
    %v2897 = vor.u32 %v2892, %v2896
    %v2899 = vshll.u32 %v2705, 16
    %v2901 = vrot.slane %v2899, 1
    %v2902 = vsel %vm673, %v2897, %v2901
    %v2904 = vshrl.u32 %v2546, 16
    %v2906 = vshll.u32 %v2546, 16
    %v2908 = vrot.slane %v2906, 1
    %v2909 = vor.u32 %v2904, %v2908
    %v2911 = vshll.u32 %v2706, 16
    %v2913 = vrot.slane %v2911, 1
    %v2914 = vsel %vm673, %v2909, %v2913
    %v2916 = vshrl.u32 %v2547, 16
    %v2918 = vshll.u32 %v2547, 16
    %v2920 = vrot.slane %v2918, 1
    %v2921 = vor.u32 %v2916, %v2920
    %v2923 = vshll.u32 %v2707, 16
    %v2925 = vrot.slane %v2923, 1
    %v2926 = vsel %vm673, %v2921, %v2925
    %v2928 = vshrl.u32 %v2548, 16
    %v2930 = vshll.u32 %v2548, 16
    %v2932 = vrot.slane %v2930, 1
    %v2933 = vor.u32 %v2928, %v2932
    %v2935 = vshll.u32 %v2708, 16
    %v2937 = vrot.slane %v2935, 1
    %v2938 = vsel %vm673, %v2933, %v2937
    %v2940 = vshrl.u32 %v2549, 16
    %v2942 = vshll.u32 %v2549, 16
    %v2944 = vrot.slane %v2942, 1
    %v2945 = vor.u32 %v2940, %v2944
    %v2947 = vshll.u32 %v2709, 16
    %v2949 = vrot.slane %v2947, 1
    %v2950 = vsel %vm673, %v2945, %v2949
    %v2952 = vshrl.u32 %v2550, 16
    %v2954 = vshll.u32 %v2550, 16
    %v2956 = vrot.slane %v2954, 1
    %v2957 = vor.u32 %v2952, %v2956
    %v2959 = vshll.u32 %v2710, 16
    %v2961 = vrot.slane %v2959, 1
    %v2962 = vsel %vm673, %v2957, %v2961
    %v2964 = vshrl.u32 %v2551, 16
    %v2966 = vshll.u32 %v2551, 16
    %v2968 = vrot.slane %v2966, 1
    %v2969 = vor.u32 %v2964, %v2968
    %v2971 = vshll.u32 %v2711, 16
    %v2973 = vrot.slane %v2971, 1
    %v2974 = vsel %vm673, %v2969, %v2973
    %v2976 = vshrl.u32 %v2552, 16
    %v2978 = vshll.u32 %v2552, 16
    %v2980 = vrot.slane %v2978, 1
    %v2981 = vor.u32 %v2976, %v2980
    %v2983 = vshll.u32 %v2712, 16
    %v2985 = vrot.slane %v2983, 1
    %v2986 = vsel %vm673, %v2981, %v2985
    %v2988 = vshrl.u32 %v2553, 16
    %v2990 = vshll.u32 %v2553, 16
    %v2992 = vrot.slane %v2990, 1
    %v2993 = vor.u32 %v2988, %v2992
    %v2995 = vshll.u32 %v2713, 16
    %v2997 = vrot.slane %v2995, 1
    %v2998 = vsel %vm673, %v2993, %v2997
    %v3000 = vshrl.u32 %v2554, 16
    %v3002 = vshll.u32 %v2554, 16
    %v3004 = vrot.slane %v3002, 1
    %v3005 = vor.u32 %v3000, %v3004
    %v3007 = vshll.u32 %v2714, 16
    %v3009 = vrot.slane %v3007, 1
    %v3010 = vsel %vm673, %v3005, %v3009
    %v3012 = vshrl.u32 %v2555, 16
    %v3014 = vshll.u32 %v2555, 16
    %v3016 = vrot.slane %v3014, 1
    %v3017 = vor.u32 %v3012, %v3016
    %v3019 = vshll.u32 %v2715, 16
    %v3021 = vrot.slane %v3019, 1
    %v3022 = vsel %vm673, %v3017, %v3021
    %v3024 = vshrl.u32 %v2556, 16
    %v3026 = vshll.u32 %v2556, 16
    %v3028 = vrot.slane %v3026, 1
    %v3029 = vor.u32 %v3024, %v3028
    %v3031 = vshll.u32 %v2716, 16
    %v3033 = vrot.slane %v3031, 1
    %v3034 = vsel %vm673, %v3029, %v3033
    %v3036 = vshrl.u32 %v2557, 16
    %v3038 = vshll.u32 %v2557, 16
    %v3040 = vrot.slane %v3038, 1
    %v3041 = vor.u32 %v3036, %v3040
    %v3043 = vshll.u32 %v2717, 16
    %v3045 = vrot.slane %v3043, 1
    %v3046 = vsel %vm673, %v3041, %v3045
    %v3048 = vshrl.u32 %v2558, 16
    %v3050 = vshll.u32 %v2558, 16
    %v3052 = vrot.slane %v3050, 1
    %v3053 = vor.u32 %v3048, %v3052
    %v3055 = vshll.u32 %v2718, 16
    %v3057 = vrot.slane %v3055, 1
    %v3058 = vsel %vm673, %v3053, %v3057
    %v3060 = vshrl.u32 %v2559, 16
    %v3062 = vshll.u32 %v2559, 16
    %v3064 = vrot.slane %v3062, 1
    %v3065 = vor.u32 %v3060, %v3064
    %v3067 = vshll.u32 %v2719, 16
    %v3069 = vrot.slane %v3067, 1
    %v3070 = vsel %vm673, %v3065, %v3069
    %v3072 = vshrl.u32 %v2560, 16
    %v3074 = vshll.u32 %v2560, 16
    %v3076 = vrot.slane %v3074, 1
    %v3077 = vor.u32 %v3072, %v3076
    %v3079 = vshll.u32 %v2720, 16
    %v3081 = vrot.slane %v3079, 1
    %v3082 = vsel %vm673, %v3077, %v3081
    %v3084 = vshrl.u32 %v2561, 16
    %v3086 = vshll.u32 %v2561, 16
    %v3088 = vrot.slane %v3086, 1
    %v3089 = vor.u32 %v3084, %v3088
    %v3091 = vshll.u32 %v2721, 16
    %v3093 = vrot.slane %v3091, 1
    %v3094 = vsel %vm673, %v3089, %v3093
    %v3096 = vshrl.u32 %v2562, 16
    %v3098 = vshll.u32 %v2562, 16
    %v3100 = vrot.slane %v3098, 1
    %v3101 = vor.u32 %v3096, %v3100
    %v3103 = vshll.u32 %v2722, 16
    %v3105 = vrot.slane %v3103, 1
    %v3106 = vsel %vm673, %v3101, %v3105
    %3107 = vrot.lane.b32.xlu0 %v2734, 28
    %v3108 = vpop.permute.xlu0 %3107
    %3109 = vrot.lane.b32.xlu0 %v2746, 28
    %v3110 = vpop.permute.xlu0 %3109
    %3111 = vrot.lane.b32.xlu0 %v2758, 28
    %v3112 = vpop.permute.xlu0 %3111
    %3113 = vrot.lane.b32.xlu0 %v2770, 28
    %v3114 = vpop.permute.xlu0 %3113
    %3115 = vrot.lane.b32.xlu0 %v2782, 28
    %v3116 = vpop.permute.xlu0 %3115
    %3117 = vrot.lane.b32.xlu0 %v2794, 28
    %v3118 = vpop.permute.xlu0 %3117
    %3119 = vrot.lane.b32.xlu0 %v2806, 28
    %v3120 = vpop.permute.xlu0 %3119
    %3121 = vrot.lane.b32.xlu0 %v2818, 28
    %v3122 = vpop.permute.xlu0 %3121
    %3123 = vrot.lane.b32.xlu0 %v2830, 28
    %v3124 = vpop.permute.xlu0 %3123
    %3125 = vrot.lane.b32.xlu0 %v2842, 28
    %v3126 = vpop.permute.xlu0 %3125
    %3127 = vrot.lane.b32.xlu0 %v2854, 28
    %v3128 = vpop.permute.xlu0 %3127
    %3129 = vrot.lane.b32.xlu0 %v2866, 28
    %v3130 = vpop.permute.xlu0 %3129
    %3131 = vrot.lane.b32.xlu0 %v2878, 28
    %v3132 = vpop.permute.xlu0 %3131
    %3133 = vrot.lane.b32.xlu0 %v2890, 28
    %v3134 = vpop.permute.xlu0 %3133
    %3135 = vrot.lane.b32.xlu0 %v2902, 28
    %v3136 = vpop.permute.xlu0 %3135
    %3137 = vrot.lane.b32.xlu0 %v2914, 28
    %v3138 = vpop.permute.xlu0 %3137
    %3139 = vrot.lane.b32.xlu0 %v2926, 28
    %v3140 = vpop.permute.xlu0 %3139
    %3141 = vrot.lane.b32.xlu0 %v2938, 28
    %v3142 = vpop.permute.xlu0 %3141
    %3143 = vrot.lane.b32.xlu0 %v2950, 28
    %v3144 = vpop.permute.xlu0 %3143
    %3145 = vrot.lane.b32.xlu0 %v2962, 28
    %v3146 = vpop.permute.xlu0 %3145
    %3147 = vrot.lane.b32.xlu0 %v2974, 28
    %v3148 = vpop.permute.xlu0 %3147
    %3149 = vrot.lane.b32.xlu0 %v2986, 28
    %v3150 = vpop.permute.xlu0 %3149
    %3151 = vrot.lane.b32.xlu0 %v2998, 28
    %v3152 = vpop.permute.xlu0 %3151
    %3153 = vrot.lane.b32.xlu0 %v3010, 28
    %v3154 = vpop.permute.xlu0 %3153
    %3155 = vrot.lane.b32.xlu0 %v3022, 28
    %v3156 = vpop.permute.xlu0 %3155
    %3157 = vrot.lane.b32.xlu0 %v3034, 28
    %v3158 = vpop.permute.xlu0 %3157
    %3159 = vrot.lane.b32.xlu0 %v3046, 28
    %v3160 = vpop.permute.xlu0 %3159
    %3161 = vrot.lane.b32.xlu0 %v3058, 28
    %v3162 = vpop.permute.xlu0 %3161
    %3163 = vrot.lane.b32.xlu0 %v3070, 28
    %v3164 = vpop.permute.xlu0 %3163
    %3165 = vrot.lane.b32.xlu0 %v3082, 28
    %v3166 = vpop.permute.xlu0 %3165
    %3167 = vrot.lane.b32.xlu0 %v3094, 28
    %v3168 = vpop.permute.xlu0 %3167
    %3169 = vrot.lane.b32.xlu0 %v3106, 28
    %v3170 = vpop.permute.xlu0 %3169
    %v3203 = vunpack.c.l.b16 %v385
    %v3204 = vunpack.c.l.b16 %v386
    %v3205 = vunpack.c.l.b16 %v387
    %v3206 = vunpack.c.l.b16 %v388
    %v3207 = vunpack.c.l.b16 %v389
    %v3208 = vunpack.c.l.b16 %v390
    %v3209 = vunpack.c.l.b16 %v391
    %v3210 = vunpack.c.l.b16 %v392
    %v3211 = vunpack.c.l.b16 %v393
    %v3212 = vunpack.c.l.b16 %v394
    %v3213 = vunpack.c.l.b16 %v395
    %v3214 = vunpack.c.l.b16 %v396
    %v3215 = vunpack.c.l.b16 %v397
    %v3216 = vunpack.c.l.b16 %v398
    %v3217 = vunpack.c.l.b16 %v399
    %v3218 = vunpack.c.l.b16 %v400
    %v3219 = vunpack.c.l.b16 %v401
    %v3220 = vunpack.c.l.b16 %v402
    %v3221 = vunpack.c.l.b16 %v403
    %v3222 = vunpack.c.l.b16 %v404
    %v3223 = vunpack.c.l.b16 %v405
    %v3224 = vunpack.c.l.b16 %v406
    %v3225 = vunpack.c.l.b16 %v407
    %v3226 = vunpack.c.l.b16 %v408
    %v3227 = vunpack.c.l.b16 %v409
    %v3228 = vunpack.c.l.b16 %v410
    %v3229 = vunpack.c.l.b16 %v411
    %v3230 = vunpack.c.l.b16 %v412
    %v3231 = vunpack.c.l.b16 %v413
    %v3232 = vunpack.c.l.b16 %v414
    %v3233 = vunpack.c.l.b16 %v415
    %v3234 = vunpack.c.l.b16 %v416
    %v3235 = vpack.c.b16 %v2468, %v3203
    %v3236 = vpack.c.b16 %v2470, %v3204
    %v3237 = vpack.c.b16 %v2472, %v3205
    %v3238 = vpack.c.b16 %v2474, %v3206
    %v3239 = vpack.c.b16 %v2476, %v3207
    %v3240 = vpack.c.b16 %v2478, %v3208
    %v3241 = vpack.c.b16 %v2480, %v3209
    %v3242 = vpack.c.b16 %v2482, %v3210
    %v3243 = vpack.c.b16 %v2484, %v3211
    %v3244 = vpack.c.b16 %v2486, %v3212
    %v3245 = vpack.c.b16 %v2488, %v3213
    %v3246 = vpack.c.b16 %v2490, %v3214
    %v3247 = vpack.c.b16 %v2492, %v3215
    %v3248 = vpack.c.b16 %v2494, %v3216
    %v3249 = vpack.c.b16 %v2496, %v3217
    %v3250 = vpack.c.b16 %v2498, %v3218
    %v3251 = vpack.c.b16 %v2500, %v3219
    %v3252 = vpack.c.b16 %v2502, %v3220
    %v3253 = vpack.c.b16 %v2504, %v3221
    %v3254 = vpack.c.b16 %v2506, %v3222
    %v3255 = vpack.c.b16 %v2508, %v3223
    %v3256 = vpack.c.b16 %v2510, %v3224
    %v3257 = vpack.c.b16 %v2512, %v3225
    %v3258 = vpack.c.b16 %v2514, %v3226
    %v3259 = vpack.c.b16 %v2516, %v3227
    %v3260 = vpack.c.b16 %v2518, %v3228
    %v3261 = vpack.c.b16 %v2520, %v3229
    %v3262 = vpack.c.b16 %v2522, %v3230
    %v3263 = vpack.c.b16 %v2524, %v3231
    %v3264 = vpack.c.b16 %v2526, %v3232
    %v3265 = vpack.c.b16 %v2528, %v3233
    %v3266 = vpack.c.b16 %v2530, %v3234
    %v3267 = vrot.slane %v3235, 1
    %v3268 = vrot.slane %v2691, 1
    %v3269 = vsel %vm1218, %v3267, %v3268
    %v3270 = vrot.slane %v3236, 1
    %v3271 = vrot.slane %v2692, 1
    %v3272 = vsel %vm1218, %v3270, %v3271
    %v3273 = vrot.slane %v3237, 1
    %v3274 = vrot.slane %v2693, 1
    %v3275 = vsel %vm1218, %v3273, %v3274
    %v3276 = vrot.slane %v3238, 1
    %v3277 = vrot.slane %v2694, 1
    %v3278 = vsel %vm1218, %v3276, %v3277
    %v3279 = vrot.slane %v3239, 1
    %v3280 = vrot.slane %v2695, 1
    %v3281 = vsel %vm1218, %v3279, %v3280
    %v3282 = vrot.slane %v3240, 1
    %v3283 = vrot.slane %v2696, 1
    %v3284 = vsel %vm1218, %v3282, %v3283
    %v3285 = vrot.slane %v3241, 1
    %v3286 = vrot.slane %v2697, 1
    %v3287 = vsel %vm1218, %v3285, %v3286
    %v3288 = vrot.slane %v3242, 1
    %v3289 = vrot.slane %v2698, 1
    %v3290 = vsel %vm1218, %v3288, %v3289
    %v3291 = vrot.slane %v3243, 1
    %v3292 = vrot.slane %v2699, 1
    %v3293 = vsel %vm1218, %v3291, %v3292
    %v3294 = vrot.slane %v3244, 1
    %v3295 = vrot.slane %v2700, 1
    %v3296 = vsel %vm1218, %v3294, %v3295
    %v3297 = vrot.slane %v3245, 1
    %v3298 = vrot.slane %v2701, 1
    %v3299 = vsel %vm1218, %v3297, %v3298
    %v3300 = vrot.slane %v3246, 1
    %v3301 = vrot.slane %v2702, 1
    %v3302 = vsel %vm1218, %v3300, %v3301
    %v3303 = vrot.slane %v3247, 1
    %v3304 = vrot.slane %v2703, 1
    %v3305 = vsel %vm1218, %v3303, %v3304
    %v3306 = vrot.slane %v3248, 1
    %v3307 = vrot.slane %v2704, 1
    %v3308 = vsel %vm1218, %v3306, %v3307
    %v3309 = vrot.slane %v3249, 1
    %v3310 = vrot.slane %v2705, 1
    %v3311 = vsel %vm1218, %v3309, %v3310
    %v3312 = vrot.slane %v3250, 1
    %v3313 = vrot.slane %v2706, 1
    %v3314 = vsel %vm1218, %v3312, %v3313
    %v3315 = vrot.slane %v3251, 1
    %v3316 = vrot.slane %v2707, 1
    %v3317 = vsel %vm1218, %v3315, %v3316
    %v3318 = vrot.slane %v3252, 1
    %v3319 = vrot.slane %v2708, 1
    %v3320 = vsel %vm1218, %v3318, %v3319
    %v3321 = vrot.slane %v3253, 1
    %v3322 = vrot.slane %v2709, 1
    %v3323 = vsel %vm1218, %v3321, %v3322
    %v3324 = vrot.slane %v3254, 1
    %v3325 = vrot.slane %v2710, 1
    %v3326 = vsel %vm1218, %v3324, %v3325
    %v3327 = vrot.slane %v3255, 1
    %v3328 = vrot.slane %v2711, 1
    %v3329 = vsel %vm1218, %v3327, %v3328
    %v3330 = vrot.slane %v3256, 1
    %v3331 = vrot.slane %v2712, 1
    %v3332 = vsel %vm1218, %v3330, %v3331
    %v3333 = vrot.slane %v3257, 1
    %v3334 = vrot.slane %v2713, 1
    %v3335 = vsel %vm1218, %v3333, %v3334
    %v3336 = vrot.slane %v3258, 1
    %v3337 = vrot.slane %v2714, 1
    %v3338 = vsel %vm1218, %v3336, %v3337
    %v3339 = vrot.slane %v3259, 1
    %v3340 = vrot.slane %v2715, 1
    %v3341 = vsel %vm1218, %v3339, %v3340
    %v3342 = vrot.slane %v3260, 1
    %v3343 = vrot.slane %v2716, 1
    %v3344 = vsel %vm1218, %v3342, %v3343
    %v3345 = vrot.slane %v3261, 1
    %v3346 = vrot.slane %v2717, 1
    %v3347 = vsel %vm1218, %v3345, %v3346
    %v3348 = vrot.slane %v3262, 1
    %v3349 = vrot.slane %v2718, 1
    %v3350 = vsel %vm1218, %v3348, %v3349
    %v3351 = vrot.slane %v3263, 1
    %v3352 = vrot.slane %v2719, 1
    %v3353 = vsel %vm1218, %v3351, %v3352
    %v3354 = vrot.slane %v3264, 1
    %v3355 = vrot.slane %v2720, 1
    %v3356 = vsel %vm1218, %v3354, %v3355
    %v3357 = vrot.slane %v3265, 1
    %v3358 = vrot.slane %v2721, 1
    %v3359 = vsel %vm1218, %v3357, %v3358
    %v3360 = vrot.slane %v3266, 1
    %v3361 = vrot.slane %v2722, 1
    %v3362 = vsel %vm1218, %v3360, %v3361
    %3363 = vrot.lane.b32.xlu0 %v3269, 32
    %v3364 = vpop.permute.xlu0 %3363
    %3365 = vrot.lane.b32.xlu0 %v3272, 32
    %v3366 = vpop.permute.xlu0 %3365
    %3367 = vrot.lane.b32.xlu0 %v3275, 32
    %v3368 = vpop.permute.xlu0 %3367
    %3369 = vrot.lane.b32.xlu0 %v3278, 32
    %v3370 = vpop.permute.xlu0 %3369
    %3371 = vrot.lane.b32.xlu0 %v3281, 32
    %v3372 = vpop.permute.xlu0 %3371
    %3373 = vrot.lane.b32.xlu0 %v3284, 32
    %v3374 = vpop.permute.xlu0 %3373
    %3375 = vrot.lane.b32.xlu0 %v3287, 32
    %v3376 = vpop.permute.xlu0 %3375
    %3377 = vrot.lane.b32.xlu0 %v3290, 32
    %v3378 = vpop.permute.xlu0 %3377
    %3379 = vrot.lane.b32.xlu0 %v3293, 32
    %v3380 = vpop.permute.xlu0 %3379
    %3381 = vrot.lane.b32.xlu0 %v3296, 32
    %v3382 = vpop.permute.xlu0 %3381
    %3383 = vrot.lane.b32.xlu0 %v3299, 32
    %v3384 = vpop.permute.xlu0 %3383
    %3385 = vrot.lane.b32.xlu0 %v3302, 32
    %v3386 = vpop.permute.xlu0 %3385
    %3387 = vrot.lane.b32.xlu0 %v3305, 32
    %v3388 = vpop.permute.xlu0 %3387
    %3389 = vrot.lane.b32.xlu0 %v3308, 32
    %v3390 = vpop.permute.xlu0 %3389
    %3391 = vrot.lane.b32.xlu0 %v3311, 32
    %v3392 = vpop.permute.xlu0 %3391
    %3393 = vrot.lane.b32.xlu0 %v3314, 32
    %v3394 = vpop.permute.xlu0 %3393
    %3395 = vrot.lane.b32.xlu0 %v3317, 32
    %v3396 = vpop.permute.xlu0 %3395
    %3397 = vrot.lane.b32.xlu0 %v3320, 32
    %v3398 = vpop.permute.xlu0 %3397
    %3399 = vrot.lane.b32.xlu0 %v3323, 32
    %v3400 = vpop.permute.xlu0 %3399
    %3401 = vrot.lane.b32.xlu0 %v3326, 32
    %v3402 = vpop.permute.xlu0 %3401
    %3403 = vrot.lane.b32.xlu0 %v3329, 32
    %v3404 = vpop.permute.xlu0 %3403
    %3405 = vrot.lane.b32.xlu0 %v3332, 32
    %v3406 = vpop.permute.xlu0 %3405
    %3407 = vrot.lane.b32.xlu0 %v3335, 32
    %v3408 = vpop.permute.xlu0 %3407
    %3409 = vrot.lane.b32.xlu0 %v3338, 32
    %v3410 = vpop.permute.xlu0 %3409
    %3411 = vrot.lane.b32.xlu0 %v3341, 32
    %v3412 = vpop.permute.xlu0 %3411
    %3413 = vrot.lane.b32.xlu0 %v3344, 32
    %v3414 = vpop.permute.xlu0 %3413
    %3415 = vrot.lane.b32.xlu0 %v3347, 32
    %v3416 = vpop.permute.xlu0 %3415
    %3417 = vrot.lane.b32.xlu0 %v3350, 32
    %v3418 = vpop.permute.xlu0 %3417
    %3419 = vrot.lane.b32.xlu0 %v3353, 32
    %v3420 = vpop.permute.xlu0 %3419
    %3421 = vrot.lane.b32.xlu0 %v3356, 32
    %v3422 = vpop.permute.xlu0 %3421
    %3423 = vrot.lane.b32.xlu0 %v3359, 32
    %v3424 = vpop.permute.xlu0 %3423
    %3425 = vrot.lane.b32.xlu0 %v3362, 32
    %v3426 = vpop.permute.xlu0 %3425
    %vm3427 = vcmask 31744
    %v3429 = vsel %vm3427, %v545, %v1059
    %v3431 = vsel %vm3427, %v546, %v1061
    %v3433 = vsel %vm3427, %v547, %v1063
    %v3435 = vsel %vm3427, %v548, %v1065
    %v3437 = vsel %vm3427, %v549, %v1067
    %v3439 = vsel %vm3427, %v550, %v1069
    %v3441 = vsel %vm3427, %v551, %v1071
    %v3443 = vsel %vm3427, %v552, %v1073
    %v3445 = vsel %vm3427, %v553, %v1075
    %v3447 = vsel %vm3427, %v554, %v1077
    %v3449 = vsel %vm3427, %v555, %v1079
    %v3451 = vsel %vm3427, %v556, %v1081
    %v3453 = vsel %vm3427, %v557, %v1083
    %v3455 = vsel %vm3427, %v558, %v1085
    %v3457 = vsel %vm3427, %v559, %v1087
    %v3459 = vsel %vm3427, %v560, %v1089
    %v3461 = vsel %vm3427, %v561, %v1091
    %v3463 = vsel %vm3427, %v562, %v1093
    %v3465 = vsel %vm3427, %v563, %v1095
    %v3467 = vsel %vm3427, %v564, %v1097
    %v3469 = vsel %vm3427, %v565, %v1099
    %v3471 = vsel %vm3427, %v566, %v1101
    %v3473 = vsel %vm3427, %v567, %v1103
    %v3475 = vsel %vm3427, %v568, %v1105
    %v3477 = vsel %vm3427, %v569, %v1107
    %v3479 = vsel %vm3427, %v570, %v1109
    %v3481 = vsel %vm3427, %v571, %v1111
    %v3483 = vsel %vm3427, %v572, %v1113
    %v3485 = vsel %vm3427, %v573, %v1115
    %v3487 = vsel %vm3427, %v574, %v1117
    %v3489 = vsel %vm3427, %v575, %v1119
    %v3491 = vsel %vm3427, %v576, %v1121
    %vm3492 = vcmask 64512
    %v3494 = vsel %vm3492, %v3429, %v1316
    %v3496 = vsel %vm3492, %v3431, %v1318
    %v3498 = vsel %vm3492, %v3433, %v1320
    %v3500 = vsel %vm3492, %v3435, %v1322
    %v3502 = vsel %vm3492, %v3437, %v1324
    %v3504 = vsel %vm3492, %v3439, %v1326
    %v3506 = vsel %vm3492, %v3441, %v1328
    %v3508 = vsel %vm3492, %v3443, %v1330
    %v3510 = vsel %vm3492, %v3445, %v1332
    %v3512 = vsel %vm3492, %v3447, %v1334
    %v3514 = vsel %vm3492, %v3449, %v1336
    %v3516 = vsel %vm3492, %v3451, %v1338
    %v3518 = vsel %vm3492, %v3453, %v1340
    %v3520 = vsel %vm3492, %v3455, %v1342
    %v3522 = vsel %vm3492, %v3457, %v1344
    %v3524 = vsel %vm3492, %v3459, %v1346
    %v3526 = vsel %vm3492, %v3461, %v1348
    %v3528 = vsel %vm3492, %v3463, %v1350
    %v3530 = vsel %vm3492, %v3465, %v1352
    %v3532 = vsel %vm3492, %v3467, %v1354
    %v3534 = vsel %vm3492, %v3469, %v1356
    %v3536 = vsel %vm3492, %v3471, %v1358
    %v3538 = vsel %vm3492, %v3473, %v1360
    %v3540 = vsel %vm3492, %v3475, %v1362
    %v3542 = vsel %vm3492, %v3477, %v1364
    %v3544 = vsel %vm3492, %v3479, %v1366
    %v3546 = vsel %vm3492, %v3481, %v1368
    %v3548 = vsel %vm3492, %v3483, %v1370
    %v3550 = vsel %vm3492, %v3485, %v1372
    %v3552 = vsel %vm3492, %v3487, %v1374
    %v3554 = vsel %vm3492, %v3489, %v1376
    %v3556 = vsel %vm3492, %v3491, %v1378
    %vm3557 = vcmask 97280
    %v3559 = vsel %vm3557, %v3494, %v1540
    %v3561 = vsel %vm3557, %v3496, %v1542
    %v3563 = vsel %vm3557, %v3498, %v1544
    %v3565 = vsel %vm3557, %v3500, %v1546
    %v3567 = vsel %vm3557, %v3502, %v1548
    %v3569 = vsel %vm3557, %v3504, %v1550
    %v3571 = vsel %vm3557, %v3506, %v1552
    %v3573 = vsel %vm3557, %v3508, %v1554
    %v3575 = vsel %vm3557, %v3510, %v1556
    %v3577 = vsel %vm3557, %v3512, %v1558
    %v3579 = vsel %vm3557, %v3514, %v1560
    %v3581 = vsel %vm3557, %v3516, %v1562
    %v3583 = vsel %vm3557, %v3518, %v1564
    %v3585 = vsel %vm3557, %v3520, %v1566
    %v3587 = vsel %vm3557, %v3522, %v1568
    %v3589 = vsel %vm3557, %v3524, %v1570
    %v3591 = vsel %vm3557, %v3526, %v1572
    %v3593 = vsel %vm3557, %v3528, %v1574
    %v3595 = vsel %vm3557, %v3530, %v1576
    %v3597 = vsel %vm3557, %v3532, %v1578
    %v3599 = vsel %vm3557, %v3534, %v1580
    %v3601 = vsel %vm3557, %v3536, %v1582
    %v3603 = vsel %vm3557, %v3538, %v1584
    %v3605 = vsel %vm3557, %v3540, %v1586
    %v3607 = vsel %vm3557, %v3542, %v1588
    %v3609 = vsel %vm3557, %v3544, %v1590
    %v3611 = vsel %vm3557, %v3546, %v1592
    %v3613 = vsel %vm3557, %v3548, %v1594
    %v3615 = vsel %vm3557, %v3550, %v1596
    %v3617 = vsel %vm3557, %v3552, %v1598
    %v3619 = vsel %vm3557, %v3554, %v1600
    %v3621 = vsel %vm3557, %v3556, %v1602
    %vm3622 = vcmask 130048
    %v3624 = vsel %vm3622, %v3559, %v2084
    %v3626 = vsel %vm3622, %v3561, %v2086
    %v3628 = vsel %vm3622, %v3563, %v2088
    %v3630 = vsel %vm3622, %v3565, %v2090
    %v3632 = vsel %vm3622, %v3567, %v2092
    %v3634 = vsel %vm3622, %v3569, %v2094
    %v3636 = vsel %vm3622, %v3571, %v2096
    %v3638 = vsel %vm3622, %v3573, %v2098
    %v3640 = vsel %vm3622, %v3575, %v2100
    %v3642 = vsel %vm3622, %v3577, %v2102
    %v3644 = vsel %vm3622, %v3579, %v2104
    %v3646 = vsel %vm3622, %v3581, %v2106
    %v3648 = vsel %vm3622, %v3583, %v2108
    %v3650 = vsel %vm3622, %v3585, %v2110
    %v3652 = vsel %vm3622, %v3587, %v2112
    %v3654 = vsel %vm3622, %v3589, %v2114
    %v3656 = vsel %vm3622, %v3591, %v2116
    %v3658 = vsel %vm3622, %v3593, %v2118
    %v3660 = vsel %vm3622, %v3595, %v2120
    %v3662 = vsel %vm3622, %v3597, %v2122
    %v3664 = vsel %vm3622, %v3599, %v2124
    %v3666 = vsel %vm3622, %v3601, %v2126
    %v3668 = vsel %vm3622, %v3603, %v2128
    %v3670 = vsel %vm3622, %v3605, %v2130
    %v3672 = vsel %vm3622, %v3607, %v2132
    %v3674 = vsel %vm3622, %v3609, %v2134
    %v3676 = vsel %vm3622, %v3611, %v2136
    %v3678 = vsel %vm3622, %v3613, %v2138
    %v3680 = vsel %vm3622, %v3615, %v2140
    %v3682 = vsel %vm3622, %v3617, %v2142
    %v3684 = vsel %vm3622, %v3619, %v2144
    %v3686 = vsel %vm3622, %v3621, %v2146
    %vm3687 = vcmask 162816
    %v3689 = vsel %vm3687, %v3624, %v2340
    %v3691 = vsel %vm3687, %v3626, %v2342
    %v3693 = vsel %vm3687, %v3628, %v2344
    %v3695 = vsel %vm3687, %v3630, %v2346
    %v3697 = vsel %vm3687, %v3632, %v2348
    %v3699 = vsel %vm3687, %v3634, %v2350
    %v3701 = vsel %vm3687, %v3636, %v2352
    %v3703 = vsel %vm3687, %v3638, %v2354
    %v3705 = vsel %vm3687, %v3640, %v2356
    %v3707 = vsel %vm3687, %v3642, %v2358
    %v3709 = vsel %vm3687, %v3644, %v2360
    %v3711 = vsel %vm3687, %v3646, %v2362
    %v3713 = vsel %vm3687, %v3648, %v2364
    %v3715 = vsel %vm3687, %v3650, %v2366
    %v3717 = vsel %vm3687, %v3652, %v2368
    %v3719 = vsel %vm3687, %v3654, %v2370
    %v3721 = vsel %vm3687, %v3656, %v2372
    %v3723 = vsel %vm3687, %v3658, %v2374
    %v3725 = vsel %vm3687, %v3660, %v2376
    %v3727 = vsel %vm3687, %v3662, %v2378
    %v3729 = vsel %vm3687, %v3664, %v2380
    %v3731 = vsel %vm3687, %v3666, %v2382
    %v3733 = vsel %vm3687, %v3668, %v2384
    %v3735 = vsel %vm3687, %v3670, %v2386
    %v3737 = vsel %vm3687, %v3672, %v2388
    %v3739 = vsel %vm3687, %v3674, %v2390
    %v3741 = vsel %vm3687, %v3676, %v2392
    %v3743 = vsel %vm3687, %v3678, %v2394
    %v3745 = vsel %vm3687, %v3680, %v2396
    %v3747 = vsel %vm3687, %v3682, %v2398
    %v3749 = vsel %vm3687, %v3684, %v2400
    %v3751 = vsel %vm3687, %v3686, %v2402
    %vm3752 = vcmask 195584
    %v3754 = vsel %vm3752, %v3689, %v2564
    %v3756 = vsel %vm3752, %v3691, %v2566
    %v3758 = vsel %vm3752, %v3693, %v2568
    %v3760 = vsel %vm3752, %v3695, %v2570
    %v3762 = vsel %vm3752, %v3697, %v2572
    %v3764 = vsel %vm3752, %v3699, %v2574
    %v3766 = vsel %vm3752, %v3701, %v2576
    %v3768 = vsel %vm3752, %v3703, %v2578
    %v3770 = vsel %vm3752, %v3705, %v2580
    %v3772 = vsel %vm3752, %v3707, %v2582
    %v3774 = vsel %vm3752, %v3709, %v2584
    %v3776 = vsel %vm3752, %v3711, %v2586
    %v3778 = vsel %vm3752, %v3713, %v2588
    %v3780 = vsel %vm3752, %v3715, %v2590
    %v3782 = vsel %vm3752, %v3717, %v2592
    %v3784 = vsel %vm3752, %v3719, %v2594
    %v3786 = vsel %vm3752, %v3721, %v2596
    %v3788 = vsel %vm3752, %v3723, %v2598
    %v3790 = vsel %vm3752, %v3725, %v2600
    %v3792 = vsel %vm3752, %v3727, %v2602
    %v3794 = vsel %vm3752, %v3729, %v2604
    %v3796 = vsel %vm3752, %v3731, %v2606
    %v3798 = vsel %vm3752, %v3733, %v2608
    %v3800 = vsel %vm3752, %v3735, %v2610
    %v3802 = vsel %vm3752, %v3737, %v2612
    %v3804 = vsel %vm3752, %v3739, %v2614
    %v3806 = vsel %vm3752, %v3741, %v2616
    %v3808 = vsel %vm3752, %v3743, %v2618
    %v3810 = vsel %vm3752, %v3745, %v2620
    %v3812 = vsel %vm3752, %v3747, %v2622
    %v3814 = vsel %vm3752, %v3749, %v2624
    %v3816 = vsel %vm3752, %v3751, %v2626
    %vm3817 = vcmask 228352
    %v3819 = vsel %vm3817, %v3754, %v3108
    %v3821 = vsel %vm3817, %v3756, %v3110
    %v3823 = vsel %vm3817, %v3758, %v3112
    %v3825 = vsel %vm3817, %v3760, %v3114
    %v3827 = vsel %vm3817, %v3762, %v3116
    %v3829 = vsel %vm3817, %v3764, %v3118
    %v3831 = vsel %vm3817, %v3766, %v3120
    %v3833 = vsel %vm3817, %v3768, %v3122
    %v3835 = vsel %vm3817, %v3770, %v3124
    %v3837 = vsel %vm3817, %v3772, %v3126
    %v3839 = vsel %vm3817, %v3774, %v3128
    %v3841 = vsel %vm3817, %v3776, %v3130
    %v3843 = vsel %vm3817, %v3778, %v3132
    %v3845 = vsel %vm3817, %v3780, %v3134
    %v3847 = vsel %vm3817, %v3782, %v3136
    %v3849 = vsel %vm3817, %v3784, %v3138
    %v3851 = vsel %vm3817, %v3786, %v3140
    %v3853 = vsel %vm3817, %v3788, %v3142
    %v3855 = vsel %vm3817, %v3790, %v3144
    %v3857 = vsel %vm3817, %v3792, %v3146
    %v3859 = vsel %vm3817, %v3794, %v3148
    %v3861 = vsel %vm3817, %v3796, %v3150
    %v3863 = vsel %vm3817, %v3798, %v3152
    %v3865 = vsel %vm3817, %v3800, %v3154
    %v3867 = vsel %vm3817, %v3802, %v3156
    %v3869 = vsel %vm3817, %v3804, %v3158
    %v3871 = vsel %vm3817, %v3806, %v3160
    %v3873 = vsel %vm3817, %v3808, %v3162
    %v3875 = vsel %vm3817, %v3810, %v3164
    %v3877 = vsel %vm3817, %v3812, %v3166
    %v3879 = vsel %vm3817, %v3814, %v3168
    %v3881 = vsel %vm3817, %v3816, %v3170
    %vm3882 = vcmask 261120
    %v3884 = vsel %vm3882, %v3819, %v3364
    %v3886 = vsel %vm3882, %v3821, %v3366
    %v3888 = vsel %vm3882, %v3823, %v3368
    %v3890 = vsel %vm3882, %v3825, %v3370
    %v3892 = vsel %vm3882, %v3827, %v3372
    %v3894 = vsel %vm3882, %v3829, %v3374
    %v3896 = vsel %vm3882, %v3831, %v3376
    %v3898 = vsel %vm3882, %v3833, %v3378
    %v3900 = vsel %vm3882, %v3835, %v3380
    %v3902 = vsel %vm3882, %v3837, %v3382
    %v3904 = vsel %vm3882, %v3839, %v3384
    %v3906 = vsel %vm3882, %v3841, %v3386
    %v3908 = vsel %vm3882, %v3843, %v3388
    %v3910 = vsel %vm3882, %v3845, %v3390
    %v3912 = vsel %vm3882, %v3847, %v3392
    %v3914 = vsel %vm3882, %v3849, %v3394
    %v3916 = vsel %vm3882, %v3851, %v3396
    %v3918 = vsel %vm3882, %v3853, %v3398
    %v3920 = vsel %vm3882, %v3855, %v3400
    %v3922 = vsel %vm3882, %v3857, %v3402
    %v3924 = vsel %vm3882, %v3859, %v3404
    %v3926 = vsel %vm3882, %v3861, %v3406
    %v3928 = vsel %vm3882, %v3863, %v3408
    %v3930 = vsel %vm3882, %v3865, %v3410
    %v3932 = vsel %vm3882, %v3867, %v3412
    %v3934 = vsel %vm3882, %v3869, %v3414
    %v3936 = vsel %vm3882, %v3871, %v3416
    %v3938 = vsel %vm3882, %v3873, %v3418
    %v3940 = vsel %vm3882, %v3875, %v3420
    %v3942 = vsel %vm3882, %v3877, %v3422
    %v3944 = vsel %vm3882, %v3879, %v3424
    %v3946 = vsel %vm3882, %v3881, %v3426
    %v3947 = vld [vmem:[%s2] sm:$0xf]
    %v3948 = vld [vmem:[%s2 + $0x4] sm:$0xf]
    %v3949 = vld [vmem:[%s2 + $0x8] sm:$0xf]
    %v3950 = vld [vmem:[%s2 + $0xc] sm:$0xf]
    %v3951 = vld [vmem:[%s2 + $0x10] sm:$0x3]
    %v3957 = vunpack.c.l.b16 %v3947
    %v3958 = vunpack.c.l.b16 %v3948
    %v3959 = vunpack.c.l.b16 %v3949
    %v3960 = vunpack.c.l.b16 %v3950
    %v3961 = vunpack.c.l.b16 %v3951
    %v3962 = vpack.c.b16 %v3958, %v3957
    %v3963 = vpack.c.b16 %v3960, %v3959
    %v3964 = vpack.c.b16 %v3961, %v3961
    %vm3967 = vcmask 293888
    %v3968 = vsel %vm3967, %v3884, 0
    %v3970 = vsel %vm3967, %v3886, 0
    %v3972 = vsel %vm3967, %v3888, 0
    %v3974 = vsel %vm3967, %v3890, 0
    %v3976 = vsel %vm3967, %v3892, 0
    %v3978 = vsel %vm3967, %v3894, 0
    %v3980 = vsel %vm3967, %v3896, 0
    %v3982 = vsel %vm3967, %v3898, 0
    %v3984 = vsel %vm3967, %v3900, 0
    %v3986 = vsel %vm3967, %v3902, 0
    %v3988 = vsel %vm3967, %v3904, 0
    %v3990 = vsel %vm3967, %v3906, 0
    %v3992 = vsel %vm3967, %v3908, 0
    %v3994 = vsel %vm3967, %v3910, 0
    %v3996 = vsel %vm3967, %v3912, 0
    %v3998 = vsel %vm3967, %v3914, 0
    %v4000 = vsel %vm3967, %v3916, 0
    %v4002 = vsel %vm3967, %v3918, 0
    %v4004 = vsel %vm3967, %v3920, 0
    %v4006 = vsel %vm3967, %v3922, 0
    %v4008 = vsel %vm3967, %v3924, 0
    %v4010 = vsel %vm3967, %v3926, 0
    %v4012 = vsel %vm3967, %v3928, 0
    %v4014 = vsel %vm3967, %v3930, 0
    %v4016 = vsel %vm3967, %v3932, 0
    %v4018 = vsel %vm3967, %v3934, 0
    %v4020 = vsel %vm3967, %v3936, 0
    %v4022 = vsel %vm3967, %v3938, 0
    %v4024 = vsel %vm3967, %v3940, 0
    %v4026 = vsel %vm3967, %v3942, 0
    %v4028 = vsel %vm3967, %v3944, 0
    %v4030 = vsel %vm3967, %v3946, 0
    %vm4032 = vcmask 1041408
    %v4034 = vsel %vm4032, %v3964, 0
    %4036 = vmatpush.bf16.msra.mxu0 0
    %4037 = vmatpush.bf16.msra.mxu0 0
    %4038 = vmatpush.bf16.msra.mxu0 0
    %4039 = vmatpush.bf16.msra.mxu0 0
    %4040 = vmatpush.bf16.msra.mxu0 0
    %4041 = vmatpush.bf16.msra.mxu0 %v4034
    %4042 = vmatpush.bf16.msra.mxu0 %v3963
    %4043 = vmatpush.bf16.msra.mxu0 %v3962
    %4044 = vmatmul.bf16.gmra.mxu0 %v3968
    %v4045 = vpop.f32.mrf.mxu0
    %v4046 = vadd.f32 0.0, %v4045
    %v4047 = vpop.f32.mrf.mxu0
    %v4048 = vadd.f32 0.0, %v4047
    %4049 = vmatmul.bf16.gmra.mxu0 %v3970
    %v4050 = vpop.f32.mrf.mxu0
    %v4051 = vadd.f32 0.0, %v4050
    %v4052 = vpop.f32.mrf.mxu0
    %v4053 = vadd.f32 0.0, %v4052
    %4054 = vmatmul.bf16.gmra.mxu0 %v3972
    %v4055 = vpop.f32.mrf.mxu0
    %v4056 = vadd.f32 0.0, %v4055
    %v4057 = vpop.f32.mrf.mxu0
    %v4058 = vadd.f32 0.0, %v4057
    %4059 = vmatmul.bf16.gmra.mxu0 %v3974
    %v4060 = vpop.f32.mrf.mxu0
    %v4061 = vadd.f32 0.0, %v4060
    %v4062 = vpop.f32.mrf.mxu0
    %v4063 = vadd.f32 0.0, %v4062
    %4064 = vmatmul.bf16.gmra.mxu0 %v3976
    %v4065 = vpop.f32.mrf.mxu0
    %v4066 = vadd.f32 0.0, %v4065
    %v4067 = vpop.f32.mrf.mxu0
    %v4068 = vadd.f32 0.0, %v4067
    %4069 = vmatmul.bf16.gmra.mxu0 %v3978
    %v4070 = vpop.f32.mrf.mxu0
    %v4071 = vadd.f32 0.0, %v4070
    %v4072 = vpop.f32.mrf.mxu0
    %v4073 = vadd.f32 0.0, %v4072
    %4074 = vmatmul.bf16.gmra.mxu0 %v3980
    %v4075 = vpop.f32.mrf.mxu0
    %v4076 = vadd.f32 0.0, %v4075
    %v4077 = vpop.f32.mrf.mxu0
    %v4078 = vadd.f32 0.0, %v4077
    %4079 = vmatmul.bf16.gmra.mxu0 %v3982
    %v4080 = vpop.f32.mrf.mxu0
    %v4081 = vadd.f32 0.0, %v4080
    %v4082 = vpop.f32.mrf.mxu0
    %v4083 = vadd.f32 0.0, %v4082
    %4084 = vmatmul.bf16.gmra.mxu0 %v3984
    %v4085 = vpop.f32.mrf.mxu0
    %v4086 = vadd.f32 0.0, %v4085
    %v4087 = vpop.f32.mrf.mxu0
    %v4088 = vadd.f32 0.0, %v4087
    %4089 = vmatmul.bf16.gmra.mxu0 %v3986
    %v4090 = vpop.f32.mrf.mxu0
    %v4091 = vadd.f32 0.0, %v4090
    %v4092 = vpop.f32.mrf.mxu0
    %v4093 = vadd.f32 0.0, %v4092
    %4094 = vmatmul.bf16.gmra.mxu0 %v3988
    %v4095 = vpop.f32.mrf.mxu0
    %v4096 = vadd.f32 0.0, %v4095
    %v4097 = vpop.f32.mrf.mxu0
    %v4098 = vadd.f32 0.0, %v4097
    %4099 = vmatmul.bf16.gmra.mxu0 %v3990
    %v4100 = vpop.f32.mrf.mxu0
    %v4101 = vadd.f32 0.0, %v4100
    %v4102 = vpop.f32.mrf.mxu0
    %v4103 = vadd.f32 0.0, %v4102
    %4104 = vmatmul.bf16.gmra.mxu0 %v3992
    %v4105 = vpop.f32.mrf.mxu0
    %v4106 = vadd.f32 0.0, %v4105
    %v4107 = vpop.f32.mrf.mxu0
    %v4108 = vadd.f32 0.0, %v4107
    %4109 = vmatmul.bf16.gmra.mxu0 %v3994
    %v4110 = vpop.f32.mrf.mxu0
    %v4111 = vadd.f32 0.0, %v4110
    %v4112 = vpop.f32.mrf.mxu0
    %v4113 = vadd.f32 0.0, %v4112
    %4114 = vmatmul.bf16.gmra.mxu0 %v3996
    %v4115 = vpop.f32.mrf.mxu0
    %v4116 = vadd.f32 0.0, %v4115
    %v4117 = vpop.f32.mrf.mxu0
    %v4118 = vadd.f32 0.0, %v4117
    %4119 = vmatmul.bf16.gmra.mxu0 %v3998
    %v4120 = vpop.f32.mrf.mxu0
    %v4121 = vadd.f32 0.0, %v4120
    %v4122 = vpop.f32.mrf.mxu0
    %v4123 = vadd.f32 0.0, %v4122
    %4124 = vmatmul.bf16.gmra.mxu0 %v4000
    %v4125 = vpop.f32.mrf.mxu0
    %v4126 = vadd.f32 0.0, %v4125
    %v4127 = vpop.f32.mrf.mxu0
    %v4128 = vadd.f32 0.0, %v4127
    %4129 = vmatmul.bf16.gmra.mxu0 %v4002
    %v4130 = vpop.f32.mrf.mxu0
    %v4131 = vadd.f32 0.0, %v4130
    %v4132 = vpop.f32.mrf.mxu0
    %v4133 = vadd.f32 0.0, %v4132
    %4134 = vmatmul.bf16.gmra.mxu0 %v4004
    %v4135 = vpop.f32.mrf.mxu0
    %v4136 = vadd.f32 0.0, %v4135
    %v4137 = vpop.f32.mrf.mxu0
    %v4138 = vadd.f32 0.0, %v4137
    %4139 = vmatmul.bf16.gmra.mxu0 %v4006
    %v4140 = vpop.f32.mrf.mxu0
    %v4141 = vadd.f32 0.0, %v4140
    %v4142 = vpop.f32.mrf.mxu0
    %v4143 = vadd.f32 0.0, %v4142
    %4144 = vmatmul.bf16.gmra.mxu0 %v4008
    %v4145 = vpop.f32.mrf.mxu0
    %v4146 = vadd.f32 0.0, %v4145
    %v4147 = vpop.f32.mrf.mxu0
    %v4148 = vadd.f32 0.0, %v4147
    %4149 = vmatmul.bf16.gmra.mxu0 %v4010
    %v4150 = vpop.f32.mrf.mxu0
    %v4151 = vadd.f32 0.0, %v4150
    %v4152 = vpop.f32.mrf.mxu0
    %v4153 = vadd.f32 0.0, %v4152
    %4154 = vmatmul.bf16.gmra.mxu0 %v4012
    %v4155 = vpop.f32.mrf.mxu0
    %v4156 = vadd.f32 0.0, %v4155
    %v4157 = vpop.f32.mrf.mxu0
    %v4158 = vadd.f32 0.0, %v4157
    %4159 = vmatmul.bf16.gmra.mxu0 %v4014
    %v4160 = vpop.f32.mrf.mxu0
    %v4161 = vadd.f32 0.0, %v4160
    %v4162 = vpop.f32.mrf.mxu0
    %v4163 = vadd.f32 0.0, %v4162
    %4164 = vmatmul.bf16.gmra.mxu0 %v4016
    %v4165 = vpop.f32.mrf.mxu0
    %v4166 = vadd.f32 0.0, %v4165
    %v4167 = vpop.f32.mrf.mxu0
    %v4168 = vadd.f32 0.0, %v4167
    %4169 = vmatmul.bf16.gmra.mxu0 %v4018
    %v4170 = vpop.f32.mrf.mxu0
    %v4171 = vadd.f32 0.0, %v4170
    %v4172 = vpop.f32.mrf.mxu0
    %v4173 = vadd.f32 0.0, %v4172
    %4174 = vmatmul.bf16.gmra.mxu0 %v4020
    %v4175 = vpop.f32.mrf.mxu0
    %v4176 = vadd.f32 0.0, %v4175
    %v4177 = vpop.f32.mrf.mxu0
    %v4178 = vadd.f32 0.0, %v4177
    %4179 = vmatmul.bf16.gmra.mxu0 %v4022
    %v4180 = vpop.f32.mrf.mxu0
    %v4181 = vadd.f32 0.0, %v4180
    %v4182 = vpop.f32.mrf.mxu0
    %v4183 = vadd.f32 0.0, %v4182
    %4184 = vmatmul.bf16.gmra.mxu0 %v4024
    %v4185 = vpop.f32.mrf.mxu0
    %v4186 = vadd.f32 0.0, %v4185
    %v4187 = vpop.f32.mrf.mxu0
    %v4188 = vadd.f32 0.0, %v4187
    %4189 = vmatmul.bf16.gmra.mxu0 %v4026
    %v4190 = vpop.f32.mrf.mxu0
    %v4191 = vadd.f32 0.0, %v4190
    %v4192 = vpop.f32.mrf.mxu0
    %v4193 = vadd.f32 0.0, %v4192
    %4194 = vmatmul.bf16.gmra.mxu0 %v4028
    %v4195 = vpop.f32.mrf.mxu0
    %v4196 = vadd.f32 0.0, %v4195
    %v4197 = vpop.f32.mrf.mxu0
    %v4198 = vadd.f32 0.0, %v4197
    %4199 = vmatmul.bf16.gmra.mxu0 %v4030
    %v4200 = vpop.f32.mrf.mxu0
    %v4201 = vadd.f32 0.0, %v4200
    %v4202 = vpop.f32.mrf.mxu0
    %v4203 = vadd.f32 0.0, %v4202
    %4204 = vdwg.mxu0
    %v4205 = vld [vmem:[%s4] sm:$0x1]
    %v4207 = vperm.slane %v4205, 0
    %v4209 = vmul.f32 %v4046, %v4207
    %v4210 = vmul.f32 %v4048, %v4207
    %v4211 = vmul.f32 %v4051, %v4207
    %v4212 = vmul.f32 %v4053, %v4207
    %v4213 = vmul.f32 %v4056, %v4207
    %v4214 = vmul.f32 %v4058, %v4207
    %v4215 = vmul.f32 %v4061, %v4207
    %v4216 = vmul.f32 %v4063, %v4207
    %v4217 = vmul.f32 %v4066, %v4207
    %v4218 = vmul.f32 %v4068, %v4207
    %v4219 = vmul.f32 %v4071, %v4207
    %v4220 = vmul.f32 %v4073, %v4207
    %v4221 = vmul.f32 %v4076, %v4207
    %v4222 = vmul.f32 %v4078, %v4207
    %v4223 = vmul.f32 %v4081, %v4207
    %v4224 = vmul.f32 %v4083, %v4207
    %v4225 = vmul.f32 %v4086, %v4207
    %v4226 = vmul.f32 %v4088, %v4207
    %v4227 = vmul.f32 %v4091, %v4207
    %v4228 = vmul.f32 %v4093, %v4207
    %v4229 = vmul.f32 %v4096, %v4207
    %v4230 = vmul.f32 %v4098, %v4207
    %v4231 = vmul.f32 %v4101, %v4207
    %v4232 = vmul.f32 %v4103, %v4207
    %v4233 = vmul.f32 %v4106, %v4207
    %v4234 = vmul.f32 %v4108, %v4207
    %v4235 = vmul.f32 %v4111, %v4207
    %v4236 = vmul.f32 %v4113, %v4207
    %v4237 = vmul.f32 %v4116, %v4207
    %v4238 = vmul.f32 %v4118, %v4207
    %v4239 = vmul.f32 %v4121, %v4207
    %v4240 = vmul.f32 %v4123, %v4207
    %v4241 = vmul.f32 %v4126, %v4207
    %v4242 = vmul.f32 %v4128, %v4207
    %v4243 = vmul.f32 %v4131, %v4207
    %v4244 = vmul.f32 %v4133, %v4207
    %v4245 = vmul.f32 %v4136, %v4207
    %v4246 = vmul.f32 %v4138, %v4207
    %v4247 = vmul.f32 %v4141, %v4207
    %v4248 = vmul.f32 %v4143, %v4207
    %v4249 = vmul.f32 %v4146, %v4207
    %v4250 = vmul.f32 %v4148, %v4207
    %v4251 = vmul.f32 %v4151, %v4207
    %v4252 = vmul.f32 %v4153, %v4207
    %v4253 = vmul.f32 %v4156, %v4207
    %v4254 = vmul.f32 %v4158, %v4207
    %v4255 = vmul.f32 %v4161, %v4207
    %v4256 = vmul.f32 %v4163, %v4207
    %v4257 = vmul.f32 %v4166, %v4207
    %v4258 = vmul.f32 %v4168, %v4207
    %v4259 = vmul.f32 %v4171, %v4207
    %v4260 = vmul.f32 %v4173, %v4207
    %v4261 = vmul.f32 %v4176, %v4207
    %v4262 = vmul.f32 %v4178, %v4207
    %v4263 = vmul.f32 %v4181, %v4207
    %v4264 = vmul.f32 %v4183, %v4207
    %v4265 = vmul.f32 %v4186, %v4207
    %v4266 = vmul.f32 %v4188, %v4207
    %v4267 = vmul.f32 %v4191, %v4207
    %v4268 = vmul.f32 %v4193, %v4207
    %v4269 = vmul.f32 %v4196, %v4207
    %v4270 = vmul.f32 %v4198, %v4207
    %v4271 = vmul.f32 %v4201, %v4207
    %v4272 = vmul.f32 %v4203, %v4207
    %v4273 = vld [vmem:[%s5] sm:$0x1]
    %v4275 = vperm.slane %v4273, 0
    %v4277 = vadd.f32 %v4209, %v4275
    %v4278 = vadd.f32 %v4210, %v4275
    %v4279 = vadd.f32 %v4211, %v4275
    %v4280 = vadd.f32 %v4212, %v4275
    %v4281 = vadd.f32 %v4213, %v4275
    %v4282 = vadd.f32 %v4214, %v4275
    %v4283 = vadd.f32 %v4215, %v4275
    %v4284 = vadd.f32 %v4216, %v4275
    %v4285 = vadd.f32 %v4217, %v4275
    %v4286 = vadd.f32 %v4218, %v4275
    %v4287 = vadd.f32 %v4219, %v4275
    %v4288 = vadd.f32 %v4220, %v4275
    %v4289 = vadd.f32 %v4221, %v4275
    %v4290 = vadd.f32 %v4222, %v4275
    %v4291 = vadd.f32 %v4223, %v4275
    %v4292 = vadd.f32 %v4224, %v4275
    %v4293 = vadd.f32 %v4225, %v4275
    %v4294 = vadd.f32 %v4226, %v4275
    %v4295 = vadd.f32 %v4227, %v4275
    %v4296 = vadd.f32 %v4228, %v4275
    %v4297 = vadd.f32 %v4229, %v4275
    %v4298 = vadd.f32 %v4230, %v4275
    %v4299 = vadd.f32 %v4231, %v4275
    %v4300 = vadd.f32 %v4232, %v4275
    %v4301 = vadd.f32 %v4233, %v4275
    %v4302 = vadd.f32 %v4234, %v4275
    %v4303 = vadd.f32 %v4235, %v4275
    %v4304 = vadd.f32 %v4236, %v4275
    %v4305 = vadd.f32 %v4237, %v4275
    %v4306 = vadd.f32 %v4238, %v4275
    %v4307 = vadd.f32 %v4239, %v4275
    %v4308 = vadd.f32 %v4240, %v4275
    %v4309 = vadd.f32 %v4241, %v4275
    %v4310 = vadd.f32 %v4242, %v4275
    %v4311 = vadd.f32 %v4243, %v4275
    %v4312 = vadd.f32 %v4244, %v4275
    %v4313 = vadd.f32 %v4245, %v4275
    %v4314 = vadd.f32 %v4246, %v4275
    %v4315 = vadd.f32 %v4247, %v4275
    %v4316 = vadd.f32 %v4248, %v4275
    %v4317 = vadd.f32 %v4249, %v4275
    %v4318 = vadd.f32 %v4250, %v4275
    %v4319 = vadd.f32 %v4251, %v4275
    %v4320 = vadd.f32 %v4252, %v4275
    %v4321 = vadd.f32 %v4253, %v4275
    %v4322 = vadd.f32 %v4254, %v4275
    %v4323 = vadd.f32 %v4255, %v4275
    %v4324 = vadd.f32 %v4256, %v4275
    %v4325 = vadd.f32 %v4257, %v4275
    %v4326 = vadd.f32 %v4258, %v4275
    %v4327 = vadd.f32 %v4259, %v4275
    %v4328 = vadd.f32 %v4260, %v4275
    %v4329 = vadd.f32 %v4261, %v4275
    %v4330 = vadd.f32 %v4262, %v4275
    %v4331 = vadd.f32 %v4263, %v4275
    %v4332 = vadd.f32 %v4264, %v4275
    %v4333 = vadd.f32 %v4265, %v4275
    %v4334 = vadd.f32 %v4266, %v4275
    %v4335 = vadd.f32 %v4267, %v4275
    %v4336 = vadd.f32 %v4268, %v4275
    %v4337 = vadd.f32 %v4269, %v4275
    %v4338 = vadd.f32 %v4270, %v4275
    %v4339 = vadd.f32 %v4271, %v4275
    %v4340 = vadd.f32 %v4272, %v4275
    %v4341 = vld [vmem:[%s1] sm:$0xf]
    %v4342 = vld [vmem:[%s1 + $0x4] sm:$0xf]
    %v4343 = vld [vmem:[%s1 + $0x8] sm:$0xf]
    %v4344 = vld [vmem:[%s1 + $0xc] sm:$0xf]
    %v4345 = vld [vmem:[%s1 + $0x10] sm:$0xf]
    %v4346 = vld [vmem:[%s1 + $0x14] sm:$0xf]
    %v4347 = vld [vmem:[%s1 + $0x18] sm:$0xf]
    %v4348 = vld [vmem:[%s1 + $0x1c] sm:$0xf]
    %v4349 = vld [vmem:[%s1 + $0x20] sm:$0xf]
    %v4350 = vld [vmem:[%s1 + $0x24] sm:$0xf]
    %v4351 = vld [vmem:[%s1 + $0x28] sm:$0xf]
    %v4352 = vld [vmem:[%s1 + $0x2c] sm:$0xf]
    %v4353 = vld [vmem:[%s1 + $0x30] sm:$0xf]
    %v4354 = vld [vmem:[%s1 + $0x34] sm:$0xf]
    %v4355 = vld [vmem:[%s1 + $0x38] sm:$0xf]
    %v4356 = vld [vmem:[%s1 + $0x3c] sm:$0xf]
    %v4357 = vld [vmem:[%s1 + $0x40] sm:$0xf]
    %v4358 = vld [vmem:[%s1 + $0x44] sm:$0xf]
    %v4359 = vld [vmem:[%s1 + $0x48] sm:$0xf]
    %v4360 = vld [vmem:[%s1 + $0x4c] sm:$0xf]
    %v4361 = vld [vmem:[%s1 + $0x50] sm:$0xf]
    %v4362 = vld [vmem:[%s1 + $0x54] sm:$0xf]
    %v4363 = vld [vmem:[%s1 + $0x58] sm:$0xf]
    %v4364 = vld [vmem:[%s1 + $0x5c] sm:$0xf]
    %v4365 = vld [vmem:[%s1 + $0x60] sm:$0xf]
    %v4366 = vld [vmem:[%s1 + $0x64] sm:$0xf]
    %v4367 = vld [vmem:[%s1 + $0x68] sm:$0xf]
    %v4368 = vld [vmem:[%s1 + $0x6c] sm:$0xf]
    %v4369 = vld [vmem:[%s1 + $0x70] sm:$0xf]
    %v4370 = vld [vmem:[%s1 + $0x74] sm:$0xf]
    %v4371 = vld [vmem:[%s1 + $0x78] sm:$0xf]
    %v4372 = vld [vmem:[%s1 + $0x7c] sm:$0xf]
    %v4373 = vld [vmem:[%s1 + $0x80] sm:$0xf]
    %v4374 = vld [vmem:[%s1 + $0x84] sm:$0xf]
    %v4375 = vld [vmem:[%s1 + $0x88] sm:$0xf]
    %v4376 = vld [vmem:[%s1 + $0x8c] sm:$0xf]
    %v4377 = vld [vmem:[%s1 + $0x90] sm:$0xf]
    %v4378 = vld [vmem:[%s1 + $0x94] sm:$0xf]
    %v4379 = vld [vmem:[%s1 + $0x98] sm:$0xf]
    %v4380 = vld [vmem:[%s1 + $0x9c] sm:$0xf]
    %v4381 = vld [vmem:[%s1 + $0xa0] sm:$0xf]
    %v4382 = vld [vmem:[%s1 + $0xa4] sm:$0xf]
    %v4383 = vld [vmem:[%s1 + $0xa8] sm:$0xf]
    %v4384 = vld [vmem:[%s1 + $0xac] sm:$0xf]
    %v4385 = vld [vmem:[%s1 + $0xb0] sm:$0xf]
    %v4386 = vld [vmem:[%s1 + $0xb4] sm:$0xf]
    %v4387 = vld [vmem:[%s1 + $0xb8] sm:$0xf]
    %v4388 = vld [vmem:[%s1 + $0xbc] sm:$0xf]
    %v4389 = vld [vmem:[%s1 + $0xc0] sm:$0xf]
    %v4390 = vld [vmem:[%s1 + $0xc4] sm:$0xf]
    %v4391 = vld [vmem:[%s1 + $0xc8] sm:$0xf]
    %v4392 = vld [vmem:[%s1 + $0xcc] sm:$0xf]
    %v4393 = vld [vmem:[%s1 + $0xd0] sm:$0xf]
    %v4394 = vld [vmem:[%s1 + $0xd4] sm:$0xf]
    %v4395 = vld [vmem:[%s1 + $0xd8] sm:$0xf]
    %v4396 = vld [vmem:[%s1 + $0xdc] sm:$0xf]
    %v4397 = vld [vmem:[%s1 + $0xe0] sm:$0xf]
    %v4398 = vld [vmem:[%s1 + $0xe4] sm:$0xf]
    %v4399 = vld [vmem:[%s1 + $0xe8] sm:$0xf]
    %v4400 = vld [vmem:[%s1 + $0xec] sm:$0xf]
    %v4401 = vld [vmem:[%s1 + $0xf0] sm:$0xf]
    %v4402 = vld [vmem:[%s1 + $0xf4] sm:$0xf]
    %v4403 = vld [vmem:[%s1 + $0xf8] sm:$0xf]
    %v4404 = vld [vmem:[%s1 + $0xfc] sm:$0xf]
    %v4405 = vld [vmem:[%s3] sm:$0x3]
    %v4470 = vunpack.c.l.b16 %v4341
    %v4471 = vunpack.c.l.b16 %v4342
    %v4472 = vunpack.c.l.b16 %v4343
    %v4473 = vunpack.c.l.b16 %v4344
    %v4474 = vunpack.c.l.b16 %v4345
    %v4475 = vunpack.c.l.b16 %v4346
    %v4476 = vunpack.c.l.b16 %v4347
    %v4477 = vunpack.c.l.b16 %v4348
    %v4478 = vunpack.c.l.b16 %v4349
    %v4479 = vunpack.c.l.b16 %v4350
    %v4480 = vunpack.c.l.b16 %v4351
    %v4481 = vunpack.c.l.b16 %v4352
    %v4482 = vunpack.c.l.b16 %v4353
    %v4483 = vunpack.c.l.b16 %v4354
    %v4484 = vunpack.c.l.b16 %v4355
    %v4485 = vunpack.c.l.b16 %v4356
    %v4486 = vunpack.c.l.b16 %v4357
    %v4487 = vunpack.c.l.b16 %v4358
    %v4488 = vunpack.c.l.b16 %v4359
    %v4489 = vunpack.c.l.b16 %v4360
    %v4490 = vunpack.c.l.b16 %v4361
    %v4491 = vunpack.c.l.b16 %v4362
    %v4492 = vunpack.c.l.b16 %v4363
    %v4493 = vunpack.c.l.b16 %v4364
    %v4494 = vunpack.c.l.b16 %v4365
    %v4495 = vunpack.c.l.b16 %v4366
    %v4496 = vunpack.c.l.b16 %v4367
    %v4497 = vunpack.c.l.b16 %v4368
    %v4498 = vunpack.c.l.b16 %v4369
    %v4499 = vunpack.c.l.b16 %v4370
    %v4500 = vunpack.c.l.b16 %v4371
    %v4501 = vunpack.c.l.b16 %v4372
    %v4502 = vunpack.c.l.b16 %v4373
    %v4503 = vunpack.c.l.b16 %v4374
    %v4504 = vunpack.c.l.b16 %v4375
    %v4505 = vunpack.c.l.b16 %v4376
    %v4506 = vunpack.c.l.b16 %v4377
    %v4507 = vunpack.c.l.b16 %v4378
    %v4508 = vunpack.c.l.b16 %v4379
    %v4509 = vunpack.c.l.b16 %v4380
    %v4510 = vunpack.c.l.b16 %v4381
    %v4511 = vunpack.c.l.b16 %v4382
    %v4512 = vunpack.c.l.b16 %v4383
    %v4513 = vunpack.c.l.b16 %v4384
    %v4514 = vunpack.c.l.b16 %v4385
    %v4515 = vunpack.c.l.b16 %v4386
    %v4516 = vunpack.c.l.b16 %v4387
    %v4517 = vunpack.c.l.b16 %v4388
    %v4518 = vunpack.c.l.b16 %v4389
    %v4519 = vunpack.c.l.b16 %v4390
    %v4520 = vunpack.c.l.b16 %v4391
    %v4521 = vunpack.c.l.b16 %v4392
    %v4522 = vunpack.c.l.b16 %v4393
    %v4523 = vunpack.c.l.b16 %v4394
    %v4524 = vunpack.c.l.b16 %v4395
    %v4525 = vunpack.c.l.b16 %v4396
    %v4526 = vunpack.c.l.b16 %v4397
    %v4527 = vunpack.c.l.b16 %v4398
    %v4528 = vunpack.c.l.b16 %v4399
    %v4529 = vunpack.c.l.b16 %v4400
    %v4530 = vunpack.c.l.b16 %v4401
    %v4531 = vunpack.c.l.b16 %v4402
    %v4532 = vunpack.c.l.b16 %v4403
    %v4533 = vunpack.c.l.b16 %v4404
    %v4534 = vpack.c.b16 %v4471, %v4470
    %v4535 = vpack.c.b16 %v4473, %v4472
    %v4536 = vpack.c.b16 %v4475, %v4474
    %v4537 = vpack.c.b16 %v4477, %v4476
    %v4538 = vpack.c.b16 %v4479, %v4478
    %v4539 = vpack.c.b16 %v4481, %v4480
    %v4540 = vpack.c.b16 %v4483, %v4482
    %v4541 = vpack.c.b16 %v4485, %v4484
    %v4542 = vpack.c.b16 %v4487, %v4486
    %v4543 = vpack.c.b16 %v4489, %v4488
    %v4544 = vpack.c.b16 %v4491, %v4490
    %v4545 = vpack.c.b16 %v4493, %v4492
    %v4546 = vpack.c.b16 %v4495, %v4494
    %v4547 = vpack.c.b16 %v4497, %v4496
    %v4548 = vpack.c.b16 %v4499, %v4498
    %v4549 = vpack.c.b16 %v4501, %v4500
    %v4550 = vpack.c.b16 %v4503, %v4502
    %v4551 = vpack.c.b16 %v4505, %v4504
    %v4552 = vpack.c.b16 %v4507, %v4506
    %v4553 = vpack.c.b16 %v4509, %v4508
    %v4554 = vpack.c.b16 %v4511, %v4510
    %v4555 = vpack.c.b16 %v4513, %v4512
    %v4556 = vpack.c.b16 %v4515, %v4514
    %v4557 = vpack.c.b16 %v4517, %v4516
    %v4558 = vpack.c.b16 %v4519, %v4518
    %v4559 = vpack.c.b16 %v4521, %v4520
    %v4560 = vpack.c.b16 %v4523, %v4522
    %v4561 = vpack.c.b16 %v4525, %v4524
    %v4562 = vpack.c.b16 %v4527, %v4526
    %v4563 = vpack.c.b16 %v4529, %v4528
    %v4564 = vpack.c.b16 %v4531, %v4530
    %v4565 = vpack.c.b16 %v4533, %v4532
    %v4567 = vsel %vm3427, %v4534, 0
    %v4570 = vsel %vm3427, %v4535, 0
    %v4573 = vsel %vm3427, %v4536, 0
    %v4576 = vsel %vm3427, %v4537, 0
    %v4579 = vsel %vm3427, %v4538, 0
    %v4582 = vsel %vm3427, %v4539, 0
    %v4585 = vsel %vm3427, %v4540, 0
    %v4588 = vsel %vm3427, %v4541, 0
    %v4591 = vsel %vm3427, %v4542, 0
    %v4594 = vsel %vm3427, %v4543, 0
    %v4597 = vsel %vm3427, %v4544, 0
    %v4600 = vsel %vm3427, %v4545, 0
    %v4603 = vsel %vm3427, %v4546, 0
    %v4606 = vsel %vm3427, %v4547, 0
    %v4609 = vsel %vm3427, %v4548, 0
    %v4612 = vsel %vm3427, %v4549, 0
    %v4615 = vsel %vm3427, %v4550, 0
    %v4618 = vsel %vm3427, %v4551, 0
    %v4621 = vsel %vm3427, %v4552, 0
    %v4624 = vsel %vm3427, %v4553, 0
    %v4627 = vsel %vm3427, %v4554, 0
    %v4630 = vsel %vm3427, %v4555, 0
    %v4633 = vsel %vm3427, %v4556, 0
    %v4636 = vsel %vm3427, %v4557, 0
    %v4639 = vsel %vm3427, %v4558, 0
    %v4642 = vsel %vm3427, %v4559, 0
    %v4645 = vsel %vm3427, %v4560, 0
    %v4648 = vsel %vm3427, %v4561, 0
    %v4651 = vsel %vm3427, %v4562, 0
    %v4654 = vsel %vm3427, %v4563, 0
    %v4657 = vsel %vm3427, %v4564, 0
    %v4660 = vsel %vm3427, %v4565, 0
    %v4663 = vsel %vm4032, %v4405, 0
    %4665 = vmatpush.bf16.msra.mxu0 0
    %4666 = vmatpush.bf16.msra.mxu0 0
    %4667 = vmatpush.bf16.msra.mxu0 0
    %4668 = vmatpush.bf16.msra.mxu0 0
    %4669 = vmatpush.bf16.msra.mxu0 0
    %4670 = vmatpush.bf16.msra.mxu0 0
    %4671 = vmatpush.bf16.msra.mxu0 0
    %4672 = vmatpush.bf16.msra.mxu0 %v4663
    %4673 = vmatmul.bf16.gmra.mxu0 %v4567
    %v4674 = vpop.f32.mrf.mxu0
    %v4675 = vadd.f32 0.0, %v4674
    %v4676 = vpop.f32.mrf.mxu0
    %v4677 = vadd.f32 0.0, %v4676
    %4678 = vmatmul.bf16.gmra.mxu0 %v4570
    %v4679 = vpop.f32.mrf.mxu0
    %v4680 = vadd.f32 0.0, %v4679
    %v4681 = vpop.f32.mrf.mxu0
    %v4682 = vadd.f32 0.0, %v4681
    %4683 = vmatmul.bf16.gmra.mxu0 %v4573
    %v4684 = vpop.f32.mrf.mxu0
    %v4685 = vadd.f32 0.0, %v4684
    %v4686 = vpop.f32.mrf.mxu0
    %v4687 = vadd.f32 0.0, %v4686
    %4688 = vmatmul.bf16.gmra.mxu0 %v4576
    %v4689 = vpop.f32.mrf.mxu0
    %v4690 = vadd.f32 0.0, %v4689
    %v4691 = vpop.f32.mrf.mxu0
    %v4692 = vadd.f32 0.0, %v4691
    %4693 = vmatmul.bf16.gmra.mxu0 %v4579
    %v4694 = vpop.f32.mrf.mxu0
    %v4695 = vadd.f32 0.0, %v4694
    %v4696 = vpop.f32.mrf.mxu0
    %v4697 = vadd.f32 0.0, %v4696
    %4698 = vmatmul.bf16.gmra.mxu0 %v4582
    %v4699 = vpop.f32.mrf.mxu0
    %v4700 = vadd.f32 0.0, %v4699
    %v4701 = vpop.f32.mrf.mxu0
    %v4702 = vadd.f32 0.0, %v4701
    %4703 = vmatmul.bf16.gmra.mxu0 %v4585
    %v4704 = vpop.f32.mrf.mxu0
    %v4705 = vadd.f32 0.0, %v4704
    %v4706 = vpop.f32.mrf.mxu0
    %v4707 = vadd.f32 0.0, %v4706
    %4708 = vmatmul.bf16.gmra.mxu0 %v4588
    %v4709 = vpop.f32.mrf.mxu0
    %v4710 = vadd.f32 0.0, %v4709
    %v4711 = vpop.f32.mrf.mxu0
    %v4712 = vadd.f32 0.0, %v4711
    %4713 = vmatmul.bf16.gmra.mxu0 %v4591
    %v4714 = vpop.f32.mrf.mxu0
    %v4715 = vadd.f32 0.0, %v4714
    %v4716 = vpop.f32.mrf.mxu0
    %v4717 = vadd.f32 0.0, %v4716
    %4718 = vmatmul.bf16.gmra.mxu0 %v4594
    %v4719 = vpop.f32.mrf.mxu0
    %v4720 = vadd.f32 0.0, %v4719
    %v4721 = vpop.f32.mrf.mxu0
    %v4722 = vadd.f32 0.0, %v4721
    %4723 = vmatmul.bf16.gmra.mxu0 %v4597
    %v4724 = vpop.f32.mrf.mxu0
    %v4725 = vadd.f32 0.0, %v4724
    %v4726 = vpop.f32.mrf.mxu0
    %v4727 = vadd.f32 0.0, %v4726
    %4728 = vmatmul.bf16.gmra.mxu0 %v4600
    %v4729 = vpop.f32.mrf.mxu0
    %v4730 = vadd.f32 0.0, %v4729
    %v4731 = vpop.f32.mrf.mxu0
    %v4732 = vadd.f32 0.0, %v4731
    %4733 = vmatmul.bf16.gmra.mxu0 %v4603
    %v4734 = vpop.f32.mrf.mxu0
    %v4735 = vadd.f32 0.0, %v4734
    %v4736 = vpop.f32.mrf.mxu0
    %v4737 = vadd.f32 0.0, %v4736
    %4738 = vmatmul.bf16.gmra.mxu0 %v4606
    %v4739 = vpop.f32.mrf.mxu0
    %v4740 = vadd.f32 0.0, %v4739
    %v4741 = vpop.f32.mrf.mxu0
    %v4742 = vadd.f32 0.0, %v4741
    %4743 = vmatmul.bf16.gmra.mxu0 %v4609
    %v4744 = vpop.f32.mrf.mxu0
    %v4745 = vadd.f32 0.0, %v4744
    %v4746 = vpop.f32.mrf.mxu0
    %v4747 = vadd.f32 0.0, %v4746
    %4748 = vmatmul.bf16.gmra.mxu0 %v4612
    %v4749 = vpop.f32.mrf.mxu0
    %v4750 = vadd.f32 0.0, %v4749
    %v4751 = vpop.f32.mrf.mxu0
    %v4752 = vadd.f32 0.0, %v4751
    %4753 = vmatmul.bf16.gmra.mxu0 %v4615
    %v4754 = vpop.f32.mrf.mxu0
    %v4755 = vadd.f32 0.0, %v4754
    %v4756 = vpop.f32.mrf.mxu0
    %v4757 = vadd.f32 0.0, %v4756
    %4758 = vmatmul.bf16.gmra.mxu0 %v4618
    %v4759 = vpop.f32.mrf.mxu0
    %v4760 = vadd.f32 0.0, %v4759
    %v4761 = vpop.f32.mrf.mxu0
    %v4762 = vadd.f32 0.0, %v4761
    %4763 = vmatmul.bf16.gmra.mxu0 %v4621
    %v4764 = vpop.f32.mrf.mxu0
    %v4765 = vadd.f32 0.0, %v4764
    %v4766 = vpop.f32.mrf.mxu0
    %v4767 = vadd.f32 0.0, %v4766
    %4768 = vmatmul.bf16.gmra.mxu0 %v4624
    %v4769 = vpop.f32.mrf.mxu0
    %v4770 = vadd.f32 0.0, %v4769
    %v4771 = vpop.f32.mrf.mxu0
    %v4772 = vadd.f32 0.0, %v4771
    %4773 = vmatmul.bf16.gmra.mxu0 %v4627
    %v4774 = vpop.f32.mrf.mxu0
    %v4775 = vadd.f32 0.0, %v4774
    %v4776 = vpop.f32.mrf.mxu0
    %v4777 = vadd.f32 0.0, %v4776
    %4778 = vmatmul.bf16.gmra.mxu0 %v4630
    %v4779 = vpop.f32.mrf.mxu0
    %v4780 = vadd.f32 0.0, %v4779
    %v4781 = vpop.f32.mrf.mxu0
    %v4782 = vadd.f32 0.0, %v4781
    %4783 = vmatmul.bf16.gmra.mxu0 %v4633
    %v4784 = vpop.f32.mrf.mxu0
    %v4785 = vadd.f32 0.0, %v4784
    %v4786 = vpop.f32.mrf.mxu0
    %v4787 = vadd.f32 0.0, %v4786
    %4788 = vmatmul.bf16.gmra.mxu0 %v4636
    %v4789 = vpop.f32.mrf.mxu0
    %v4790 = vadd.f32 0.0, %v4789
    %v4791 = vpop.f32.mrf.mxu0
    %v4792 = vadd.f32 0.0, %v4791
    %4793 = vmatmul.bf16.gmra.mxu0 %v4639
    %v4794 = vpop.f32.mrf.mxu0
    %v4795 = vadd.f32 0.0, %v4794
    %v4796 = vpop.f32.mrf.mxu0
    %v4797 = vadd.f32 0.0, %v4796
    %4798 = vmatmul.bf16.gmra.mxu0 %v4642
    %v4799 = vpop.f32.mrf.mxu0
    %v4800 = vadd.f32 0.0, %v4799
    %v4801 = vpop.f32.mrf.mxu0
    %v4802 = vadd.f32 0.0, %v4801
    %4803 = vmatmul.bf16.gmra.mxu0 %v4645
    %v4804 = vpop.f32.mrf.mxu0
    %v4805 = vadd.f32 0.0, %v4804
    %v4806 = vpop.f32.mrf.mxu0
    %v4807 = vadd.f32 0.0, %v4806
    %4808 = vmatmul.bf16.gmra.mxu0 %v4648
    %v4809 = vpop.f32.mrf.mxu0
    %v4810 = vadd.f32 0.0, %v4809
    %v4811 = vpop.f32.mrf.mxu0
    %v4812 = vadd.f32 0.0, %v4811
    %4813 = vmatmul.bf16.gmra.mxu0 %v4651
    %v4814 = vpop.f32.mrf.mxu0
    %v4815 = vadd.f32 0.0, %v4814
    %v4816 = vpop.f32.mrf.mxu0
    %v4817 = vadd.f32 0.0, %v4816
    %4818 = vmatmul.bf16.gmra.mxu0 %v4654
    %v4819 = vpop.f32.mrf.mxu0
    %v4820 = vadd.f32 0.0, %v4819
    %v4821 = vpop.f32.mrf.mxu0
    %v4822 = vadd.f32 0.0, %v4821
    %4823 = vmatmul.bf16.gmra.mxu0 %v4657
    %v4824 = vpop.f32.mrf.mxu0
    %v4825 = vadd.f32 0.0, %v4824
    %v4826 = vpop.f32.mrf.mxu0
    %v4827 = vadd.f32 0.0, %v4826
    %4828 = vmatmul.bf16.gmra.mxu0 %v4660
    %v4829 = vpop.f32.mrf.mxu0
    %v4830 = vadd.f32 0.0, %v4829
    %v4831 = vpop.f32.mrf.mxu0
    %v4832 = vadd.f32 0.0, %v4831
    %4833 = vdwg.mxu0
    %v4834 = vld [vmem:[%s6] sm:$0x1]
    %v4836 = vperm.slane %v4834, 0
    %v4838 = vmul.f32 %v4675, %v4836
    %v4839 = vmul.f32 %v4677, %v4836
    %v4840 = vmul.f32 %v4680, %v4836
    %v4841 = vmul.f32 %v4682, %v4836
    %v4842 = vmul.f32 %v4685, %v4836
    %v4843 = vmul.f32 %v4687, %v4836
    %v4844 = vmul.f32 %v4690, %v4836
    %v4845 = vmul.f32 %v4692, %v4836
    %v4846 = vmul.f32 %v4695, %v4836
    %v4847 = vmul.f32 %v4697, %v4836
    %v4848 = vmul.f32 %v4700, %v4836
    %v4849 = vmul.f32 %v4702, %v4836
    %v4850 = vmul.f32 %v4705, %v4836
    %v4851 = vmul.f32 %v4707, %v4836
    %v4852 = vmul.f32 %v4710, %v4836
    %v4853 = vmul.f32 %v4712, %v4836
    %v4854 = vmul.f32 %v4715, %v4836
    %v4855 = vmul.f32 %v4717, %v4836
    %v4856 = vmul.f32 %v4720, %v4836
    %v4857 = vmul.f32 %v4722, %v4836
    %v4858 = vmul.f32 %v4725, %v4836
    %v4859 = vmul.f32 %v4727, %v4836
    %v4860 = vmul.f32 %v4730, %v4836
    %v4861 = vmul.f32 %v4732, %v4836
    %v4862 = vmul.f32 %v4735, %v4836
    %v4863 = vmul.f32 %v4737, %v4836
    %v4864 = vmul.f32 %v4740, %v4836
    %v4865 = vmul.f32 %v4742, %v4836
    %v4866 = vmul.f32 %v4745, %v4836
    %v4867 = vmul.f32 %v4747, %v4836
    %v4868 = vmul.f32 %v4750, %v4836
    %v4869 = vmul.f32 %v4752, %v4836
    %v4870 = vmul.f32 %v4755, %v4836
    %v4871 = vmul.f32 %v4757, %v4836
    %v4872 = vmul.f32 %v4760, %v4836
    %v4873 = vmul.f32 %v4762, %v4836
    %v4874 = vmul.f32 %v4765, %v4836
    %v4875 = vmul.f32 %v4767, %v4836
    %v4876 = vmul.f32 %v4770, %v4836
    %v4877 = vmul.f32 %v4772, %v4836
    %v4878 = vmul.f32 %v4775, %v4836
    %v4879 = vmul.f32 %v4777, %v4836
    %v4880 = vmul.f32 %v4780, %v4836
    %v4881 = vmul.f32 %v4782, %v4836
    %v4882 = vmul.f32 %v4785, %v4836
    %v4883 = vmul.f32 %v4787, %v4836
    %v4884 = vmul.f32 %v4790, %v4836
    %v4885 = vmul.f32 %v4792, %v4836
    %v4886 = vmul.f32 %v4795, %v4836
    %v4887 = vmul.f32 %v4797, %v4836
    %v4888 = vmul.f32 %v4800, %v4836
    %v4889 = vmul.f32 %v4802, %v4836
    %v4890 = vmul.f32 %v4805, %v4836
    %v4891 = vmul.f32 %v4807, %v4836
    %v4892 = vmul.f32 %v4810, %v4836
    %v4893 = vmul.f32 %v4812, %v4836
    %v4894 = vmul.f32 %v4815, %v4836
    %v4895 = vmul.f32 %v4817, %v4836
    %v4896 = vmul.f32 %v4820, %v4836
    %v4897 = vmul.f32 %v4822, %v4836
    %v4898 = vmul.f32 %v4825, %v4836
    %v4899 = vmul.f32 %v4827, %v4836
    %v4900 = vmul.f32 %v4830, %v4836
    %v4901 = vmul.f32 %v4832, %v4836
    %v4902 = vld [vmem:[%s7] sm:$0x1]
    %v4904 = vperm.slane %v4902, 0
    %v4906 = vadd.f32 %v4838, %v4904
    %v4907 = vadd.f32 %v4839, %v4904
    %v4908 = vadd.f32 %v4840, %v4904
    %v4909 = vadd.f32 %v4841, %v4904
    %v4910 = vadd.f32 %v4842, %v4904
    %v4911 = vadd.f32 %v4843, %v4904
    %v4912 = vadd.f32 %v4844, %v4904
    %v4913 = vadd.f32 %v4845, %v4904
    %v4914 = vadd.f32 %v4846, %v4904
    %v4915 = vadd.f32 %v4847, %v4904
    %v4916 = vadd.f32 %v4848, %v4904
    %v4917 = vadd.f32 %v4849, %v4904
    %v4918 = vadd.f32 %v4850, %v4904
    %v4919 = vadd.f32 %v4851, %v4904
    %v4920 = vadd.f32 %v4852, %v4904
    %v4921 = vadd.f32 %v4853, %v4904
    %v4922 = vadd.f32 %v4854, %v4904
    %v4923 = vadd.f32 %v4855, %v4904
    %v4924 = vadd.f32 %v4856, %v4904
    %v4925 = vadd.f32 %v4857, %v4904
    %v4926 = vadd.f32 %v4858, %v4904
    %v4927 = vadd.f32 %v4859, %v4904
    %v4928 = vadd.f32 %v4860, %v4904
    %v4929 = vadd.f32 %v4861, %v4904
    %v4930 = vadd.f32 %v4862, %v4904
    %v4931 = vadd.f32 %v4863, %v4904
    %v4932 = vadd.f32 %v4864, %v4904
    %v4933 = vadd.f32 %v4865, %v4904
    %v4934 = vadd.f32 %v4866, %v4904
    %v4935 = vadd.f32 %v4867, %v4904
    %v4936 = vadd.f32 %v4868, %v4904
    %v4937 = vadd.f32 %v4869, %v4904
    %v4938 = vadd.f32 %v4870, %v4904
    %v4939 = vadd.f32 %v4871, %v4904
    %v4940 = vadd.f32 %v4872, %v4904
    %v4941 = vadd.f32 %v4873, %v4904
    %v4942 = vadd.f32 %v4874, %v4904
    %v4943 = vadd.f32 %v4875, %v4904
    %v4944 = vadd.f32 %v4876, %v4904
    %v4945 = vadd.f32 %v4877, %v4904
    %v4946 = vadd.f32 %v4878, %v4904
    %v4947 = vadd.f32 %v4879, %v4904
    %v4948 = vadd.f32 %v4880, %v4904
    %v4949 = vadd.f32 %v4881, %v4904
    %v4950 = vadd.f32 %v4882, %v4904
    %v4951 = vadd.f32 %v4883, %v4904
    %v4952 = vadd.f32 %v4884, %v4904
    %v4953 = vadd.f32 %v4885, %v4904
    %v4954 = vadd.f32 %v4886, %v4904
    %v4955 = vadd.f32 %v4887, %v4904
    %v4956 = vadd.f32 %v4888, %v4904
    %v4957 = vadd.f32 %v4889, %v4904
    %v4958 = vadd.f32 %v4890, %v4904
    %v4959 = vadd.f32 %v4891, %v4904
    %v4960 = vadd.f32 %v4892, %v4904
    %v4961 = vadd.f32 %v4893, %v4904
    %v4962 = vadd.f32 %v4894, %v4904
    %v4963 = vadd.f32 %v4895, %v4904
    %v4964 = vadd.f32 %v4896, %v4904
    %v4965 = vadd.f32 %v4897, %v4904
    %v4966 = vadd.f32 %v4898, %v4904
    %v4967 = vadd.f32 %v4899, %v4904
    %v4968 = vadd.f32 %v4900, %v4904
    %v4969 = vadd.f32 %v4901, %v4904
    %v4970 = vadd.f32 %v4277, %v4278
    %v4971 = vadd.f32 %v4970, %v4279
    %v4972 = vadd.f32 %v4971, %v4280
    %v4973 = vadd.f32 %v4972, %v4281
    %v4974 = vadd.f32 %v4973, %v4282
    %v4975 = vadd.f32 %v4974, %v4283
    %v4976 = vadd.f32 %v4975, %v4284
    %v4977 = vadd.f32 %v4976, %v4285
    %v4978 = vadd.f32 %v4977, %v4286
    %v4979 = vadd.f32 %v4978, %v4287
    %v4980 = vadd.f32 %v4979, %v4288
    %v4981 = vadd.f32 %v4980, %v4289
    %v4982 = vadd.f32 %v4981, %v4290
    %v4983 = vadd.f32 %v4982, %v4291
    %v4984 = vadd.f32 %v4983, %v4292
    %v4985 = vadd.f32 %v4984, %v4293
    %v4986 = vadd.f32 %v4985, %v4294
    %v4987 = vadd.f32 %v4986, %v4295
    %v4988 = vadd.f32 %v4987, %v4296
    %v4989 = vadd.f32 %v4988, %v4297
    %v4990 = vadd.f32 %v4989, %v4298
    %v4991 = vadd.f32 %v4990, %v4299
    %v4992 = vadd.f32 %v4991, %v4300
    %v4993 = vadd.f32 %v4992, %v4301
    %v4994 = vadd.f32 %v4993, %v4302
    %v4995 = vadd.f32 %v4994, %v4303
    %v4996 = vadd.f32 %v4995, %v4304
    %v4997 = vadd.f32 %v4996, %v4305
    %v4998 = vadd.f32 %v4997, %v4306
    %v4999 = vadd.f32 %v4998, %v4307
    %v5000 = vadd.f32 %v4999, %v4308
    %v5001 = vrot.slane %v5000, 4
    %v5002 = vadd.f32 %v5000, %v5001
    %v5003 = vrot.slane %v5002, 2
    %v5004 = vadd.f32 %v5002, %v5003
    %v5005 = vrot.slane %v5004, 1
    %v5006 = vadd.f32 %v5004, %v5005
    %v5007 = vadd.f32 %v4309, %v4310
    %v5008 = vadd.f32 %v5007, %v4311
    %v5009 = vadd.f32 %v5008, %v4312
    %v5010 = vadd.f32 %v5009, %v4313
    %v5011 = vadd.f32 %v5010, %v4314
    %v5012 = vadd.f32 %v5011, %v4315
    %v5013 = vadd.f32 %v5012, %v4316
    %v5014 = vadd.f32 %v5013, %v4317
    %v5015 = vadd.f32 %v5014, %v4318
    %v5016 = vadd.f32 %v5015, %v4319
    %v5017 = vadd.f32 %v5016, %v4320
    %v5018 = vadd.f32 %v5017, %v4321
    %v5019 = vadd.f32 %v5018, %v4322
    %v5020 = vadd.f32 %v5019, %v4323
    %v5021 = vadd.f32 %v5020, %v4324
    %v5022 = vadd.f32 %v5021, %v4325
    %v5023 = vadd.f32 %v5022, %v4326
    %v5024 = vadd.f32 %v5023, %v4327
    %v5025 = vadd.f32 %v5024, %v4328
    %v5026 = vadd.f32 %v5025, %v4329
    %v5027 = vadd.f32 %v5026, %v4330
    %v5028 = vadd.f32 %v5027, %v4331
    %v5029 = vadd.f32 %v5028, %v4332
    %v5030 = vadd.f32 %v5029, %v4333
    %v5031 = vadd.f32 %v5030, %v4334
    %v5032 = vadd.f32 %v5031, %v4335
    %v5033 = vadd.f32 %v5032, %v4336
    %v5034 = vadd.f32 %v5033, %v4337
    %v5035 = vadd.f32 %v5034, %v4338
    %v5036 = vadd.f32 %v5035, %v4339
    %v5037 = vadd.f32 %v5036, %v4340
    %v5038 = vrot.slane %v5037, 4
    %v5039 = vadd.f32 %v5037, %v5038
    %v5040 = vrot.slane %v5039, 2
    %v5041 = vadd.f32 %v5039, %v5040
    %v5042 = vrot.slane %v5041, 1
    %v5043 = vadd.f32 %v5041, %v5042
    %v5044 = vrcp.pop 256.0
    %v5045 = vmul.f32 256.0, %v5044
    %v5046 = vsub.f32 1.0, %v5045
    %v5047 = vmul.f32 %v5044, %v5046
    %v5048 = vadd.f32 %v5044, %v5047
    %vm5049 = vweird.f32 %v5044
    %v5050 = vsel %vm5049, %v5044, %v5048
    %v5051 = vmul.f32 %v5006, %v5050
    %v5052 = vmul.f32 %v5043, %v5050
    %v5053 = vadd.f32 %v4906, %v4907
    %v5054 = vadd.f32 %v5053, %v4908
    %v5055 = vadd.f32 %v5054, %v4909
    %v5056 = vadd.f32 %v5055, %v4910
    %v5057 = vadd.f32 %v5056, %v4911
    %v5058 = vadd.f32 %v5057, %v4912
    %v5059 = vadd.f32 %v5058, %v4913
    %v5060 = vadd.f32 %v5059, %v4914
    %v5061 = vadd.f32 %v5060, %v4915
    %v5062 = vadd.f32 %v5061, %v4916
    %v5063 = vadd.f32 %v5062, %v4917
    %v5064 = vadd.f32 %v5063, %v4918
    %v5065 = vadd.f32 %v5064, %v4919
    %v5066 = vadd.f32 %v5065, %v4920
    %v5067 = vadd.f32 %v5066, %v4921
    %v5068 = vadd.f32 %v5067, %v4922
    %v5069 = vadd.f32 %v5068, %v4923
    %v5070 = vadd.f32 %v5069, %v4924
    %v5071 = vadd.f32 %v5070, %v4925
    %v5072 = vadd.f32 %v5071, %v4926
    %v5073 = vadd.f32 %v5072, %v4927
    %v5074 = vadd.f32 %v5073, %v4928
    %v5075 = vadd.f32 %v5074, %v4929
    %v5076 = vadd.f32 %v5075, %v4930
    %v5077 = vadd.f32 %v5076, %v4931
    %v5078 = vadd.f32 %v5077, %v4932
    %v5079 = vadd.f32 %v5078, %v4933
    %v5080 = vadd.f32 %v5079, %v4934
    %v5081 = vadd.f32 %v5080, %v4935
    %v5082 = vadd.f32 %v5081, %v4936
    %v5083 = vadd.f32 %v5082, %v4937
    %v5084 = vrot.slane %v5083, 4
    %v5085 = vadd.f32 %v5083, %v5084
    %v5086 = vrot.slane %v5085, 2
    %v5087 = vadd.f32 %v5085, %v5086
    %v5088 = vrot.slane %v5087, 1
    %v5089 = vadd.f32 %v5087, %v5088
    %v5090 = vadd.f32 %v4938, %v4939
    %v5091 = vadd.f32 %v5090, %v4940
    %v5092 = vadd.f32 %v5091, %v4941
    %v5093 = vadd.f32 %v5092, %v4942
    %v5094 = vadd.f32 %v5093, %v4943
    %v5095 = vadd.f32 %v5094, %v4944
    %v5096 = vadd.f32 %v5095, %v4945
    %v5097 = vadd.f32 %v5096, %v4946
    %v5098 = vadd.f32 %v5097, %v4947
    %v5099 = vadd.f32 %v5098, %v4948
    %v5100 = vadd.f32 %v5099, %v4949
    %v5101 = vadd.f32 %v5100, %v4950
    %v5102 = vadd.f32 %v5101, %v4951
    %v5103 = vadd.f32 %v5102, %v4952
    %v5104 = vadd.f32 %v5103, %v4953
    %v5105 = vadd.f32 %v5104, %v4954
    %v5106 = vadd.f32 %v5105, %v4955
    %v5107 = vadd.f32 %v5106, %v4956
    %v5108 = vadd.f32 %v5107, %v4957
    %v5109 = vadd.f32 %v5108, %v4958
    %v5110 = vadd.f32 %v5109, %v4959
    %v5111 = vadd.f32 %v5110, %v4960
    %v5112 = vadd.f32 %v5111, %v4961
    %v5113 = vadd.f32 %v5112, %v4962
    %v5114 = vadd.f32 %v5113, %v4963
    %v5115 = vadd.f32 %v5114, %v4964
    %v5116 = vadd.f32 %v5115, %v4965
    %v5117 = vadd.f32 %v5116, %v4966
    %v5118 = vadd.f32 %v5117, %v4967
    %v5119 = vadd.f32 %v5118, %v4968
    %v5120 = vadd.f32 %v5119, %v4969
    %v5121 = vrot.slane %v5120, 4
    %v5122 = vadd.f32 %v5120, %v5121
    %v5123 = vrot.slane %v5122, 2
    %v5124 = vadd.f32 %v5122, %v5123
    %v5125 = vrot.slane %v5124, 1
    %v5126 = vadd.f32 %v5124, %v5125
    %v5127 = vmul.f32 %v5089, %v5050
    %v5128 = vmul.f32 %v5126, %v5050
    %v5129 = vsub.f32 %v5051, %v5127
    %v5130 = vsub.f32 %v5052, %v5128
    %v5131 = vmul.f32 %v5129, 1.442695
    %v5132 = vpow.pop %v5131
    %v5133 = vmul.f32 %v5130, 1.442695
    %v5134 = vpow.pop %v5133
    %v5135 = vadd.f32 %v5132, 1.0
    %v5136 = vadd.f32 %v5134, 1.0
    %v5137 = vrcp.pop %v5135
    %v5138 = vrcp.pop %v5136
    %v5139 = vsub.f32 %v4906, %v4277
    %v5140 = vsub.f32 %v4907, %v4278
    %v5141 = vsub.f32 %v4908, %v4279
    %v5142 = vsub.f32 %v4909, %v4280
    %v5143 = vsub.f32 %v4910, %v4281
    %v5144 = vsub.f32 %v4911, %v4282
    %v5145 = vsub.f32 %v4912, %v4283
    %v5146 = vsub.f32 %v4913, %v4284
    %v5147 = vsub.f32 %v4914, %v4285
    %v5148 = vsub.f32 %v4915, %v4286
    %v5149 = vsub.f32 %v4916, %v4287
    %v5150 = vsub.f32 %v4917, %v4288
    %v5151 = vsub.f32 %v4918, %v4289
    %v5152 = vsub.f32 %v4919, %v4290
    %v5153 = vsub.f32 %v4920, %v4291
    %v5154 = vsub.f32 %v4921, %v4292
    %v5155 = vsub.f32 %v4922, %v4293
    %v5156 = vsub.f32 %v4923, %v4294
    %v5157 = vsub.f32 %v4924, %v4295
    %v5158 = vsub.f32 %v4925, %v4296
    %v5159 = vsub.f32 %v4926, %v4297
    %v5160 = vsub.f32 %v4927, %v4298
    %v5161 = vsub.f32 %v4928, %v4299
    %v5162 = vsub.f32 %v4929, %v4300
    %v5163 = vsub.f32 %v4930, %v4301
    %v5164 = vsub.f32 %v4931, %v4302
    %v5165 = vsub.f32 %v4932, %v4303
    %v5166 = vsub.f32 %v4933, %v4304
    %v5167 = vsub.f32 %v4934, %v4305
    %v5168 = vsub.f32 %v4935, %v4306
    %v5169 = vsub.f32 %v4936, %v4307
    %v5170 = vsub.f32 %v4937, %v4308
    %v5171 = vsub.f32 %v4938, %v4309
    %v5172 = vsub.f32 %v4939, %v4310
    %v5173 = vsub.f32 %v4940, %v4311
    %v5174 = vsub.f32 %v4941, %v4312
    %v5175 = vsub.f32 %v4942, %v4313
    %v5176 = vsub.f32 %v4943, %v4314
    %v5177 = vsub.f32 %v4944, %v4315
    %v5178 = vsub.f32 %v4945, %v4316
    %v5179 = vsub.f32 %v4946, %v4317
    %v5180 = vsub.f32 %v4947, %v4318
    %v5181 = vsub.f32 %v4948, %v4319
    %v5182 = vsub.f32 %v4949, %v4320
    %v5183 = vsub.f32 %v4950, %v4321
    %v5184 = vsub.f32 %v4951, %v4322
    %v5185 = vsub.f32 %v4952, %v4323
    %v5186 = vsub.f32 %v4953, %v4324
    %v5187 = vsub.f32 %v4954, %v4325
    %v5188 = vsub.f32 %v4955, %v4326
    %v5189 = vsub.f32 %v4956, %v4327
    %v5190 = vsub.f32 %v4957, %v4328
    %v5191 = vsub.f32 %v4958, %v4329
    %v5192 = vsub.f32 %v4959, %v4330
    %v5193 = vsub.f32 %v4960, %v4331
    %v5194 = vsub.f32 %v4961, %v4332
    %v5195 = vsub.f32 %v4962, %v4333
    %v5196 = vsub.f32 %v4963, %v4334
    %v5197 = vsub.f32 %v4964, %v4335
    %v5198 = vsub.f32 %v4965, %v4336
    %v5199 = vsub.f32 %v4966, %v4337
    %v5200 = vsub.f32 %v4967, %v4338
    %v5201 = vsub.f32 %v4968, %v4339
    %v5202 = vsub.f32 %v4969, %v4340
    %v5203 = vmul.f32 %v5137, %v5139
    %v5204 = vmul.f32 %v5137, %v5140
    %v5205 = vmul.f32 %v5137, %v5141
    %v5206 = vmul.f32 %v5137, %v5142
    %v5207 = vmul.f32 %v5137, %v5143
    %v5208 = vmul.f32 %v5137, %v5144
    %v5209 = vmul.f32 %v5137, %v5145
    %v5210 = vmul.f32 %v5137, %v5146
    %v5211 = vmul.f32 %v5137, %v5147
    %v5212 = vmul.f32 %v5137, %v5148
    %v5213 = vmul.f32 %v5137, %v5149
    %v5214 = vmul.f32 %v5137, %v5150
    %v5215 = vmul.f32 %v5137, %v5151
    %v5216 = vmul.f32 %v5137, %v5152
    %v5217 = vmul.f32 %v5137, %v5153
    %v5218 = vmul.f32 %v5137, %v5154
    %v5219 = vmul.f32 %v5137, %v5155
    %v5220 = vmul.f32 %v5137, %v5156
    %v5221 = vmul.f32 %v5137, %v5157
    %v5222 = vmul.f32 %v5137, %v5158
    %v5223 = vmul.f32 %v5137, %v5159
    %v5224 = vmul.f32 %v5137, %v5160
    %v5225 = vmul.f32 %v5137, %v5161
    %v5226 = vmul.f32 %v5137, %v5162
    %v5227 = vmul.f32 %v5137, %v5163
    %v5228 = vmul.f32 %v5137, %v5164
    %v5229 = vmul.f32 %v5137, %v5165
    %v5230 = vmul.f32 %v5137, %v5166
    %v5231 = vmul.f32 %v5137, %v5167
    %v5232 = vmul.f32 %v5137, %v5168
    %v5233 = vmul.f32 %v5137, %v5169
    %v5234 = vmul.f32 %v5137, %v5170
    %v5235 = vmul.f32 %v5138, %v5171
    %v5236 = vmul.f32 %v5138, %v5172
    %v5237 = vmul.f32 %v5138, %v5173
    %v5238 = vmul.f32 %v5138, %v5174
    %v5239 = vmul.f32 %v5138, %v5175
    %v5240 = vmul.f32 %v5138, %v5176
    %v5241 = vmul.f32 %v5138, %v5177
    %v5242 = vmul.f32 %v5138, %v5178
    %v5243 = vmul.f32 %v5138, %v5179
    %v5244 = vmul.f32 %v5138, %v5180
    %v5245 = vmul.f32 %v5138, %v5181
    %v5246 = vmul.f32 %v5138, %v5182
    %v5247 = vmul.f32 %v5138, %v5183
    %v5248 = vmul.f32 %v5138, %v5184
    %v5249 = vmul.f32 %v5138, %v5185
    %v5250 = vmul.f32 %v5138, %v5186
    %v5251 = vmul.f32 %v5138, %v5187
    %v5252 = vmul.f32 %v5138, %v5188
    %v5253 = vmul.f32 %v5138, %v5189
    %v5254 = vmul.f32 %v5138, %v5190
    %v5255 = vmul.f32 %v5138, %v5191
    %v5256 = vmul.f32 %v5138, %v5192
    %v5257 = vmul.f32 %v5138, %v5193
    %v5258 = vmul.f32 %v5138, %v5194
    %v5259 = vmul.f32 %v5138, %v5195
    %v5260 = vmul.f32 %v5138, %v5196
    %v5261 = vmul.f32 %v5138, %v5197
    %v5262 = vmul.f32 %v5138, %v5198
    %v5263 = vmul.f32 %v5138, %v5199
    %v5264 = vmul.f32 %v5138, %v5200
    %v5265 = vmul.f32 %v5138, %v5201
    %v5266 = vmul.f32 %v5138, %v5202
    %v5267 = vadd.f32 %v4277, %v5203
    %v5268 = vadd.f32 %v4278, %v5204
    %v5269 = vadd.f32 %v4279, %v5205
    %v5270 = vadd.f32 %v4280, %v5206
    %v5271 = vadd.f32 %v4281, %v5207
    %v5272 = vadd.f32 %v4282, %v5208
    %v5273 = vadd.f32 %v4283, %v5209
    %v5274 = vadd.f32 %v4284, %v5210
    %v5275 = vadd.f32 %v4285, %v5211
    %v5276 = vadd.f32 %v4286, %v5212
    %v5277 = vadd.f32 %v4287, %v5213
    %v5278 = vadd.f32 %v4288, %v5214
    %v5279 = vadd.f32 %v4289, %v5215
    %v5280 = vadd.f32 %v4290, %v5216
    %v5281 = vadd.f32 %v4291, %v5217
    %v5282 = vadd.f32 %v4292, %v5218
    %v5283 = vadd.f32 %v4293, %v5219
    %v5284 = vadd.f32 %v4294, %v5220
    %v5285 = vadd.f32 %v4295, %v5221
    %v5286 = vadd.f32 %v4296, %v5222
    %v5287 = vadd.f32 %v4297, %v5223
    %v5288 = vadd.f32 %v4298, %v5224
    %v5289 = vadd.f32 %v4299, %v5225
    %v5290 = vadd.f32 %v4300, %v5226
    %v5291 = vadd.f32 %v4301, %v5227
    %v5292 = vadd.f32 %v4302, %v5228
    %v5293 = vadd.f32 %v4303, %v5229
    %v5294 = vadd.f32 %v4304, %v5230
    %v5295 = vadd.f32 %v4305, %v5231
    %v5296 = vadd.f32 %v4306, %v5232
    %v5297 = vadd.f32 %v4307, %v5233
    %v5298 = vadd.f32 %v4308, %v5234
    %v5299 = vadd.f32 %v4309, %v5235
    %v5300 = vadd.f32 %v4310, %v5236
    %v5301 = vadd.f32 %v4311, %v5237
    %v5302 = vadd.f32 %v4312, %v5238
    %v5303 = vadd.f32 %v4313, %v5239
    %v5304 = vadd.f32 %v4314, %v5240
    %v5305 = vadd.f32 %v4315, %v5241
    %v5306 = vadd.f32 %v4316, %v5242
    %v5307 = vadd.f32 %v4317, %v5243
    %v5308 = vadd.f32 %v4318, %v5244
    %v5309 = vadd.f32 %v4319, %v5245
    %v5310 = vadd.f32 %v4320, %v5246
    %v5311 = vadd.f32 %v4321, %v5247
    %v5312 = vadd.f32 %v4322, %v5248
    %v5313 = vadd.f32 %v4323, %v5249
    %v5314 = vadd.f32 %v4324, %v5250
    %v5315 = vadd.f32 %v4325, %v5251
    %v5316 = vadd.f32 %v4326, %v5252
    %v5317 = vadd.f32 %v4327, %v5253
    %v5318 = vadd.f32 %v4328, %v5254
    %v5319 = vadd.f32 %v4329, %v5255
    %v5320 = vadd.f32 %v4330, %v5256
    %v5321 = vadd.f32 %v4331, %v5257
    %v5322 = vadd.f32 %v4332, %v5258
    %v5323 = vadd.f32 %v4333, %v5259
    %v5324 = vadd.f32 %v4334, %v5260
    %v5325 = vadd.f32 %v4335, %v5261
    %v5326 = vadd.f32 %v4336, %v5262
    %v5327 = vadd.f32 %v4337, %v5263
    %v5328 = vadd.f32 %v4338, %v5264
    %v5329 = vadd.f32 %v4339, %v5265
    %v5330 = vadd.f32 %v4340, %v5266
    %5331 = vst [vmem:[#allocation2] sm:$0xff] %v5267
    %5332 = vst [vmem:[#allocation2 + $0x8] sm:$0xff] %v5268
    %5333 = vst [vmem:[#allocation2 + $0x10] sm:$0xff] %v5269
    %5334 = vst [vmem:[#allocation2 + $0x18] sm:$0xff] %v5270
    %5335 = vst [vmem:[#allocation2 + $0x20] sm:$0xff] %v5271
    %5336 = vst [vmem:[#allocation2 + $0x28] sm:$0xff] %v5272
    %5337 = vst [vmem:[#allocation2 + $0x30] sm:$0xff] %v5273
    %5338 = vst [vmem:[#allocation2 + $0x38] sm:$0xff] %v5274
    %5339 = vst [vmem:[#allocation2 + $0x40] sm:$0xff] %v5275
    %5340 = vst [vmem:[#allocation2 + $0x48] sm:$0xff] %v5276
    %5341 = vst [vmem:[#allocation2 + $0x50] sm:$0xff] %v5277
    %5342 = vst [vmem:[#allocation2 + $0x58] sm:$0xff] %v5278
    %5343 = vst [vmem:[#allocation2 + $0x60] sm:$0xff] %v5279
    %5344 = vst [vmem:[#allocation2 + $0x68] sm:$0xff] %v5280
    %5345 = vst [vmem:[#allocation2 + $0x70] sm:$0xff] %v5281
    %5346 = vst [vmem:[#allocation2 + $0x78] sm:$0xff] %v5282
    %5347 = vst [vmem:[#allocation2 + $0x80] sm:$0xff] %v5283
    %5348 = vst [vmem:[#allocation2 + $0x88] sm:$0xff] %v5284
    %5349 = vst [vmem:[#allocation2 + $0x90] sm:$0xff] %v5285
    %5350 = vst [vmem:[#allocation2 + $0x98] sm:$0xff] %v5286
    %5351 = vst [vmem:[#allocation2 + $0xa0] sm:$0xff] %v5287
    %5352 = vst [vmem:[#allocation2 + $0xa8] sm:$0xff] %v5288
    %5353 = vst [vmem:[#allocation2 + $0xb0] sm:$0xff] %v5289
    %5354 = vst [vmem:[#allocation2 + $0xb8] sm:$0xff] %v5290
    %5355 = vst [vmem:[#allocation2 + $0xc0] sm:$0xff] %v5291
    %5356 = vst [vmem:[#allocation2 + $0xc8] sm:$0xff] %v5292
    %5357 = vst [vmem:[#allocation2 + $0xd0] sm:$0xff] %v5293
    %5358 = vst [vmem:[#allocation2 + $0xd8] sm:$0xff] %v5294
    %5359 = vst [vmem:[#allocation2 + $0xe0] sm:$0xff] %v5295
    %5360 = vst [vmem:[#allocation2 + $0xe8] sm:$0xff] %v5296
    %5361 = vst [vmem:[#allocation2 + $0xf0] sm:$0xff] %v5297
    %5362 = vst [vmem:[#allocation2 + $0xf8] sm:$0xff] %v5298
    %5363 = vst [vmem:[#allocation2 + $0x100] sm:$0xff] %v5299
    %5364 = vst [vmem:[#allocation2 + $0x108] sm:$0xff] %v5300
    %5365 = vst [vmem:[#allocation2 + $0x110] sm:$0xff] %v5301
    %5366 = vst [vmem:[#allocation2 + $0x118] sm:$0xff] %v5302
    %5367 = vst [vmem:[#allocation2 + $0x120] sm:$0xff] %v5303
    %5368 = vst [vmem:[#allocation2 + $0x128] sm:$0xff] %v5304
    %5369 = vst [vmem:[#allocation2 + $0x130] sm:$0xff] %v5305
    %5370 = vst [vmem:[#allocation2 + $0x138] sm:$0xff] %v5306
    %5371 = vst [vmem:[#allocation2 + $0x140] sm:$0xff] %v5307
    %5372 = vst [vmem:[#allocation2 + $0x148] sm:$0xff] %v5308
    %5373 = vst [vmem:[#allocation2 + $0x150] sm:$0xff] %v5309
    %5374 = vst [vmem:[#allocation2 + $0x158] sm:$0xff] %v5310
    %5375 = vst [vmem:[#allocation2 + $0x160] sm:$0xff] %v5311
    %5376 = vst [vmem:[#allocation2 + $0x168] sm:$0xff] %v5312
    %5377 = vst [vmem:[#allocation2 + $0x170] sm:$0xff] %v5313
    %5378 = vst [vmem:[#allocation2 + $0x178] sm:$0xff] %v5314
    %5379 = vst [vmem:[#allocation2 + $0x180] sm:$0xff] %v5315
    %5380 = vst [vmem:[#allocation2 + $0x188] sm:$0xff] %v5316
    %5381 = vst [vmem:[#allocation2 + $0x190] sm:$0xff] %v5317
    %5382 = vst [vmem:[#allocation2 + $0x198] sm:$0xff] %v5318
    %5383 = vst [vmem:[#allocation2 + $0x1a0] sm:$0xff] %v5319
    %5384 = vst [vmem:[#allocation2 + $0x1a8] sm:$0xff] %v5320
    %5385 = vst [vmem:[#allocation2 + $0x1b0] sm:$0xff] %v5321
    %5386 = vst [vmem:[#allocation2 + $0x1b8] sm:$0xff] %v5322
    %5387 = vst [vmem:[#allocation2 + $0x1c0] sm:$0xff] %v5323
    %5388 = vst [vmem:[#allocation2 + $0x1c8] sm:$0xff] %v5324
    %5389 = vst [vmem:[#allocation2 + $0x1d0] sm:$0xff] %v5325
    %5390 = vst [vmem:[#allocation2 + $0x1d8] sm:$0xff] %v5326
    %5391 = vst [vmem:[#allocation2 + $0x1e0] sm:$0xff] %v5327
    %5392 = vst [vmem:[#allocation2 + $0x1e8] sm:$0xff] %v5328
    %5393 = vst [vmem:[#allocation2 + $0x1f0] sm:$0xff] %v5329
    %5394 = vst [vmem:[#allocation2 + $0x1f8] sm:$0xff] %v5330
    // Predicated region
    $region34: #{tpu_custom_call.1} parent=1 // pred_check
      _
    $region35: #{tpu_custom_call.1} parent=1 // pred_check_branch
      %5396 = sbr.rel (0) target = $region37
    $region36: #{tpu_custom_call.1} parent=1 // pred_region
      %5398 = vsyncadd [#allocation3], 0
      %s5399 = sshll.u32 [#allocation2], 4
      %s5400 = int_to_ptr.vmem [resolvable:$true] %s5399
      %s5401 = sshll.u32 %s8, 4
      %s5402 = int_to_ptr.hbm [resolvable:$true] %s5401
      %5407 = dma.vmem_to_hbm [thread:$0]  %s5400, 8192, %s5402, [#allocation3], 128, 128, 8
    $region37: #{tpu_custom_call.1} parent=1 // pred_fallthru
      _
    // Predicated region
    $region38: #{tpu_custom_call.1} parent=1 // pred_check
      _
    $region39: #{tpu_custom_call.1} parent=1 // pred_check_branch
      %5409 = sbr.rel (0) target = $region41
    $region40: #{tpu_custom_call.1} parent=1 // pred_region
      %5411 = dma.done [#allocation3], 8192
    $region41: #{tpu_custom_call.1} parent=1 // pred_fallthru
      _
    %5412 = vsyncpa [#allocation3], 1

</llo_original>
